<compile_context>
chip_gen: v7x
topology: tpu7x:2x2x1
jax: 0.10.0
libtpu: 0.0.40
codegen_flags: <defaults>
</compile_context>

<pallas_src>
import functools
import math

import jax
import jax.numpy as jnp
from jax.experimental import pallas as pl
from jax.experimental.pallas import tpu as pltpu

# ----------------------- scaled-down BERT config -----------------------
VOCAB = 64
TYPE_VOCAB = 2
MAX_POS = 32
HIDDEN = 128
NUM_HEADS = 2
HEAD_DIM = HIDDEN // NUM_HEADS
INTERMEDIATE = 256
NUM_LAYERS = 2
CLS_HIDDEN = 256          # mirrors nn.Linear(768*2, 256) at reduced width
NUM_CLASSES = 3
C_PAD = 128               # lane-padded logits width
LN_EPS = 1e-12


# ----------------------------- in-kernel helpers -----------------------------
def _ln(h, g, b):
    mu = jnp.mean(h, axis=-1, keepdims=True)
    d = h - mu
    var = jnp.mean(d * d, axis=-1, keepdims=True)
    inv = jax.lax.rsqrt(var + LN_EPS)
    return d * inv * g + b


def _gelu(x):
    # TODO(synk): HF BERT uses erf-GELU; tanh approximation used here.
    return 0.5 * x * (1.0 + jnp.tanh(0.7978845608028654 * (x + 0.044715 * x * x * x)))


# --------------------------- fused encoder kernel ---------------------------
def _encoder_kernel(emb_ref, mask_ref, eg_ref, eb_ref,
                    wqkv_ref, bqkv_ref, ao_w_ref, ao_b_ref, ln1_g_ref, ln1_b_ref,
                    inter_w_ref, inter_b_ref, out_w_ref, out_b_ref,
                    ln2_g_ref, ln2_b_ref, pool_w_ref, pool_b_ref,
                    pooled_ref, ctx_ref,
                    *, batch, seq, num_heads, head_dim, num_layers):
    H = num_heads * head_dim
    scale = 1.0 / math.sqrt(head_dim)

    mask = mask_ref[...]                                       # (B*S, B*S) additive f32

    # embedding LayerNorm (first in-kernel step)
    x = _ln(emb_ref[...], eg_ref[...], eb_ref[...])            # (B*S, H) f32

    for l in range(num_layers):                                # static unrolled layer loop
        xb = x.astype(jnp.bfloat16)

        # fused QKV projection (one wide MXU op)
        qkv = jnp.dot(xb, wqkv_ref[l],
                      preferred_element_type=jnp.float32) + bqkv_ref[l]   # (B*S, 3H) f32
        # hoisted bf16 casts (once per layer, not per head slice)
        q = qkv[:, :H].astype(jnp.bfloat16)
        k = qkv[:, H:2 * H].astype(jnp.bfloat16)
        v = qkv[:, 2 * H:].astype(jnp.bfloat16)

        # per-head attention over all B*S rows with block-diagonal additive mask
        for hh in range(num_heads):
            c0 = hh * head_dim
            qh = q[:, c0:c0 + head_dim]
            kh = k[:, c0:c0 + head_dim]
            vh = v[:, c0:c0 + head_dim]
            s = jax.lax.dot_general(qh, kh, (((1,), (1,)), ((), ())),
                                    preferred_element_type=jnp.float32)   # (B*S, B*S)
            s = s * scale + mask
            s = s - jnp.max(s, axis=-1, keepdims=True)
            p = jnp.exp(s)
            denom = jnp.sum(p, axis=-1, keepdims=True)          # >= 1 (row max unmasked)
            p = p * pl.reciprocal(denom, approx=True)
            # direct store into VMEM scratch at this head's static lane offset
            ctx_ref[:, c0:c0 + head_dim] = jnp.dot(
                p.astype(jnp.bfloat16), vh, preferred_element_type=jnp.float32)

        # attention output projection + residual + LayerNorm
        attn_out = jnp.dot(ctx_ref[...].astype(jnp.bfloat16), ao_w_ref[l],
                           preferred_element_type=jnp.float32) + ao_b_ref[l]
        h1 = _ln(attn_out + x, ln1_g_ref[l], ln1_b_ref[l])

        # FFN (GELU) + residual + LayerNorm
        inter = jnp.dot(h1.astype(jnp.bfloat16), inter_w_ref[l],
                        preferred_element_type=jnp.float32) + inter_b_ref[l]
        inter = _gelu(inter)
        ffn = jnp.dot(inter.astype(jnp.bfloat16), out_w_ref[l],
                      preferred_element_type=jnp.float32) + out_b_ref[l]
        x = _ln(ffn + h1, ln2_g_ref[l], ln2_b_ref[l])

    # BERT pooler on CLS tokens (row b*S of each batch), fused in-kernel
    cls = jnp.concatenate([x[b * seq:b * seq + 1, :] for b in range(batch)], axis=0)  # (B, H)
    pooled = jnp.tanh(jnp.dot(cls.astype(jnp.bfloat16), pool_w_ref[...],
                              preferred_element_type=jnp.float32) + pool_b_ref[...])
    pooled_ref[...] = pooled.astype(pooled_ref.dtype)


def _enc_spec(*dims):
    n = len(dims)
    return pl.BlockSpec((None,) + dims, lambda e, n=n: (e,) + (0,) * n)


def fused_encoder(h, add_mask, p, B, S):
    # h: (2, B*S, H) f32 embeddings; add_mask: (2, B*S, B*S) f32 block-diagonal additive mask
    BS = B * S
    L = NUM_LAYERS
    kern = functools.partial(_encoder_kernel, batch=B, seq=S,
                             num_heads=NUM_HEADS, head_dim=HEAD_DIM, num_layers=L)
    return pl.pallas_call(
        kern,
        out_shape=jax.ShapeDtypeStruct((2, B, HIDDEN), jnp.float32),
        grid=(2,),
        in_specs=[
            _enc_spec(BS, HIDDEN),                               # embeddings
            _enc_spec(BS, BS),                                   # additive mask
            _enc_spec(1, HIDDEN), _enc_spec(1, HIDDEN),          # emb LN
            _enc_spec(L, HIDDEN, 3 * HIDDEN), _enc_spec(L, 1, 3 * HIDDEN),
            _enc_spec(L, HIDDEN, HIDDEN), _enc_spec(L, 1, HIDDEN),
            _enc_spec(L, 1, HIDDEN), _enc_spec(L, 1, HIDDEN),
            _enc_spec(L, HIDDEN, INTERMEDIATE), _enc_spec(L, 1, INTERMEDIATE),
            _enc_spec(L, INTERMEDIATE, HIDDEN), _enc_spec(L, 1, HIDDEN),
            _enc_spec(L, 1, HIDDEN), _enc_spec(L, 1, HIDDEN),
            _enc_spec(HIDDEN, HIDDEN), _enc_spec(1, HIDDEN),     # pooler
        ],
        out_specs=_enc_spec(B, HIDDEN),
        scratch_shapes=[pltpu.VMEM((BS, HIDDEN), jnp.float32)],   # attention context
        compiler_params=pltpu.CompilerParams(dimension_semantics=("parallel",)),
    )(h, add_mask, p["emb_ln_g"], p["emb_ln_b"],
      p["wqkv"], p["bqkv"], p["ao_w"], p["ao_b"], p["ln1_g"], p["ln1_b"],
      p["inter_w"], p["inter_b"], p["out_w"], p["out_b"], p["ln2_g"], p["ln2_b"],
      p["pool_w"], p["pool_b"])


# ------------------------------ classifier head ------------------------------
def _head_kernel(p1_ref, p2_ref, w1_ref, b1_ref, w2_ref, b2_ref, labels_ref,
                 loss_ref, logits_ref, *, num_classes):
    cat = jnp.concatenate([p1_ref[...], p2_ref[...]], axis=-1)              # (B, 2H)

    hcls = jnp.dot(cat.astype(jnp.bfloat16), w1_ref[...],
                   preferred_element_type=jnp.float32) + b1_ref[...]
    hcls = jnp.maximum(hcls, 0.0)
    logits = jnp.dot(hcls.astype(jnp.bfloat16), w2_ref[...],
                     preferred_element_type=jnp.float32) + b2_ref[...]      # (B, C_PAD)
    logits_ref[...] = logits.astype(logits_ref.dtype)

    # cross-entropy over the valid classes only (pad columns zero-weighted + masked)
    B, Cp = logits.shape
    classes = jax.lax.broadcasted_iota(jnp.int32, (B, Cp), 1)
    valid = classes < num_classes
    ml = jnp.where(valid, logits, jnp.full_like(logits, -1e30))
    m = jnp.max(ml, axis=-1, keepdims=True)
    shifted = ml - m
    lse = jnp.log(jnp.sum(jnp.exp(shifted), axis=-1, keepdims=True))        # (B, 1)
    onehot = (classes == labels_ref[...]).astype(jnp.float32)               # (B, Cp)
    picked = jnp.sum(shifted * onehot, axis=-1, keepdims=True)              # (B, 1)
    loss_ref[0, 0] = jnp.mean(lse - picked)                                 # scalar -> SMEM


def classifier_head(pooled1, pooled2, w1, b1, w2, b2, labels):
    B = pooled1.shape[0]
    labels2d = labels.reshape(B, 1).astype(jnp.int32)
    vmem = pl.BlockSpec(memory_space=pltpu.MemorySpace.VMEM)
    return pl.pallas_call(
        functools.partial(_head_kernel, num_classes=NUM_CLASSES),
        out_shape=(jax.ShapeDtypeStruct((1, 1), jnp.float32),               # loss (SMEM)
                   jax.ShapeDtypeStruct((B, C_PAD), jnp.float32)),          # padded logits
        in_specs=[vmem] * 7,
        out_specs=(pl.BlockSpec(memory_space=pltpu.MemorySpace.SMEM), vmem),
    )(pooled1, pooled2, w1, b1, w2, b2, labels2d)


# ------------------------------ model forward ------------------------------
def _block_additive_mask(mask, B, S):
    # block-diagonal additive attention mask over the flattened (B*S) rows/keys:
    # 0 where query and key are in the same batch AND the key is unmasked, else -1e4.
    key_ok = mask.astype(jnp.float32).reshape(1, B * S)
    bq = (jnp.arange(B * S) // S)[:, None]
    bk = (jnp.arange(B * S) // S)[None, :]
    same = (bq == bk).astype(jnp.float32)
    allow = same * key_ok
    return (1.0 - allow) * -10000.0


def unshared_model(params, input_ids1, input_ids2,
                   attention_mask1, attention_mask2,
                   token_type_ids1, token_type_ids2, labels):
    def as2d(x):
        return x[None, :] if x.ndim == 1 else x

    ids = [as2d(input_ids1), as2d(input_ids2)]
    masks = [as2d(attention_mask1), as2d(attention_mask2)]
    types = [as2d(token_type_ids1), as2d(token_type_ids2)]
    B, S = ids[0].shape

    # TODO(synk): embedding token gathers stay in plain JAX (data-dependent gather).
    embs = []
    for e in range(2):
        emb = (jnp.take(params["word_emb"][e], ids[e], axis=0)
               + params["pos_emb"][e, :S, :][None, :, :]
               + jnp.take(params["type_emb"][e], types[e], axis=0))
        embs.append(emb.reshape(B * S, HIDDEN))
    h = jnp.stack(embs)                                        # (2, B*S, H)

    add_mask = jnp.stack([_block_additive_mask(masks[0], B, S),
                          _block_additive_mask(masks[1], B, S)])   # (2, B*S, B*S)

    # single fused pallas_call: emb-LN + all layers + pooler, grid=(2,) over encoders
    pooled = fused_encoder(h, add_mask, params, B, S)          # (2, B, H)

    loss2d, logits_pad = classifier_head(
        pooled[0], pooled[1],
        params["cls_w1"], params["cls_b1"],
        params["cls_w2"], params["cls_b2"],
        labels)
    logits = logits_pad[:, :NUM_CLASSES]
    return loss2d[0, 0], logits


# --------------------------- deterministic params ---------------------------
def init_params(key):
    cnt = [0]

    def nk():
        cnt[0] += 1
        return jax.random.fold_in(key, cnt[0])

    def dense(*shape):
        return jax.random.normal(nk(), shape, jnp.float32) * 0.02

    L = NUM_LAYERS
    cls_w2 = dense(CLS_HIDDEN, NUM_CLASSES)
    cls_w2p = jnp.zeros((CLS_HIDDEN, C_PAD), jnp.float32).at[:, :NUM_CLASSES].set(cls_w2)

    return {
        # leading axis 2 = {encoder1, encoder2}; per-layer weights stacked on axis 1.
        "word_emb": dense(2, VOCAB, HIDDEN),
        "pos_emb": dense(2, MAX_POS, HIDDEN),
        "type_emb": dense(2, TYPE_VOCAB, HIDDEN),
        "emb_ln_g": jnp.ones((2, 1, HIDDEN), jnp.float32),
        "emb_ln_b": jnp.zeros((2, 1, HIDDEN), jnp.float32),
        "wqkv": dense(2, L, HIDDEN, 3 * HIDDEN).astype(jnp.bfloat16),
        "bqkv": jnp.zeros((2, L, 1, 3 * HIDDEN), jnp.float32),
        "ao_w": dense(2, L, HIDDEN, HIDDEN).astype(jnp.bfloat16),
        "ao_b": jnp.zeros((2, L, 1, HIDDEN), jnp.float32),
        "ln1_g": jnp.ones((2, L, 1, HIDDEN), jnp.float32),
        "ln1_b": jnp.zeros((2, L, 1, HIDDEN), jnp.float32),
        "inter_w": dense(2, L, HIDDEN, INTERMEDIATE).astype(jnp.bfloat16),
        "inter_b": jnp.zeros((2, L, 1, INTERMEDIATE), jnp.float32),
        "out_w": dense(2, L, INTERMEDIATE, HIDDEN).astype(jnp.bfloat16),
        "out_b": jnp.zeros((2, L, 1, HIDDEN), jnp.float32),
        "ln2_g": jnp.ones((2, L, 1, HIDDEN), jnp.float32),
        "ln2_b": jnp.zeros((2, L, 1, HIDDEN), jnp.float32),
        "pool_w": dense(2, HIDDEN, HIDDEN).astype(jnp.bfloat16),
        "pool_b": jnp.zeros((2, 1, HIDDEN), jnp.float32),
        "cls_w1": dense(2 * HIDDEN, CLS_HIDDEN).astype(jnp.bfloat16),
        "cls_b1": jnp.zeros((1, CLS_HIDDEN), jnp.float32),
        "cls_w2": cls_w2p.astype(jnp.bfloat16),
        "cls_b2": jnp.zeros((1, C_PAD), jnp.float32),
    }


# ----------------------------------- main -----------------------------------
if __name__ == "__main__":
    B, S = 2, 16
    key = jax.random.PRNGKey(0)
    params = init_params(key)

    ks = jax.random.split(key, 8)
    input_ids1 = jax.random.randint(ks[0], (B, S), 0, VOCAB, dtype=jnp.int32)
    input_ids2 = jax.random.randint(ks[1], (B, S), 0, VOCAB, dtype=jnp.int32)
    attention_mask1 = jnp.ones((B, S), jnp.int32).at[:, S - 3:].set(0)
    attention_mask2 = jnp.ones((B, S), jnp.int32).at[:, S - 5:].set(0)
    token_type_ids1 = jnp.concatenate(
        [jnp.zeros((B, S // 2), jnp.int32), jnp.ones((B, S // 2), jnp.int32)], axis=1)
    token_type_ids2 = jnp.concatenate(
        [jnp.zeros((B, S // 2), jnp.int32), jnp.ones((B, S // 2), jnp.int32)], axis=1)
    labels = jax.random.randint(ks[2], (B,), 0, NUM_CLASSES, dtype=jnp.int32)

    fwd = jax.jit(unshared_model)
    loss, logits = fwd(params, input_ids1, input_ids2,
                       attention_mask1, attention_mask2,
                       token_type_ids1, token_type_ids2, labels)
    jax.block_until_ready((loss, logits))
    assert logits.shape == (B, NUM_CLASSES)
    assert loss.shape == ()
    assert bool(jnp.isfinite(loss))
    print("KERNEL_OK")
</pallas_src>

<mosaic_0001>
module attributes {stable_mosaic.version = 11 : i64} {
  func.func @_head_kernel(%arg0: memref<2x128xf32, #tpu.memory_space<vmem>>, %arg1: memref<2x128xf32, #tpu.memory_space<vmem>>, %arg2: memref<256x256xbf16, #tpu.memory_space<vmem>>, %arg3: memref<1x256xf32, #tpu.memory_space<vmem>>, %arg4: memref<256x128xbf16, #tpu.memory_space<vmem>>, %arg5: memref<1x128xf32, #tpu.memory_space<vmem>>, %arg6: memref<2x1xi32, #tpu.memory_space<vmem>>, %arg7: memref<1x1xf32, #tpu.memory_space<smem>>, %arg8: memref<2x128xf32, #tpu.memory_space<vmem>>) attributes {dimension_semantics = [], scalar_prefetch = 0 : i64, scratch_operands = 0 : i64, tpu.core_type = #tpu.core_type<tc>} {
    %c0 = arith.constant 0 : index
    %c0_0 = arith.constant 0 : index
    %0 = vector.load %arg0[%c0, %c0_0] : memref<2x128xf32, #tpu.memory_space<vmem>>, vector<2x128xf32>
    %c0_1 = arith.constant 0 : index
    %c0_2 = arith.constant 0 : index
    %1 = vector.load %arg1[%c0_1, %c0_2] : memref<2x128xf32, #tpu.memory_space<vmem>>, vector<2x128xf32>
    %2 = tpu.concatenate %0, %1 in 1 : vector<2x128xf32>, vector<2x128xf32> -> vector<2x256xf32>
    %3 = arith.truncf %2 : vector<2x256xf32> to vector<2x256xbf16>
    %c0_3 = arith.constant 0 : index
    %c0_4 = arith.constant 0 : index
    %4 = vector.load %arg2[%c0_3, %c0_4] : memref<256x256xbf16, #tpu.memory_space<vmem>>, vector<256x256xbf16>
    %cst = arith.constant dense<0.000000e+00> : vector<2x256xf32>
    %5 = tpu.matmul %3, %4, %cst {dimension_numbers = #tpu.dot_dimension_numbers<[1], [0], [0], [1], [0, 0, 1, 1], [], []>} : vector<2x256xbf16>, vector<256x256xbf16>, vector<2x256xf32> -> vector<2x256xf32>
    %c0_5 = arith.constant 0 : index
    %c0_6 = arith.constant 0 : index
    %6 = vector.load %arg3[%c0_5, %c0_6] : memref<1x256xf32, #tpu.memory_space<vmem>>, vector<1x256xf32>
    %7 = vector.broadcast %6 : vector<1x256xf32> to vector<2x256xf32>
    %8 = arith.addf %5, %7 : vector<2x256xf32>
    %cst_7 = arith.constant 0.000000e+00 : f32
    %9 = vector.broadcast %cst_7 : f32 to vector<2x256xf32>
    %10 = arith.maximumf %8, %9 : vector<2x256xf32>
    %11 = arith.truncf %10 : vector<2x256xf32> to vector<2x256xbf16>
    %c0_8 = arith.constant 0 : index
    %c0_9 = arith.constant 0 : index
    %12 = vector.load %arg4[%c0_8, %c0_9] : memref<256x128xbf16, #tpu.memory_space<vmem>>, vector<256x128xbf16>
    %cst_10 = arith.constant dense<0.000000e+00> : vector<2x128xf32>
    %13 = tpu.matmul %11, %12, %cst_10 {dimension_numbers = #tpu.dot_dimension_numbers<[1], [0], [0], [1], [0, 0, 1, 1], [], []>} : vector<2x256xbf16>, vector<256x128xbf16>, vector<2x128xf32> -> vector<2x128xf32>
    %c0_11 = arith.constant 0 : index
    %c0_12 = arith.constant 0 : index
    %14 = vector.load %arg5[%c0_11, %c0_12] : memref<1x128xf32, #tpu.memory_space<vmem>>, vector<1x128xf32>
    %15 = vector.broadcast %14 : vector<1x128xf32> to vector<2x128xf32>
    %16 = arith.addf %13, %15 : vector<2x128xf32>
    %c0_13 = arith.constant 0 : index
    %c0_14 = arith.constant 0 : index
    %17 = vector.load %arg8[%c0_13, %c0_14] : memref<2x128xf32, #tpu.memory_space<vmem>>, vector<2x128xf32>
    tpu.vector_store %arg8[%c0_13, %c0_14], %16 {strides = array<i32>} : memref<2x128xf32, #tpu.memory_space<vmem>>, vector<2x128xf32>,
    %18 = tpu.iota {dimensions = array<i32: 1>} : vector<2x128xi32>
    %c3_i32 = arith.constant 3 : i32
    %19 = vector.broadcast %c3_i32 : i32 to vector<2x128xi32>
    %20 = arith.cmpi slt, %18, %19 : vector<2x128xi32>
    %cst_15 = arith.constant -1.000000e+30 : f32
    %21 = vector.broadcast %cst_15 : f32 to vector<2x128xf32>
    %22 = arith.select %20, %16, %21 : vector<2x128xi1>, vector<2x128xf32>
    %cst_16 = arith.constant dense<0xFF800000> : vector<2xf32>
    %23 = vector.multi_reduction <maximumf>, %22, %cst_16 [1] : vector<2x128xf32> to vector<2xf32>
    %24 = vector.shape_cast %23 : vector<2xf32> to vector<2x1xf32>
    %25 = vector.broadcast %24 : vector<2x1xf32> to vector<2x128xf32>
    %26 = arith.subf %22, %25 : vector<2x128xf32>
    %27 = math.exp %26 : vector<2x128xf32>
    %cst_17 = arith.constant dense<0.000000e+00> : vector<2xf32>
    %28 = vector.multi_reduction <add>, %27, %cst_17 [1] : vector<2x128xf32> to vector<2xf32>
    %29 = vector.shape_cast %28 : vector<2xf32> to vector<2x1xf32>
    %30 = math.log %29 : vector<2x1xf32>
    %c0_18 = arith.constant 0 : index
    %c0_19 = arith.constant 0 : index
    %31 = vector.load %arg6[%c0_18, %c0_19] : memref<2x1xi32, #tpu.memory_space<vmem>>, vector<2x1xi32>
    %32 = vector.broadcast %31 : vector<2x1xi32> to vector<2x128xi32>
    %33 = arith.cmpi eq, %18, %32 : vector<2x128xi32>
    %34 = arith.extui %33 : vector<2x128xi1> to vector<2x128xi32>
    %35 = arith.sitofp %34 : vector<2x128xi32> to vector<2x128xf32>
    %36 = arith.mulf %26, %35 : vector<2x128xf32>
    %cst_20 = arith.constant dense<0.000000e+00> : vector<2xf32>
    %37 = vector.multi_reduction <add>, %36, %cst_20 [1] : vector<2x128xf32> to vector<2xf32>
    %38 = vector.shape_cast %37 : vector<2xf32> to vector<2x1xf32>
    %39 = arith.subf %30, %38 : vector<2x1xf32>
    %40 = vector.shape_cast %39 : vector<2x1xf32> to vector<1x2x1xf32>
    %cst_21 = arith.constant dense<0.000000e+00> : vector<1xf32>
    %41 = vector.multi_reduction <add>, %40, %cst_21 [1, 2] : vector<1x2x1xf32> to vector<1xf32>
    %42 = vector.shape_cast %41 : vector<1xf32> to vector<1x1x1xf32>
    %43 = vector.extract %42[0, 0, 0] : f32 from vector<1x1x1xf32>
    %cst_22 = arith.constant 2.000000e+00 : f32
    %44 = arith.divf %43, %cst_22 : f32
    %c0_23 = arith.constant 0 : index
    %c0_24 = arith.constant 0 : index
    %45 = memref.load %arg7[%c0_23, %c0_24] : memref<1x1xf32, #tpu.memory_space<smem>>
    memref.store %44, %arg7[%c0_23, %c0_24] : memref<1x1xf32, #tpu.memory_space<smem>>
    return
  }
}

module attributes {stable_mosaic.version = 11 : i64} {
  func.func @_encoder_kernel(%arg0: i32, %arg1: memref<1x32x128xf32, #tpu.memory_space<vmem>>, %arg2: memref<1x32x32xf32, #tpu.memory_space<vmem>>, %arg3: memref<1x1x128xf32, #tpu.memory_space<vmem>>, %arg4: memref<1x1x128xf32, #tpu.memory_space<vmem>>, %arg5: memref<1x2x128x384xbf16, #tpu.memory_space<vmem>>, %arg6: memref<1x2x1x384xf32, #tpu.memory_space<vmem>>, %arg7: memref<1x2x128x128xbf16, #tpu.memory_space<vmem>>, %arg8: memref<1x2x1x128xf32, #tpu.memory_space<vmem>>, %arg9: memref<1x2x1x128xf32, #tpu.memory_space<vmem>>, %arg10: memref<1x2x1x128xf32, #tpu.memory_space<vmem>>, %arg11: memref<1x2x128x256xbf16, #tpu.memory_space<vmem>>, %arg12: memref<1x2x1x256xf32, #tpu.memory_space<vmem>>, %arg13: memref<1x2x256x128xbf16, #tpu.memory_space<vmem>>, %arg14: memref<1x2x1x128xf32, #tpu.memory_space<vmem>>, %arg15: memref<1x2x1x128xf32, #tpu.memory_space<vmem>>, %arg16: memref<1x2x1x128xf32, #tpu.memory_space<vmem>>, %arg17: memref<1x128x128xbf16, #tpu.memory_space<vmem>>, %arg18: memref<1x1x128xf32, #tpu.memory_space<vmem>>, %arg19: memref<1x2x128xf32, #tpu.memory_space<vmem>>, %arg20: memref<32x128xf32, #tpu.memory_space<vmem>>) attributes {dimension_semantics = [#tpu.dimension_semantics<parallel>], iteration_bounds = array<i64: 2>, scalar_prefetch = 0 : i64, scratch_operands = 1 : i64, tpu.core_type = #tpu.core_type<tc>, window_params = [{transform_indices = @transform_0, window_bounds = array<i64: 1, 32, 128>}, {transform_indices = @transform_1, window_bounds = array<i64: 1, 32, 32>}, {transform_indices = @transform_2, window_bounds = array<i64: 1, 1, 128>}, {transform_indices = @transform_3, window_bounds = array<i64: 1, 1, 128>}, {transform_indices = @transform_4, window_bounds = array<i64: 1, 2, 128, 384>}, {transform_indices = @transform_5, window_bounds = array<i64: 1, 2, 1, 384>}, {transform_indices = @transform_6, window_bounds = array<i64: 1, 2, 128, 128>}, {transform_indices = @transform_7, window_bounds = array<i64: 1, 2, 1, 128>}, {transform_indices = @transform_8, window_bounds = array<i64: 1, 2, 1, 128>}, {transform_indices = @transform_9, window_bounds = array<i64: 1, 2, 1, 128>}, {transform_indices = @transform_10, window_bounds = array<i64: 1, 2, 128, 256>}, {transform_indices = @transform_11, window_bounds = array<i64: 1, 2, 1, 256>}, {transform_indices = @transform_12, window_bounds = array<i64: 1, 2, 256, 128>}, {transform_indices = @transform_13, window_bounds = array<i64: 1, 2, 1, 128>}, {transform_indices = @transform_14, window_bounds = array<i64: 1, 2, 1, 128>}, {transform_indices = @transform_15, window_bounds = array<i64: 1, 2, 1, 128>}, {transform_indices = @transform_16, window_bounds = array<i64: 1, 128, 128>}, {transform_indices = @transform_17, window_bounds = array<i64: 1, 1, 128>}, {transform_indices = @transform_18, window_bounds = array<i64: 1, 2, 128>}]} {
    %c0 = arith.constant 0 : index
    %c0_0 = arith.constant 0 : index
    %c0_1 = arith.constant 0 : index
    %0 = vector.load %arg2[%c0, %c0_0, %c0_1] : memref<1x32x32xf32, #tpu.memory_space<vmem>>, vector<1x32x32xf32>
    %1 = vector.shape_cast %0 : vector<1x32x32xf32> to vector<32x32xf32>
    %c0_2 = arith.constant 0 : index
    %c0_3 = arith.constant 0 : index
    %c0_4 = arith.constant 0 : index
    %2 = vector.load %arg1[%c0_2, %c0_3, %c0_4] : memref<1x32x128xf32, #tpu.memory_space<vmem>>, vector<1x32x128xf32>
    %3 = vector.shape_cast %2 : vector<1x32x128xf32> to vector<32x128xf32>
    %c0_5 = arith.constant 0 : index
    %c0_6 = arith.constant 0 : index
    %c0_7 = arith.constant 0 : index
    %4 = vector.load %arg3[%c0_5, %c0_6, %c0_7] : memref<1x1x128xf32, #tpu.memory_space<vmem>>, vector<1x1x128xf32>
    %5 = vector.shape_cast %4 : vector<1x1x128xf32> to vector<1x128xf32>
    %c0_8 = arith.constant 0 : index
    %c0_9 = arith.constant 0 : index
    %c0_10 = arith.constant 0 : index
    %6 = vector.load %arg4[%c0_8, %c0_9, %c0_10] : memref<1x1x128xf32, #tpu.memory_space<vmem>>, vector<1x1x128xf32>
    %7 = vector.shape_cast %6 : vector<1x1x128xf32> to vector<1x128xf32>
    %cst = arith.constant dense<0.000000e+00> : vector<32xf32>
    %8 = vector.multi_reduction <add>, %3, %cst [1] : vector<32x128xf32> to vector<32xf32>
    %9 = vector.shape_cast %8 : vector<32xf32> to vector<32x1xf32>
    %cst_11 = arith.constant 1.280000e+02 : f32
    %10 = vector.broadcast %cst_11 : f32 to vector<32x1xf32>
    %11 = arith.divf %9, %10 : vector<32x1xf32>
    %12 = vector.broadcast %11 : vector<32x1xf32> to vector<32x128xf32>
    %13 = arith.subf %3, %12 : vector<32x128xf32>
    %14 = arith.mulf %13, %13 : vector<32x128xf32>
    %cst_12 = arith.constant dense<0.000000e+00> : vector<32xf32>
    %15 = vector.multi_reduction <add>, %14, %cst_12 [1] : vector<32x128xf32> to vector<32xf32>
    %16 = vector.shape_cast %15 : vector<32xf32> to vector<32x1xf32>
    %cst_13 = arith.constant 1.280000e+02 : f32
    %17 = vector.broadcast %cst_13 : f32 to vector<32x1xf32>
    %18 = arith.divf %16, %17 : vector<32x1xf32>
    %cst_14 = arith.constant 9.99999996E-13 : f32
    %19 = vector.broadcast %cst_14 : f32 to vector<32x1xf32>
    %20 = arith.addf %18, %19 : vector<32x1xf32>
    %21 = math.rsqrt %20 : vector<32x1xf32>
    %22 = vector.broadcast %21 : vector<32x1xf32> to vector<32x128xf32>
    %23 = arith.mulf %13, %22 : vector<32x128xf32>
    %24 = vector.broadcast %5 : vector<1x128xf32> to vector<32x128xf32>
    %25 = arith.mulf %23, %24 : vector<32x128xf32>
    %26 = vector.broadcast %7 : vector<1x128xf32> to vector<32x128xf32>
    %27 = arith.addf %25, %26 : vector<32x128xf32>
    %28 = arith.truncf %27 : vector<32x128xf32> to vector<32x128xbf16>
    %c0_15 = arith.constant 0 : index
    %c0_16 = arith.constant 0 : index
    %c0_17 = arith.constant 0 : index
    %c0_18 = arith.constant 0 : index
    %29 = vector.load %arg5[%c0_15, %c0_16, %c0_17, %c0_18] : memref<1x2x128x384xbf16, #tpu.memory_space<vmem>>, vector<1x1x128x384xbf16>
    %30 = vector.shape_cast %29 : vector<1x1x128x384xbf16> to vector<128x384xbf16>
    %cst_19 = arith.constant dense<0.000000e+00> : vector<32x384xf32>
    %31 = tpu.matmul %28, %30, %cst_19 {dimension_numbers = #tpu.dot_dimension_numbers<[1], [0], [0], [1], [0, 0, 1, 1], [], []>} : vector<32x128xbf16>, vector<128x384xbf16>, vector<32x384xf32> -> vector<32x384xf32>
    %c0_20 = arith.constant 0 : index
    %c0_21 = arith.constant 0 : index
    %c0_22 = arith.constant 0 : index
    %c0_23 = arith.constant 0 : index
    %32 = vector.load %arg6[%c0_20, %c0_21, %c0_22, %c0_23] : memref<1x2x1x384xf32, #tpu.memory_space<vmem>>, vector<1x1x1x384xf32>
    %33 = vector.shape_cast %32 : vector<1x1x1x384xf32> to vector<1x384xf32>
    %34 = vector.broadcast %33 : vector<1x384xf32> to vector<32x384xf32>
    %35 = arith.addf %31, %34 : vector<32x384xf32>
    %36 = vector.extract_strided_slice %35 {offsets = [0, 0], sizes = [32, 128], strides = [1, 1]} : vector<32x384xf32> to vector<32x128xf32>
    %37 = arith.truncf %36 : vector<32x128xf32> to vector<32x128xbf16>
    %38 = vector.extract_strided_slice %35 {offsets = [0, 128], sizes = [32, 128], strides = [1, 1]} : vector<32x384xf32> to vector<32x128xf32>
    %39 = arith.truncf %38 : vector<32x128xf32> to vector<32x128xbf16>
    %40 = vector.extract_strided_slice %35 {offsets = [0, 256], sizes = [32, 128], strides = [1, 1]} : vector<32x384xf32> to vector<32x128xf32>
    %41 = arith.truncf %40 : vector<32x128xf32> to vector<32x128xbf16>
    %42 = vector.extract_strided_slice %37 {offsets = [0, 0], sizes = [32, 64], strides = [1, 1]} : vector<32x128xbf16> to vector<32x64xbf16>
    %43 = vector.extract_strided_slice %39 {offsets = [0, 0], sizes = [32, 64], strides = [1, 1]} : vector<32x128xbf16> to vector<32x64xbf16>
    %44 = vector.extract_strided_slice %41 {offsets = [0, 0], sizes = [32, 64], strides = [1, 1]} : vector<32x128xbf16> to vector<32x64xbf16>
    %cst_24 = arith.constant dense<0.000000e+00> : vector<32x32xf32>
    %45 = tpu.matmul %42, %43, %cst_24 {dimension_numbers = #tpu.dot_dimension_numbers<[1], [1], [0], [0], [0, 0, 1, 0], [], []>} : vector<32x64xbf16>, vector<32x64xbf16>, vector<32x32xf32> -> vector<32x32xf32>
    %cst_25 = arith.constant 1.250000e-01 : f32
    %46 = vector.broadcast %cst_25 : f32 to vector<32x32xf32>
    %47 = arith.mulf %45, %46 : vector<32x32xf32>
    %48 = arith.addf %47, %1 : vector<32x32xf32>
    %cst_26 = arith.constant dense<0xFF800000> : vector<32xf32>
    %49 = vector.multi_reduction <maximumf>, %48, %cst_26 [1] : vector<32x32xf32> to vector<32xf32>
    %50 = vector.shape_cast %49 : vector<32xf32> to vector<32x1xf32>
    %51 = vector.broadcast %50 : vector<32x1xf32> to vector<32x32xf32>
    %52 = arith.subf %48, %51 : vector<32x32xf32>
    %53 = math.exp %52 : vector<32x32xf32>
    %cst_27 = arith.constant dense<0.000000e+00> : vector<32xf32>
    %54 = vector.multi_reduction <add>, %53, %cst_27 [1] : vector<32x32xf32> to vector<32xf32>
    %55 = vector.shape_cast %54 : vector<32xf32> to vector<32x1xf32>
    %56 = tpu.reciprocal %55 {approx = true} : vector<32x1xf32> -> vector<32x1xf32>
    %57 = vector.broadcast %56 : vector<32x1xf32> to vector<32x32xf32>
    %58 = arith.mulf %53, %57 : vector<32x32xf32>
    %59 = arith.truncf %58 : vector<32x32xf32> to vector<32x32xbf16>
    %cst_28 = arith.constant dense<0.000000e+00> : vector<32x64xf32>
    %60 = tpu.matmul %59, %44, %cst_28 {dimension_numbers = #tpu.dot_dimension_numbers<[1], [0], [0], [1], [0, 0, 1, 1], [], []>} : vector<32x32xbf16>, vector<32x64xbf16>, vector<32x64xf32> -> vector<32x64xf32>
    %c0_29 = arith.constant 0 : index
    %c0_30 = arith.constant 0 : index
    %61 = vector.load %arg20[%c0_29, %c0_30] : memref<32x128xf32, #tpu.memory_space<vmem>>, vector<32x64xf32>
    tpu.vector_store %arg20[%c0_29, %c0_30], %60 {strides = array<i32>} : memref<32x128xf32, #tpu.memory_space<vmem>>, vector<32x64xf32>,
    %62 = vector.extract_strided_slice %37 {offsets = [0, 64], sizes = [32, 64], strides = [1, 1]} : vector<32x128xbf16> to vector<32x64xbf16>
    %63 = vector.extract_strided_slice %39 {offsets = [0, 64], sizes = [32, 64], strides = [1, 1]} : vector<32x128xbf16> to vector<32x64xbf16>
    %64 = vector.extract_strided_slice %41 {offsets = [0, 64], sizes = [32, 64], strides = [1, 1]} : vector<32x128xbf16> to vector<32x64xbf16>
    %cst_31 = arith.constant dense<0.000000e+00> : vector<32x32xf32>
    %65 = tpu.matmul %62, %63, %cst_31 {dimension_numbers = #tpu.dot_dimension_numbers<[1], [1], [0], [0], [0, 0, 1, 0], [], []>} : vector<32x64xbf16>, vector<32x64xbf16>, vector<32x32xf32> -> vector<32x32xf32>
    %cst_32 = arith.constant 1.250000e-01 : f32
    %66 = vector.broadcast %cst_32 : f32 to vector<32x32xf32>
    %67 = arith.mulf %65, %66 : vector<32x32xf32>
    %68 = arith.addf %67, %1 : vector<32x32xf32>
    %cst_33 = arith.constant dense<0xFF800000> : vector<32xf32>
    %69 = vector.multi_reduction <maximumf>, %68, %cst_33 [1] : vector<32x32xf32> to vector<32xf32>
    %70 = vector.shape_cast %69 : vector<32xf32> to vector<32x1xf32>
    %71 = vector.broadcast %70 : vector<32x1xf32> to vector<32x32xf32>
    %72 = arith.subf %68, %71 : vector<32x32xf32>
    %73 = math.exp %72 : vector<32x32xf32>
    %cst_34 = arith.constant dense<0.000000e+00> : vector<32xf32>
    %74 = vector.multi_reduction <add>, %73, %cst_34 [1] : vector<32x32xf32> to vector<32xf32>
    %75 = vector.shape_cast %74 : vector<32xf32> to vector<32x1xf32>
    %76 = tpu.reciprocal %75 {approx = true} : vector<32x1xf32> -> vector<32x1xf32>
    %77 = vector.broadcast %76 : vector<32x1xf32> to vector<32x32xf32>
    %78 = arith.mulf %73, %77 : vector<32x32xf32>
    %79 = arith.truncf %78 : vector<32x32xf32> to vector<32x32xbf16>
    %cst_35 = arith.constant dense<0.000000e+00> : vector<32x64xf32>
    %80 = tpu.matmul %79, %64, %cst_35 {dimension_numbers = #tpu.dot_dimension_numbers<[1], [0], [0], [1], [0, 0, 1, 1], [], []>} : vector<32x32xbf16>, vector<32x64xbf16>, vector<32x64xf32> -> vector<32x64xf32>
    %c0_36 = arith.constant 0 : index
    %c64 = arith.constant 64 : index
    %81 = vector.load %arg20[%c0_36, %c64] : memref<32x128xf32, #tpu.memory_space<vmem>>, vector<32x64xf32>
    tpu.vector_store %arg20[%c0_36, %c64], %80 {strides = array<i32>} : memref<32x128xf32, #tpu.memory_space<vmem>>, vector<32x64xf32>,
    %c0_37 = arith.constant 0 : index
    %c0_38 = arith.constant 0 : index
    %82 = vector.load %arg20[%c0_37, %c0_38] : memref<32x128xf32, #tpu.memory_space<vmem>>, vector<32x128xf32>
    %83 = arith.truncf %82 : vector<32x128xf32> to vector<32x128xbf16>
    %c0_39 = arith.constant 0 : index
    %c0_40 = arith.constant 0 : index
    %c0_41 = arith.constant 0 : index
    %c0_42 = arith.constant 0 : index
    %84 = vector.load %arg7[%c0_39, %c0_40, %c0_41, %c0_42] : memref<1x2x128x128xbf16, #tpu.memory_space<vmem>>, vector<1x1x128x128xbf16>
    %85 = vector.shape_cast %84 : vector<1x1x128x128xbf16> to vector<128x128xbf16>
    %cst_43 = arith.constant dense<0.000000e+00> : vector<32x128xf32>
    %86 = tpu.matmul %83, %85, %cst_43 {dimension_numbers = #tpu.dot_dimension_numbers<[1], [0], [0], [1], [0, 0, 1, 1], [], []>} : vector<32x128xbf16>, vector<128x128xbf16>, vector<32x128xf32> -> vector<32x128xf32>
    %c0_44 = arith.constant 0 : index
    %c0_45 = arith.constant 0 : index
    %c0_46 = arith.constant 0 : index
    %c0_47 = arith.constant 0 : index
    %87 = vector.load %arg8[%c0_44, %c0_45, %c0_46, %c0_47] : memref<1x2x1x128xf32, #tpu.memory_space<vmem>>, vector<1x1x1x128xf32>
    %88 = vector.shape_cast %87 : vector<1x1x1x128xf32> to vector<1x128xf32>
    %89 = vector.broadcast %88 : vector<1x128xf32> to vector<32x128xf32>
    %90 = arith.addf %86, %89 : vector<32x128xf32>
    %91 = arith.addf %90, %27 : vector<32x128xf32>
    %c0_48 = arith.constant 0 : index
    %c0_49 = arith.constant 0 : index
    %c0_50 = arith.constant 0 : index
    %c0_51 = arith.constant 0 : index
    %92 = vector.load %arg9[%c0_48, %c0_49, %c0_50, %c0_51] : memref<1x2x1x128xf32, #tpu.memory_space<vmem>>, vector<1x1x1x128xf32>
    %93 = vector.shape_cast %92 : vector<1x1x1x128xf32> to vector<1x128xf32>
    %c0_52 = arith.constant 0 : index
    %c0_53 = arith.constant 0 : index
    %c0_54 = arith.constant 0 : index
    %c0_55 = arith.constant 0 : index
    %94 = vector.load %arg10[%c0_52, %c0_53, %c0_54, %c0_55] : memref<1x2x1x128xf32, #tpu.memory_space<vmem>>, vector<1x1x1x128xf32>
    %95 = vector.shape_cast %94 : vector<1x1x1x128xf32> to vector<1x128xf32>
    %cst_56 = arith.constant dense<0.000000e+00> : vector<32xf32>
    %96 = vector.multi_reduction <add>, %91, %cst_56 [1] : vector<32x128xf32> to vector<32xf32>
    %97 = vector.shape_cast %96 : vector<32xf32> to vector<32x1xf32>
    %cst_57 = arith.constant 1.280000e+02 : f32
    %98 = vector.broadcast %cst_57 : f32 to vector<32x1xf32>
    %99 = arith.divf %97, %98 : vector<32x1xf32>
    %100 = vector.broadcast %99 : vector<32x1xf32> to vector<32x128xf32>
    %101 = arith.subf %91, %100 : vector<32x128xf32>
    %102 = arith.mulf %101, %101 : vector<32x128xf32>
    %cst_58 = arith.constant dense<0.000000e+00> : vector<32xf32>
    %103 = vector.multi_reduction <add>, %102, %cst_58 [1] : vector<32x128xf32> to vector<32xf32>
    %104 = vector.shape_cast %103 : vector<32xf32> to vector<32x1xf32>
    %cst_59 = arith.constant 1.280000e+02 : f32
    %105 = vector.broadcast %cst_59 : f32 to vector<32x1xf32>
    %106 = arith.divf %104, %105 : vector<32x1xf32>
    %cst_60 = arith.constant 9.99999996E-13 : f32
    %107 = vector.broadcast %cst_60 : f32 to vector<32x1xf32>
    %108 = arith.addf %106, %107 : vector<32x1xf32>
    %109 = math.rsqrt %108 : vector<32x1xf32>
    %110 = vector.broadcast %109 : vector<32x1xf32> to vector<32x128xf32>
    %111 = arith.mulf %101, %110 : vector<32x128xf32>
    %112 = vector.broadcast %93 : vector<1x128xf32> to vector<32x128xf32>
    %113 = arith.mulf %111, %112 : vector<32x128xf32>
    %114 = vector.broadcast %95 : vector<1x128xf32> to vector<32x128xf32>
    %115 = arith.addf %113, %114 : vector<32x128xf32>
    %116 = arith.truncf %115 : vector<32x128xf32> to vector<32x128xbf16>
    %c0_61 = arith.constant 0 : index
    %c0_62 = arith.constant 0 : index
    %c0_63 = arith.constant 0 : index
    %c0_64 = arith.constant 0 : index
    %117 = vector.load %arg11[%c0_61, %c0_62, %c0_63, %c0_64] : memref<1x2x128x256xbf16, #tpu.memory_space<vmem>>, vector<1x1x128x256xbf16>
    %118 = vector.shape_cast %117 : vector<1x1x128x256xbf16> to vector<128x256xbf16>
    %cst_65 = arith.constant dense<0.000000e+00> : vector<32x256xf32>
    %119 = tpu.matmul %116, %118, %cst_65 {dimension_numbers = #tpu.dot_dimension_numbers<[1], [0], [0], [1], [0, 0, 1, 1], [], []>} : vector<32x128xbf16>, vector<128x256xbf16>, vector<32x256xf32> -> vector<32x256xf32>
    %c0_66 = arith.constant 0 : index
    %c0_67 = arith.constant 0 : index
    %c0_68 = arith.constant 0 : index
    %c0_69 = arith.constant 0 : index
    %120 = vector.load %arg12[%c0_66, %c0_67, %c0_68, %c0_69] : memref<1x2x1x256xf32, #tpu.memory_space<vmem>>, vector<1x1x1x256xf32>
    %121 = vector.shape_cast %120 : vector<1x1x1x256xf32> to vector<1x256xf32>
    %122 = vector.broadcast %121 : vector<1x256xf32> to vector<32x256xf32>
    %123 = arith.addf %119, %122 : vector<32x256xf32>
    %cst_70 = arith.constant 5.000000e-01 : f32
    %124 = vector.broadcast %cst_70 : f32 to vector<32x256xf32>
    %125 = arith.mulf %124, %123 : vector<32x256xf32>
    %cst_71 = arith.constant 4.471500e-02 : f32
    %126 = vector.broadcast %cst_71 : f32 to vector<32x256xf32>
    %127 = arith.mulf %126, %123 : vector<32x256xf32>
    %128 = arith.mulf %127, %123 : vector<32x256xf32>
    %129 = arith.mulf %128, %123 : vector<32x256xf32>
    %130 = arith.addf %123, %129 : vector<32x256xf32>
    %cst_72 = arith.constant 0.797884583 : f32
    %131 = vector.broadcast %cst_72 : f32 to vector<32x256xf32>
    %132 = arith.mulf %131, %130 : vector<32x256xf32>
    %133 = math.tanh %132 : vector<32x256xf32>
    %cst_73 = arith.constant 1.000000e+00 : f32
    %134 = vector.broadcast %cst_73 : f32 to vector<32x256xf32>
    %135 = arith.addf %134, %133 : vector<32x256xf32>
    %136 = arith.mulf %125, %135 : vector<32x256xf32>
    %137 = arith.truncf %136 : vector<32x256xf32> to vector<32x256xbf16>
    %c0_74 = arith.constant 0 : index
    %c0_75 = arith.constant 0 : index
    %c0_76 = arith.constant 0 : index
    %c0_77 = arith.constant 0 : index
    %138 = vector.load %arg13[%c0_74, %c0_75, %c0_76, %c0_77] : memref<1x2x256x128xbf16, #tpu.memory_space<vmem>>, vector<1x1x256x128xbf16>
    %139 = vector.shape_cast %138 : vector<1x1x256x128xbf16> to vector<256x128xbf16>
    %cst_78 = arith.constant dense<0.000000e+00> : vector<32x128xf32>
    %140 = tpu.matmul %137, %139, %cst_78 {dimension_numbers = #tpu.dot_dimension_numbers<[1], [0], [0], [1], [0, 0, 1, 1], [], []>} : vector<32x256xbf16>, vector<256x128xbf16>, vector<32x128xf32> -> vector<32x128xf32>
    %c0_79 = arith.constant 0 : index
    %c0_80 = arith.constant 0 : index
    %c0_81 = arith.constant 0 : index
    %c0_82 = arith.constant 0 : index
    %141 = vector.load %arg14[%c0_79, %c0_80, %c0_81, %c0_82] : memref<1x2x1x128xf32, #tpu.memory_space<vmem>>, vector<1x1x1x128xf32>
    %142 = vector.shape_cast %141 : vector<1x1x1x128xf32> to vector<1x128xf32>
    %143 = vector.broadcast %142 : vector<1x128xf32> to vector<32x128xf32>
    %144 = arith.addf %140, %143 : vector<32x128xf32>
    %145 = arith.addf %144, %115 : vector<32x128xf32>
    %c0_83 = arith.constant 0 : index
    %c0_84 = arith.constant 0 : index
    %c0_85 = arith.constant 0 : index
    %c0_86 = arith.constant 0 : index
    %146 = vector.load %arg15[%c0_83, %c0_84, %c0_85, %c0_86] : memref<1x2x1x128xf32, #tpu.memory_space<vmem>>, vector<1x1x1x128xf32>
    %147 = vector.shape_cast %146 : vector<1x1x1x128xf32> to vector<1x128xf32>
    %c0_87 = arith.constant 0 : index
    %c0_88 = arith.constant 0 : index
    %c0_89 = arith.constant 0 : index
    %c0_90 = arith.constant 0 : index
    %148 = vector.load %arg16[%c0_87, %c0_88, %c0_89, %c0_90] : memref<1x2x1x128xf32, #tpu.memory_space<vmem>>, vector<1x1x1x128xf32>
    %149 = vector.shape_cast %148 : vector<1x1x1x128xf32> to vector<1x128xf32>
    %cst_91 = arith.constant dense<0.000000e+00> : vector<32xf32>
    %150 = vector.multi_reduction <add>, %145, %cst_91 [1] : vector<32x128xf32> to vector<32xf32>
    %151 = vector.shape_cast %150 : vector<32xf32> to vector<32x1xf32>
    %cst_92 = arith.constant 1.280000e+02 : f32
    %152 = vector.broadcast %cst_92 : f32 to vector<32x1xf32>
    %153 = arith.divf %151, %152 : vector<32x1xf32>
    %154 = vector.broadcast %153 : vector<32x1xf32> to vector<32x128xf32>
    %155 = arith.subf %145, %154 : vector<32x128xf32>
    %156 = arith.mulf %155, %155 : vector<32x128xf32>
    %cst_93 = arith.constant dense<0.000000e+00> : vector<32xf32>
    %157 = vector.multi_reduction <add>, %156, %cst_93 [1] : vector<32x128xf32> to vector<32xf32>
    %158 = vector.shape_cast %157 : vector<32xf32> to vector<32x1xf32>
    %cst_94 = arith.constant 1.280000e+02 : f32
    %159 = vector.broadcast %cst_94 : f32 to vector<32x1xf32>
    %160 = arith.divf %158, %159 : vector<32x1xf32>
    %cst_95 = arith.constant 9.99999996E-13 : f32
    %161 = vector.broadcast %cst_95 : f32 to vector<32x1xf32>
    %162 = arith.addf %160, %161 : vector<32x1xf32>
    %163 = math.rsqrt %162 : vector<32x1xf32>
    %164 = vector.broadcast %163 : vector<32x1xf32> to vector<32x128xf32>
    %165 = arith.mulf %155, %164 : vector<32x128xf32>
    %166 = vector.broadcast %147 : vector<1x128xf32> to vector<32x128xf32>
    %167 = arith.mulf %165, %166 : vector<32x128xf32>
    %168 = vector.broadcast %149 : vector<1x128xf32> to vector<32x128xf32>
    %169 = arith.addf %167, %168 : vector<32x128xf32>
    %170 = arith.truncf %169 : vector<32x128xf32> to vector<32x128xbf16>
    %c0_96 = arith.constant 0 : index
    %c1 = arith.constant 1 : index
    %c0_97 = arith.constant 0 : index
    %c0_98 = arith.constant 0 : index
    %171 = vector.load %arg5[%c0_96, %c1, %c0_97, %c0_98] : memref<1x2x128x384xbf16, #tpu.memory_space<vmem>>, vector<1x1x128x384xbf16>
    %172 = vector.shape_cast %171 : vector<1x1x128x384xbf16> to vector<128x384xbf16>
    %cst_99 = arith.constant dense<0.000000e+00> : vector<32x384xf32>
    %173 = tpu.matmul %170, %172, %cst_99 {dimension_numbers = #tpu.dot_dimension_numbers<[1], [0], [0], [1], [0, 0, 1, 1], [], []>} : vector<32x128xbf16>, vector<128x384xbf16>, vector<32x384xf32> -> vector<32x384xf32>
    %c0_100 = arith.constant 0 : index
    %c1_101 = arith.constant 1 : index
    %c0_102 = arith.constant 0 : index
    %c0_103 = arith.constant 0 : index
    %174 = vector.load %arg6[%c0_100, %c1_101, %c0_102, %c0_103] : memref<1x2x1x384xf32, #tpu.memory_space<vmem>>, vector<1x1x1x384xf32>
    %175 = vector.shape_cast %174 : vector<1x1x1x384xf32> to vector<1x384xf32>
    %176 = vector.broadcast %175 : vector<1x384xf32> to vector<32x384xf32>
    %177 = arith.addf %173, %176 : vector<32x384xf32>
    %178 = vector.extract_strided_slice %177 {offsets = [0, 0], sizes = [32, 128], strides = [1, 1]} : vector<32x384xf32> to vector<32x128xf32>
    %179 = arith.truncf %178 : vector<32x128xf32> to vector<32x128xbf16>
    %180 = vector.extract_strided_slice %177 {offsets = [0, 128], sizes = [32, 128], strides = [1, 1]} : vector<32x384xf32> to vector<32x128xf32>
    %181 = arith.truncf %180 : vector<32x128xf32> to vector<32x128xbf16>
    %182 = vector.extract_strided_slice %177 {offsets = [0, 256], sizes = [32, 128], strides = [1, 1]} : vector<32x384xf32> to vector<32x128xf32>
    %183 = arith.truncf %182 : vector<32x128xf32> to vector<32x128xbf16>
    %184 = vector.extract_strided_slice %179 {offsets = [0, 0], sizes = [32, 64], strides = [1, 1]} : vector<32x128xbf16> to vector<32x64xbf16>
    %185 = vector.extract_strided_slice %181 {offsets = [0, 0], sizes = [32, 64], strides = [1, 1]} : vector<32x128xbf16> to vector<32x64xbf16>
    %186 = vector.extract_strided_slice %183 {offsets = [0, 0], sizes = [32, 64], strides = [1, 1]} : vector<32x128xbf16> to vector<32x64xbf16>
    %cst_104 = arith.constant dense<0.000000e+00> : vector<32x32xf32>
    %187 = tpu.matmul %184, %185, %cst_104 {dimension_numbers = #tpu.dot_dimension_numbers<[1], [1], [0], [0], [0, 0, 1, 0], [], []>} : vector<32x64xbf16>, vector<32x64xbf16>, vector<32x32xf32> -> vector<32x32xf32>
    %cst_105 = arith.constant 1.250000e-01 : f32
    %188 = vector.broadcast %cst_105 : f32 to vector<32x32xf32>
    %189 = arith.mulf %187, %188 : vector<32x32xf32>
    %190 = arith.addf %189, %1 : vector<32x32xf32>
    %cst_106 = arith.constant dense<0xFF800000> : vector<32xf32>
    %191 = vector.multi_reduction <maximumf>, %190, %cst_106 [1] : vector<32x32xf32> to vector<32xf32>
    %192 = vector.shape_cast %191 : vector<32xf32> to vector<32x1xf32>
    %193 = vector.broadcast %192 : vector<32x1xf32> to vector<32x32xf32>
    %194 = arith.subf %190, %193 : vector<32x32xf32>
    %195 = math.exp %194 : vector<32x32xf32>
    %cst_107 = arith.constant dense<0.000000e+00> : vector<32xf32>
    %196 = vector.multi_reduction <add>, %195, %cst_107 [1] : vector<32x32xf32> to vector<32xf32>
    %197 = vector.shape_cast %196 : vector<32xf32> to vector<32x1xf32>
    %198 = tpu.reciprocal %197 {approx = true} : vector<32x1xf32> -> vector<32x1xf32>
    %199 = vector.broadcast %198 : vector<32x1xf32> to vector<32x32xf32>
    %200 = arith.mulf %195, %199 : vector<32x32xf32>
    %201 = arith.truncf %200 : vector<32x32xf32> to vector<32x32xbf16>
    %cst_108 = arith.constant dense<0.000000e+00> : vector<32x64xf32>
    %202 = tpu.matmul %201, %186, %cst_108 {dimension_numbers = #tpu.dot_dimension_numbers<[1], [0], [0], [1], [0, 0, 1, 1], [], []>} : vector<32x32xbf16>, vector<32x64xbf16>, vector<32x64xf32> -> vector<32x64xf32>
    %c0_109 = arith.constant 0 : index
    %c0_110 = arith.constant 0 : index
    %203 = vector.load %arg20[%c0_109, %c0_110] : memref<32x128xf32, #tpu.memory_space<vmem>>, vector<32x64xf32>
    tpu.vector_store %arg20[%c0_109, %c0_110], %202 {strides = array<i32>} : memref<32x128xf32, #tpu.memory_space<vmem>>, vector<32x64xf32>,
    %204 = vector.extract_strided_slice %179 {offsets = [0, 64], sizes = [32, 64], strides = [1, 1]} : vector<32x128xbf16> to vector<32x64xbf16>
    %205 = vector.extract_strided_slice %181 {offsets = [0, 64], sizes = [32, 64], strides = [1, 1]} : vector<32x128xbf16> to vector<32x64xbf16>
    %206 = vector.extract_strided_slice %183 {offsets = [0, 64], sizes = [32, 64], strides = [1, 1]} : vector<32x128xbf16> to vector<32x64xbf16>
    %cst_111 = arith.constant dense<0.000000e+00> : vector<32x32xf32>
    %207 = tpu.matmul %204, %205, %cst_111 {dimension_numbers = #tpu.dot_dimension_numbers<[1], [1], [0], [0], [0, 0, 1, 0], [], []>} : vector<32x64xbf16>, vector<32x64xbf16>, vector<32x32xf32> -> vector<32x32xf32>
    %cst_112 = arith.constant 1.250000e-01 : f32
    %208 = vector.broadcast %cst_112 : f32 to vector<32x32xf32>
    %209 = arith.mulf %207, %208 : vector<32x32xf32>
    %210 = arith.addf %209, %1 : vector<32x32xf32>
    %cst_113 = arith.constant dense<0xFF800000> : vector<32xf32>
    %211 = vector.multi_reduction <maximumf>, %210, %cst_113 [1] : vector<32x32xf32> to vector<32xf32>
    %212 = vector.shape_cast %211 : vector<32xf32> to vector<32x1xf32>
    %213 = vector.broadcast %212 : vector<32x1xf32> to vector<32x32xf32>
    %214 = arith.subf %210, %213 : vector<32x32xf32>
    %215 = math.exp %214 : vector<32x32xf32>
    %cst_114 = arith.constant dense<0.000000e+00> : vector<32xf32>
    %216 = vector.multi_reduction <add>, %215, %cst_114 [1] : vector<32x32xf32> to vector<32xf32>
    %217 = vector.shape_cast %216 : vector<32xf32> to vector<32x1xf32>
    %218 = tpu.reciprocal %217 {approx = true} : vector<32x1xf32> -> vector<32x1xf32>
    %219 = vector.broadcast %218 : vector<32x1xf32> to vector<32x32xf32>
    %220 = arith.mulf %215, %219 : vector<32x32xf32>
    %221 = arith.truncf %220 : vector<32x32xf32> to vector<32x32xbf16>
    %cst_115 = arith.constant dense<0.000000e+00> : vector<32x64xf32>
    %222 = tpu.matmul %221, %206, %cst_115 {dimension_numbers = #tpu.dot_dimension_numbers<[1], [0], [0], [1], [0, 0, 1, 1], [], []>} : vector<32x32xbf16>, vector<32x64xbf16>, vector<32x64xf32> -> vector<32x64xf32>
    %c0_116 = arith.constant 0 : index
    %c64_117 = arith.constant 64 : index
    %223 = vector.load %arg20[%c0_116, %c64_117] : memref<32x128xf32, #tpu.memory_space<vmem>>, vector<32x64xf32>
    tpu.vector_store %arg20[%c0_116, %c64_117], %222 {strides = array<i32>} : memref<32x128xf32, #tpu.memory_space<vmem>>, vector<32x64xf32>,
    %c0_118 = arith.constant 0 : index
    %c0_119 = arith.constant 0 : index
    %224 = vector.load %arg20[%c0_118, %c0_119] : memref<32x128xf32, #tpu.memory_space<vmem>>, vector<32x128xf32>
    %225 = arith.truncf %224 : vector<32x128xf32> to vector<32x128xbf16>
    %c0_120 = arith.constant 0 : index
    %c1_121 = arith.constant 1 : index
    %c0_122 = arith.constant 0 : index
    %c0_123 = arith.constant 0 : index
    %226 = vector.load %arg7[%c0_120, %c1_121, %c0_122, %c0_123] : memref<1x2x128x128xbf16, #tpu.memory_space<vmem>>, vector<1x1x128x128xbf16>
    %227 = vector.shape_cast %226 : vector<1x1x128x128xbf16> to vector<128x128xbf16>
    %cst_124 = arith.constant dense<0.000000e+00> : vector<32x128xf32>
    %228 = tpu.matmul %225, %227, %cst_124 {dimension_numbers = #tpu.dot_dimension_numbers<[1], [0], [0], [1], [0, 0, 1, 1], [], []>} : vector<32x128xbf16>, vector<128x128xbf16>, vector<32x128xf32> -> vector<32x128xf32>
    %c0_125 = arith.constant 0 : index
    %c1_126 = arith.constant 1 : index
    %c0_127 = arith.constant 0 : index
    %c0_128 = arith.constant 0 : index
    %229 = vector.load %arg8[%c0_125, %c1_126, %c0_127, %c0_128] : memref<1x2x1x128xf32, #tpu.memory_space<vmem>>, vector<1x1x1x128xf32>
    %230 = vector.shape_cast %229 : vector<1x1x1x128xf32> to vector<1x128xf32>
    %231 = vector.broadcast %230 : vector<1x128xf32> to vector<32x128xf32>
    %232 = arith.addf %228, %231 : vector<32x128xf32>
    %233 = arith.addf %232, %169 : vector<32x128xf32>
    %c0_129 = arith.constant 0 : index
    %c1_130 = arith.constant 1 : index
    %c0_131 = arith.constant 0 : index
    %c0_132 = arith.constant 0 : index
    %234 = vector.load %arg9[%c0_129, %c1_130, %c0_131, %c0_132] : memref<1x2x1x128xf32, #tpu.memory_space<vmem>>, vector<1x1x1x128xf32>
    %235 = vector.shape_cast %234 : vector<1x1x1x128xf32> to vector<1x128xf32>
    %c0_133 = arith.constant 0 : index
    %c1_134 = arith.constant 1 : index
    %c0_135 = arith.constant 0 : index
    %c0_136 = arith.constant 0 : index
    %236 = vector.load %arg10[%c0_133, %c1_134, %c0_135, %c0_136] : memref<1x2x1x128xf32, #tpu.memory_space<vmem>>, vector<1x1x1x128xf32>
    %237 = vector.shape_cast %236 : vector<1x1x1x128xf32> to vector<1x128xf32>
    %cst_137 = arith.constant dense<0.000000e+00> : vector<32xf32>
    %238 = vector.multi_reduction <add>, %233, %cst_137 [1] : vector<32x128xf32> to vector<32xf32>
    %239 = vector.shape_cast %238 : vector<32xf32> to vector<32x1xf32>
    %cst_138 = arith.constant 1.280000e+02 : f32
    %240 = vector.broadcast %cst_138 : f32 to vector<32x1xf32>
    %241 = arith.divf %239, %240 : vector<32x1xf32>
    %242 = vector.broadcast %241 : vector<32x1xf32> to vector<32x128xf32>
    %243 = arith.subf %233, %242 : vector<32x128xf32>
    %244 = arith.mulf %243, %243 : vector<32x128xf32>
    %cst_139 = arith.constant dense<0.000000e+00> : vector<32xf32>
    %245 = vector.multi_reduction <add>, %244, %cst_139 [1] : vector<32x128xf32> to vector<32xf32>
    %246 = vector.shape_cast %245 : vector<32xf32> to vector<32x1xf32>
    %cst_140 = arith.constant 1.280000e+02 : f32
    %247 = vector.broadcast %cst_140 : f32 to vector<32x1xf32>
    %248 = arith.divf %246, %247 : vector<32x1xf32>
    %cst_141 = arith.constant 9.99999996E-13 : f32
    %249 = vector.broadcast %cst_141 : f32 to vector<32x1xf32>
    %250 = arith.addf %248, %249 : vector<32x1xf32>
    %251 = math.rsqrt %250 : vector<32x1xf32>
    %252 = vector.broadcast %251 : vector<32x1xf32> to vector<32x128xf32>
    %253 = arith.mulf %243, %252 : vector<32x128xf32>
    %254 = vector.broadcast %235 : vector<1x128xf32> to vector<32x128xf32>
    %255 = arith.mulf %253, %254 : vector<32x128xf32>
    %256 = vector.broadcast %237 : vector<1x128xf32> to vector<32x128xf32>
    %257 = arith.addf %255, %256 : vector<32x128xf32>
    %258 = arith.truncf %257 : vector<32x128xf32> to vector<32x128xbf16>
    %c0_142 = arith.constant 0 : index
    %c1_143 = arith.constant 1 : index
    %c0_144 = arith.constant 0 : index
    %c0_145 = arith.constant 0 : index
    %259 = vector.load %arg11[%c0_142, %c1_143, %c0_144, %c0_145] : memref<1x2x128x256xbf16, #tpu.memory_space<vmem>>, vector<1x1x128x256xbf16>
    %260 = vector.shape_cast %259 : vector<1x1x128x256xbf16> to vector<128x256xbf16>
    %cst_146 = arith.constant dense<0.000000e+00> : vector<32x256xf32>
    %261 = tpu.matmul %258, %260, %cst_146 {dimension_numbers = #tpu.dot_dimension_numbers<[1], [0], [0], [1], [0, 0, 1, 1], [], []>} : vector<32x128xbf16>, vector<128x256xbf16>, vector<32x256xf32> -> vector<32x256xf32>
    %c0_147 = arith.constant 0 : index
    %c1_148 = arith.constant 1 : index
    %c0_149 = arith.constant 0 : index
    %c0_150 = arith.constant 0 : index
    %262 = vector.load %arg12[%c0_147, %c1_148, %c0_149, %c0_150] : memref<1x2x1x256xf32, #tpu.memory_space<vmem>>, vector<1x1x1x256xf32>
    %263 = vector.shape_cast %262 : vector<1x1x1x256xf32> to vector<1x256xf32>
    %264 = vector.broadcast %263 : vector<1x256xf32> to vector<32x256xf32>
    %265 = arith.addf %261, %264 : vector<32x256xf32>
    %cst_151 = arith.constant 5.000000e-01 : f32
    %266 = vector.broadcast %cst_151 : f32 to vector<32x256xf32>
    %267 = arith.mulf %266, %265 : vector<32x256xf32>
    %cst_152 = arith.constant 4.471500e-02 : f32
    %268 = vector.broadcast %cst_152 : f32 to vector<32x256xf32>
    %269 = arith.mulf %268, %265 : vector<32x256xf32>
    %270 = arith.mulf %269, %265 : vector<32x256xf32>
    %271 = arith.mulf %270, %265 : vector<32x256xf32>
    %272 = arith.addf %265, %271 : vector<32x256xf32>
    %cst_153 = arith.constant 0.797884583 : f32
    %273 = vector.broadcast %cst_153 : f32 to vector<32x256xf32>
    %274 = arith.mulf %273, %272 : vector<32x256xf32>
    %275 = math.tanh %274 : vector<32x256xf32>
    %cst_154 = arith.constant 1.000000e+00 : f32
    %276 = vector.broadcast %cst_154 : f32 to vector<32x256xf32>
    %277 = arith.addf %276, %275 : vector<32x256xf32>
    %278 = arith.mulf %267, %277 : vector<32x256xf32>
    %279 = arith.truncf %278 : vector<32x256xf32> to vector<32x256xbf16>
    %c0_155 = arith.constant 0 : index
    %c1_156 = arith.constant 1 : index
    %c0_157 = arith.constant 0 : index
    %c0_158 = arith.constant 0 : index
    %280 = vector.load %arg13[%c0_155, %c1_156, %c0_157, %c0_158] : memref<1x2x256x128xbf16, #tpu.memory_space<vmem>>, vector<1x1x256x128xbf16>
    %281 = vector.shape_cast %280 : vector<1x1x256x128xbf16> to vector<256x128xbf16>
    %cst_159 = arith.constant dense<0.000000e+00> : vector<32x128xf32>
    %282 = tpu.matmul %279, %281, %cst_159 {dimension_numbers = #tpu.dot_dimension_numbers<[1], [0], [0], [1], [0, 0, 1, 1], [], []>} : vector<32x256xbf16>, vector<256x128xbf16>, vector<32x128xf32> -> vector<32x128xf32>
    %c0_160 = arith.constant 0 : index
    %c1_161 = arith.constant 1 : index
    %c0_162 = arith.constant 0 : index
    %c0_163 = arith.constant 0 : index
    %283 = vector.load %arg14[%c0_160, %c1_161, %c0_162, %c0_163] : memref<1x2x1x128xf32, #tpu.memory_space<vmem>>, vector<1x1x1x128xf32>
    %284 = vector.shape_cast %283 : vector<1x1x1x128xf32> to vector<1x128xf32>
    %285 = vector.broadcast %284 : vector<1x128xf32> to vector<32x128xf32>
    %286 = arith.addf %282, %285 : vector<32x128xf32>
    %287 = arith.addf %286, %257 : vector<32x128xf32>
    %c0_164 = arith.constant 0 : index
    %c1_165 = arith.constant 1 : index
    %c0_166 = arith.constant 0 : index
    %c0_167 = arith.constant 0 : index
    %288 = vector.load %arg15[%c0_164, %c1_165, %c0_166, %c0_167] : memref<1x2x1x128xf32, #tpu.memory_space<vmem>>, vector<1x1x1x128xf32>
    %289 = vector.shape_cast %288 : vector<1x1x1x128xf32> to vector<1x128xf32>
    %c0_168 = arith.constant 0 : index
    %c1_169 = arith.constant 1 : index
    %c0_170 = arith.constant 0 : index
    %c0_171 = arith.constant 0 : index
    %290 = vector.load %arg16[%c0_168, %c1_169, %c0_170, %c0_171] : memref<1x2x1x128xf32, #tpu.memory_space<vmem>>, vector<1x1x1x128xf32>
    %291 = vector.shape_cast %290 : vector<1x1x1x128xf32> to vector<1x128xf32>
    %cst_172 = arith.constant dense<0.000000e+00> : vector<32xf32>
    %292 = vector.multi_reduction <add>, %287, %cst_172 [1] : vector<32x128xf32> to vector<32xf32>
    %293 = vector.shape_cast %292 : vector<32xf32> to vector<32x1xf32>
    %cst_173 = arith.constant 1.280000e+02 : f32
    %294 = vector.broadcast %cst_173 : f32 to vector<32x1xf32>
    %295 = arith.divf %293, %294 : vector<32x1xf32>
    %296 = vector.broadcast %295 : vector<32x1xf32> to vector<32x128xf32>
    %297 = arith.subf %287, %296 : vector<32x128xf32>
    %298 = arith.mulf %297, %297 : vector<32x128xf32>
    %cst_174 = arith.constant dense<0.000000e+00> : vector<32xf32>
    %299 = vector.multi_reduction <add>, %298, %cst_174 [1] : vector<32x128xf32> to vector<32xf32>
    %300 = vector.shape_cast %299 : vector<32xf32> to vector<32x1xf32>
    %cst_175 = arith.constant 1.280000e+02 : f32
    %301 = vector.broadcast %cst_175 : f32 to vector<32x1xf32>
    %302 = arith.divf %300, %301 : vector<32x1xf32>
    %cst_176 = arith.constant 9.99999996E-13 : f32
    %303 = vector.broadcast %cst_176 : f32 to vector<32x1xf32>
    %304 = arith.addf %302, %303 : vector<32x1xf32>
    %305 = math.rsqrt %304 : vector<32x1xf32>
    %306 = vector.broadcast %305 : vector<32x1xf32> to vector<32x128xf32>
    %307 = arith.mulf %297, %306 : vector<32x128xf32>
    %308 = vector.broadcast %289 : vector<1x128xf32> to vector<32x128xf32>
    %309 = arith.mulf %307, %308 : vector<32x128xf32>
    %310 = vector.broadcast %291 : vector<1x128xf32> to vector<32x128xf32>
    %311 = arith.addf %309, %310 : vector<32x128xf32>
    %312 = vector.extract_strided_slice %311 {offsets = [0, 0], sizes = [1, 128], strides = [1, 1]} : vector<32x128xf32> to vector<1x128xf32>
    %313 = vector.extract_strided_slice %311 {offsets = [16, 0], sizes = [1, 128], strides = [1, 1]} : vector<32x128xf32> to vector<1x128xf32>
    %314 = tpu.concatenate %312, %313 in 0 : vector<1x128xf32>, vector<1x128xf32> -> vector<2x128xf32>
    %315 = arith.truncf %314 : vector<2x128xf32> to vector<2x128xbf16>
    %c0_177 = arith.constant 0 : index
    %c0_178 = arith.constant 0 : index
    %c0_179 = arith.constant 0 : index
    %316 = vector.load %arg17[%c0_177, %c0_178, %c0_179] : memref<1x128x128xbf16, #tpu.memory_space<vmem>>, vector<1x128x128xbf16>
    %317 = vector.shape_cast %316 : vector<1x128x128xbf16> to vector<128x128xbf16>
    %cst_180 = arith.constant dense<0.000000e+00> : vector<2x128xf32>
    %318 = tpu.matmul %315, %317, %cst_180 {dimension_numbers = #tpu.dot_dimension_numbers<[1], [0], [0], [1], [0, 0, 1, 1], [], []>} : vector<2x128xbf16>, vector<128x128xbf16>, vector<2x128xf32> -> vector<2x128xf32>
    %c0_181 = arith.constant 0 : index
    %c0_182 = arith.constant 0 : index
    %c0_183 = arith.constant 0 : index
    %319 = vector.load %arg18[%c0_181, %c0_182, %c0_183] : memref<1x1x128xf32, #tpu.memory_space<vmem>>, vector<1x1x128xf32>
    %320 = vector.shape_cast %319 : vector<1x1x128xf32> to vector<1x128xf32>
    %321 = vector.broadcast %320 : vector<1x128xf32> to vector<2x128xf32>
    %322 = arith.addf %318, %321 : vector<2x128xf32>
    %323 = math.tanh %322 : vector<2x128xf32>
    %c0_184 = arith.constant 0 : index
    %c0_185 = arith.constant 0 : index
    %c0_186 = arith.constant 0 : index
    %324 = vector.load %arg19[%c0_184, %c0_185, %c0_186] : memref<1x2x128xf32, #tpu.memory_space<vmem>>, vector<1x2x128xf32>
    %325 = vector.shape_cast %324 : vector<1x2x128xf32> to vector<2x128xf32>
    %326 = vector.shape_cast %323 : vector<2x128xf32> to vector<1x2x128xf32>
    tpu.vector_store %arg19[%c0_184, %c0_185, %c0_186], %326 {strides = array<i32>} : memref<1x2x128xf32, #tpu.memory_space<vmem>>, vector<1x2x128xf32>,
    return
  }
  func.func @transform_0(%arg0: i32) -> (i32, i32, i32) {
    %c0_i32 = arith.constant 0 : i32
    %c0_i32_0 = arith.constant 0 : i32
    %c0_i32_1 = arith.constant 0 : i32
    return %arg0, %c0_i32, %c0_i32_0 : i32, i32, i32
  }
  func.func @transform_1(%arg0: i32) -> (i32, i32, i32) {
    %c0_i32 = arith.constant 0 : i32
    %c0_i32_0 = arith.constant 0 : i32
    %c0_i32_1 = arith.constant 0 : i32
    return %arg0, %c0_i32, %c0_i32_0 : i32, i32, i32
  }
  func.func @transform_2(%arg0: i32) -> (i32, i32, i32) {
    %c0_i32 = arith.constant 0 : i32
    %c0_i32_0 = arith.constant 0 : i32
    %c0_i32_1 = arith.constant 0 : i32
    return %arg0, %c0_i32, %c0_i32_0 : i32, i32, i32
  }
  func.func @transform_3(%arg0: i32) -> (i32, i32, i32) {
    %c0_i32 = arith.constant 0 : i32
    %c0_i32_0 = arith.constant 0 : i32
    %c0_i32_1 = arith.constant 0 : i32
    return %arg0, %c0_i32, %c0_i32_0 : i32, i32, i32
  }
  func.func @transform_4(%arg0: i32) -> (i32, i32, i32, i32) {
    %c0_i32 = arith.constant 0 : i32
    %c0_i32_0 = arith.constant 0 : i32
    %c0_i32_1 = arith.constant 0 : i32
    %c0_i32_2 = arith.constant 0 : i32
    return %arg0, %c0_i32, %c0_i32_0, %c0_i32_1 : i32, i32, i32, i32
  }
  func.func @transform_5(%arg0: i32) -> (i32, i32, i32, i32) {
    %c0_i32 = arith.constant 0 : i32
    %c0_i32_0 = arith.constant 0 : i32
    %c0_i32_1 = arith.constant 0 : i32
    %c0_i32_2 = arith.constant 0 : i32
    return %arg0, %c0_i32, %c0_i32_0, %c0_i32_1 : i32, i32, i32, i32
  }
  func.func @transform_6(%arg0: i32) -> (i32, i32, i32, i32) {
    %c0_i32 = arith.constant 0 : i32
    %c0_i32_0 = arith.constant 0 : i32
    %c0_i32_1 = arith.constant 0 : i32
    %c0_i32_2 = arith.constant 0 : i32
    return %arg0, %c0_i32, %c0_i32_0, %c0_i32_1 : i32, i32, i32, i32
  }
  func.func @transform_7(%arg0: i32) -> (i32, i32, i32, i32) {
    %c0_i32 = arith.constant 0 : i32
    %c0_i32_0 = arith.constant 0 : i32
    %c0_i32_1 = arith.constant 0 : i32
    %c0_i32_2 = arith.constant 0 : i32
    return %arg0, %c0_i32, %c0_i32_0, %c0_i32_1 : i32, i32, i32, i32
  }
  func.func @transform_8(%arg0: i32) -> (i32, i32, i32, i32) {
    %c0_i32 = arith.constant 0 : i32
    %c0_i32_0 = arith.constant 0 : i32
    %c0_i32_1 = arith.constant 0 : i32
    %c0_i32_2 = arith.constant 0 : i32
    return %arg0, %c0_i32, %c0_i32_0, %c0_i32_1 : i32, i32, i32, i32
  }
  func.func @transform_9(%arg0: i32) -> (i32, i32, i32, i32) {
    %c0_i32 = arith.constant 0 : i32
    %c0_i32_0 = arith.constant 0 : i32
    %c0_i32_1 = arith.constant 0 : i32
    %c0_i32_2 = arith.constant 0 : i32
    return %arg0, %c0_i32, %c0_i32_0, %c0_i32_1 : i32, i32, i32, i32
  }
  func.func @transform_10(%arg0: i32) -> (i32, i32, i32, i32) {
    %c0_i32 = arith.constant 0 : i32
    %c0_i32_0 = arith.constant 0 : i32
    %c0_i32_1 = arith.constant 0 : i32
    %c0_i32_2 = arith.constant 0 : i32
    return %arg0, %c0_i32, %c0_i32_0, %c0_i32_1 : i32, i32, i32, i32
  }
  func.func @transform_11(%arg0: i32) -> (i32, i32, i32, i32) {
    %c0_i32 = arith.constant 0 : i32
    %c0_i32_0 = arith.constant 0 : i32
    %c0_i32_1 = arith.constant 0 : i32
    %c0_i32_2 = arith.constant 0 : i32
    return %arg0, %c0_i32, %c0_i32_0, %c0_i32_1 : i32, i32, i32, i32
  }
  func.func @transform_12(%arg0: i32) -> (i32, i32, i32, i32) {
    %c0_i32 = arith.constant 0 : i32
    %c0_i32_0 = arith.constant 0 : i32
    %c0_i32_1 = arith.constant 0 : i32
    %c0_i32_2 = arith.constant 0 : i32
    return %arg0, %c0_i32, %c0_i32_0, %c0_i32_1 : i32, i32, i32, i32
  }
  func.func @transform_13(%arg0: i32) -> (i32, i32, i32, i32) {
    %c0_i32 = arith.constant 0 : i32
    %c0_i32_0 = arith.constant 0 : i32
    %c0_i32_1 = arith.constant 0 : i32
    %c0_i32_2 = arith.constant 0 : i32
    return %arg0, %c0_i32, %c0_i32_0, %c0_i32_1 : i32, i32, i32, i32
  }
  func.func @transform_14(%arg0: i32) -> (i32, i32, i32, i32) {
    %c0_i32 = arith.constant 0 : i32
    %c0_i32_0 = arith.constant 0 : i32
    %c0_i32_1 = arith.constant 0 : i32
    %c0_i32_2 = arith.constant 0 : i32
    return %arg0, %c0_i32, %c0_i32_0, %c0_i32_1 : i32, i32, i32, i32
  }
  func.func @transform_15(%arg0: i32) -> (i32, i32, i32, i32) {
    %c0_i32 = arith.constant 0 : i32
    %c0_i32_0 = arith.constant 0 : i32
    %c0_i32_1 = arith.constant 0 : i32
    %c0_i32_2 = arith.constant 0 : i32
    return %arg0, %c0_i32, %c0_i32_0, %c0_i32_1 : i32, i32, i32, i32
  }
  func.func @transform_16(%arg0: i32) -> (i32, i32, i32) {
    %c0_i32 = arith.constant 0 : i32
    %c0_i32_0 = arith.constant 0 : i32
    %c0_i32_1 = arith.constant 0 : i32
    return %arg0, %c0_i32, %c0_i32_0 : i32, i32, i32
  }
  func.func @transform_17(%arg0: i32) -> (i32, i32, i32) {
    %c0_i32 = arith.constant 0 : i32
    %c0_i32_0 = arith.constant 0 : i32
    %c0_i32_1 = arith.constant 0 : i32
    return %arg0, %c0_i32, %c0_i32_0 : i32, i32, i32
  }
  func.func @transform_18(%arg0: i32) -> (i32, i32, i32) {
    %c0_i32 = arith.constant 0 : i32
    %c0_i32_0 = arith.constant 0 : i32
    %c0_i32_1 = arith.constant 0 : i32
    return %arg0, %c0_i32, %c0_i32_0 : i32, i32, i32
  }
}

</mosaic_0001>

<llo_original>
// kernel: unshared_model.3
$region0: #{unshared_model.3}
  #allocation0 [shape = 'u32[]', space=smem, size = 0x4, offset = 0x4, fixed_abs, tag = 'smem constant byte address 0x4 - core index']
  #allocation1 [shape = 'u32[144,128]{1,0:T(1,128)}', space=vmem, size = 0x12000, scoped, tag = 'internal scratch']
  %s0 = inlined_call_operand.vmem [shape: f32[2,128], index: 0, kind: input, shape index: {}]
  %s1 = inlined_call_operand.vmem [shape: f32[2,128], index: 1, kind: input, shape index: {}]
  %s2 = inlined_call_operand.vmem [shape: bf16[256,256], index: 2, kind: input, shape index: {}]
  %s3 = inlined_call_operand.vmem [shape: f32[1,256], index: 3, kind: input, shape index: {}]
  %s4 = inlined_call_operand.vmem [shape: bf16[256,128], index: 4, kind: input, shape index: {}]
  %s5 = inlined_call_operand.vmem [shape: f32[1,128], index: 5, kind: input, shape index: {}]
  %s6 = inlined_call_operand.vmem [shape: s32[2,1], index: 6, kind: input, shape index: {}]
  %s7 = inlined_call_operand.hbm [shape: f32[1,1], index: 7, kind: output, shape index: {0}]
  %s8 = inlined_call_operand.hbm [shape: f32[2,128], index: 8, kind: output, shape index: {1}]
  %9 = xla_tuple %s7, %s8
  %s10 = sld [smem:[#allocation0]]
  $region46: #{unshared_model.3} parent=0
    _
  %s12 = ssub.s32 1, %s10
  %s13 = scalar_select 0, %s12, %s10
  $region1: #{unshared_model.3} parent=0
    #allocation2 [shape = 'u8[512]{0}', space=smem, size = 0x200, scoped, tag = 'output window, operand 0, single buffered']
    #allocation3 [shape = 's32[1]{0}', space=sflag, size = 0x4, scoped, tag = 'scoped memory for unshared_model.3']
    #allocation4 [shape = 's32[1]{0}', space=sflag, size = 0x4, scoped, tag = 'scoped memory for unshared_model.3']
    #allocation5 [shape = 'u8[1024]{0}', space=vmem, size = 0x400, scoped, tag = 'output window, operand 1, single buffered']
    %14 = vsyncpa [#allocation4], 0
    %15 = vsyncpa [#allocation3], 0
    // Predicated region
    $region2: #{unshared_model.3} parent=1 // pred_check
      _
    $region3: #{unshared_model.3} parent=1 // pred_check_branch
      %17 = sbr.rel (0) target = $region5
    $region4: #{unshared_model.3} parent=1 // pred_region
      _
    $region5: #{unshared_model.3} parent=1 // pred_fallthru
      _
    // Predicated region
    $region6: #{unshared_model.3} parent=1 // pred_check
      _
    $region7: #{unshared_model.3} parent=1 // pred_check_branch
      %19 = sbr.rel (0) target = $region9
    $region8: #{unshared_model.3} parent=1 // pred_region
      _
    $region9: #{unshared_model.3} parent=1 // pred_fallthru
      _
    // Predicated region
    $region10: #{unshared_model.3} parent=1 // pred_check
      _
    $region11: #{unshared_model.3} parent=1 // pred_check_branch
      %21 = sbr.rel (0) target = $region13
    $region12: #{unshared_model.3} parent=1 // pred_region
      _
    $region13: #{unshared_model.3} parent=1 // pred_fallthru
      _
    // Predicated region
    $region14: #{unshared_model.3} parent=1 // pred_check
      _
    $region15: #{unshared_model.3} parent=1 // pred_check_branch
      %23 = sbr.rel (0) target = $region17
    $region16: #{unshared_model.3} parent=1 // pred_region
      _
    $region17: #{unshared_model.3} parent=1 // pred_fallthru
      _
    // Predicated region
    $region18: #{unshared_model.3} parent=1 // pred_check
      _
    $region19: #{unshared_model.3} parent=1 // pred_check_branch
      %25 = sbr.rel (0) target = $region21
    $region20: #{unshared_model.3} parent=1 // pred_region
      _
    $region21: #{unshared_model.3} parent=1 // pred_fallthru
      _
    // Predicated region
    $region22: #{unshared_model.3} parent=1 // pred_check
      _
    $region23: #{unshared_model.3} parent=1 // pred_check_branch
      %27 = sbr.rel (0) target = $region25
    $region24: #{unshared_model.3} parent=1 // pred_region
      _
    $region25: #{unshared_model.3} parent=1 // pred_fallthru
      _
    // Predicated region
    $region26: #{unshared_model.3} parent=1 // pred_check
      _
    $region27: #{unshared_model.3} parent=1 // pred_check_branch
      %29 = sbr.rel (0) target = $region29
    $region28: #{unshared_model.3} parent=1 // pred_region
      _
    $region29: #{unshared_model.3} parent=1 // pred_fallthru
      _
    %v31 = vld [vmem:[%s0] sm:$0x3]
    %v32 = vld [vmem:[%s1] sm:$0x3]
    %v33 = vpack.c.bf16 %v31, %v31
    %v34 = vpack.c.bf16 %v32, %v32
    %v35 = vld [vmem:[%s2] sm:$0xff]
    %v36 = vld [vmem:[%s2 + $0x8] sm:$0xff]
    %v37 = vld [vmem:[%s2 + $0x10] sm:$0xff]
    %v38 = vld [vmem:[%s2 + $0x18] sm:$0xff]
    %v39 = vld [vmem:[%s2 + $0x20] sm:$0xff]
    %v40 = vld [vmem:[%s2 + $0x28] sm:$0xff]
    %v41 = vld [vmem:[%s2 + $0x30] sm:$0xff]
    %v42 = vld [vmem:[%s2 + $0x38] sm:$0xff]
    %v43 = vld [vmem:[%s2 + $0x40] sm:$0xff]
    %v44 = vld [vmem:[%s2 + $0x48] sm:$0xff]
    %v45 = vld [vmem:[%s2 + $0x50] sm:$0xff]
    %v46 = vld [vmem:[%s2 + $0x58] sm:$0xff]
    %v47 = vld [vmem:[%s2 + $0x60] sm:$0xff]
    %v48 = vld [vmem:[%s2 + $0x68] sm:$0xff]
    %v49 = vld [vmem:[%s2 + $0x70] sm:$0xff]
    %v50 = vld [vmem:[%s2 + $0x78] sm:$0xff]
    %v51 = vld [vmem:[%s2 + $0x80] sm:$0xff]
    %v52 = vld [vmem:[%s2 + $0x88] sm:$0xff]
    %v53 = vld [vmem:[%s2 + $0x90] sm:$0xff]
    %v54 = vld [vmem:[%s2 + $0x98] sm:$0xff]
    %v55 = vld [vmem:[%s2 + $0xa0] sm:$0xff]
    %v56 = vld [vmem:[%s2 + $0xa8] sm:$0xff]
    %v57 = vld [vmem:[%s2 + $0xb0] sm:$0xff]
    %v58 = vld [vmem:[%s2 + $0xb8] sm:$0xff]
    %v59 = vld [vmem:[%s2 + $0xc0] sm:$0xff]
    %v60 = vld [vmem:[%s2 + $0xc8] sm:$0xff]
    %v61 = vld [vmem:[%s2 + $0xd0] sm:$0xff]
    %v62 = vld [vmem:[%s2 + $0xd8] sm:$0xff]
    %v63 = vld [vmem:[%s2 + $0xe0] sm:$0xff]
    %v64 = vld [vmem:[%s2 + $0xe8] sm:$0xff]
    %v65 = vld [vmem:[%s2 + $0xf0] sm:$0xff]
    %v66 = vld [vmem:[%s2 + $0xf8] sm:$0xff]
    %v67 = vld [vmem:[%s3] sm:$0x3]
    %v69 = vlaneseq
    %v70 = vshrl.u32 %v69, 7
    %v71 = vsub.s32 0, %v70
    %v72 = vrot.slane %v67, %v71
    %v73 = vlaneseq
    %v74 = vshrl.u32 %v73, 7
    %v75 = vsub.s32 1, %v74
    %v76 = vrot.slane %v67, %v75
    %v111 = vunpack.c.l.b16 %v35
    %v112 = vunpack.c.h.b16 %v35
    %v113 = vunpack.c.l.b16 %v36
    %v114 = vunpack.c.h.b16 %v36
    %v115 = vunpack.c.l.b16 %v37
    %v116 = vunpack.c.h.b16 %v37
    %v117 = vunpack.c.l.b16 %v38
    %v118 = vunpack.c.h.b16 %v38
    %v119 = vunpack.c.l.b16 %v39
    %v120 = vunpack.c.h.b16 %v39
    %v121 = vunpack.c.l.b16 %v40
    %v122 = vunpack.c.h.b16 %v40
    %v123 = vunpack.c.l.b16 %v41
    %v124 = vunpack.c.h.b16 %v41
    %v125 = vunpack.c.l.b16 %v42
    %v126 = vunpack.c.h.b16 %v42
    %v127 = vunpack.c.l.b16 %v43
    %v128 = vunpack.c.h.b16 %v43
    %v129 = vunpack.c.l.b16 %v44
    %v130 = vunpack.c.h.b16 %v44
    %v131 = vunpack.c.l.b16 %v45
    %v132 = vunpack.c.h.b16 %v45
    %v133 = vunpack.c.l.b16 %v46
    %v134 = vunpack.c.h.b16 %v46
    %v135 = vunpack.c.l.b16 %v47
    %v136 = vunpack.c.h.b16 %v47
    %v137 = vunpack.c.l.b16 %v48
    %v138 = vunpack.c.h.b16 %v48
    %v139 = vunpack.c.l.b16 %v49
    %v140 = vunpack.c.h.b16 %v49
    %v141 = vunpack.c.l.b16 %v50
    %v142 = vunpack.c.h.b16 %v50
    %v143 = vunpack.c.l.b16 %v51
    %v144 = vunpack.c.h.b16 %v51
    %v145 = vunpack.c.l.b16 %v52
    %v146 = vunpack.c.h.b16 %v52
    %v147 = vunpack.c.l.b16 %v53
    %v148 = vunpack.c.h.b16 %v53
    %v149 = vunpack.c.l.b16 %v54
    %v150 = vunpack.c.h.b16 %v54
    %v151 = vunpack.c.l.b16 %v55
    %v152 = vunpack.c.h.b16 %v55
    %v153 = vunpack.c.l.b16 %v56
    %v154 = vunpack.c.h.b16 %v56
    %v155 = vunpack.c.l.b16 %v57
    %v156 = vunpack.c.h.b16 %v57
    %v157 = vunpack.c.l.b16 %v58
    %v158 = vunpack.c.h.b16 %v58
    %v159 = vunpack.c.l.b16 %v59
    %v160 = vunpack.c.h.b16 %v59
    %v161 = vunpack.c.l.b16 %v60
    %v162 = vunpack.c.h.b16 %v60
    %v163 = vunpack.c.l.b16 %v61
    %v164 = vunpack.c.h.b16 %v61
    %v165 = vunpack.c.l.b16 %v62
    %v166 = vunpack.c.h.b16 %v62
    %v167 = vunpack.c.l.b16 %v63
    %v168 = vunpack.c.h.b16 %v63
    %v169 = vunpack.c.l.b16 %v64
    %v170 = vunpack.c.h.b16 %v64
    %v171 = vunpack.c.l.b16 %v65
    %v172 = vunpack.c.h.b16 %v65
    %v173 = vunpack.c.l.b16 %v66
    %v174 = vunpack.c.h.b16 %v66
    %v175 = vpack.c.b16 %v113, %v111
    %v176 = vpack.c.b16 %v114, %v112
    %v177 = vpack.c.b16 %v117, %v115
    %v178 = vpack.c.b16 %v118, %v116
    %v179 = vpack.c.b16 %v121, %v119
    %v180 = vpack.c.b16 %v122, %v120
    %v181 = vpack.c.b16 %v125, %v123
    %v182 = vpack.c.b16 %v126, %v124
    %v183 = vpack.c.b16 %v129, %v127
    %v184 = vpack.c.b16 %v130, %v128
    %v185 = vpack.c.b16 %v133, %v131
    %v186 = vpack.c.b16 %v134, %v132
    %v187 = vpack.c.b16 %v137, %v135
    %v188 = vpack.c.b16 %v138, %v136
    %v189 = vpack.c.b16 %v141, %v139
    %v190 = vpack.c.b16 %v142, %v140
    %v191 = vpack.c.b16 %v145, %v143
    %v192 = vpack.c.b16 %v146, %v144
    %v193 = vpack.c.b16 %v149, %v147
    %v194 = vpack.c.b16 %v150, %v148
    %v195 = vpack.c.b16 %v153, %v151
    %v196 = vpack.c.b16 %v154, %v152
    %v197 = vpack.c.b16 %v157, %v155
    %v198 = vpack.c.b16 %v158, %v156
    %v199 = vpack.c.b16 %v161, %v159
    %v200 = vpack.c.b16 %v162, %v160
    %v201 = vpack.c.b16 %v165, %v163
    %v202 = vpack.c.b16 %v166, %v164
    %v203 = vpack.c.b16 %v169, %v167
    %v204 = vpack.c.b16 %v170, %v168
    %v205 = vpack.c.b16 %v173, %v171
    %v206 = vpack.c.b16 %v174, %v172
    %239 = vmatprep.subr.bf16.mxu0 %v176
    %240 = vmatpush1.bf16.msra.mxu0 %v175
    %241 = vmatprep.subr.bf16.mxu0 %v178
    %242 = vmatpush1.bf16.msra.mxu0 %v177
    %243 = vmatprep.subr.bf16.mxu0 %v180
    %244 = vmatpush1.bf16.msra.mxu0 %v179
    %245 = vmatprep.subr.bf16.mxu0 %v182
    %246 = vmatpush1.bf16.msra.mxu0 %v181
    %247 = vmatprep.subr.bf16.mxu0 %v184
    %248 = vmatpush1.bf16.msra.mxu0 %v183
    %249 = vmatprep.subr.bf16.mxu0 %v186
    %250 = vmatpush1.bf16.msra.mxu0 %v185
    %251 = vmatprep.subr.bf16.mxu0 %v188
    %252 = vmatpush1.bf16.msra.mxu0 %v187
    %253 = vmatprep.subr.bf16.mxu0 %v190
    %254 = vmatpush1.bf16.msra.mxu0 %v189
    %255 = vmatprep.subr.bf16.mxu0 %v192
    %256 = vmatpush1.bf16.msra.mxu0 %v191
    %257 = vmatprep.subr.bf16.mxu0 %v194
    %258 = vmatpush1.bf16.msra.mxu0 %v193
    %259 = vmatprep.subr.bf16.mxu0 %v196
    %260 = vmatpush1.bf16.msra.mxu0 %v195
    %261 = vmatprep.subr.bf16.mxu0 %v198
    %262 = vmatpush1.bf16.msra.mxu0 %v197
    %263 = vmatprep.subr.bf16.mxu0 %v200
    %264 = vmatpush1.bf16.msra.mxu0 %v199
    %265 = vmatprep.subr.bf16.mxu0 %v202
    %266 = vmatpush1.bf16.msra.mxu0 %v201
    %267 = vmatprep.subr.bf16.mxu0 %v204
    %268 = vmatpush1.bf16.msra.mxu0 %v203
    %269 = vmatprep.subr.bf16.mxu0 %v206
    %270 = vmatpush1.bf16.msra.mxu0 %v205
    %271 = vmatprep.mubr.bf16.mxu0 %v34
    %272 = vmatmul.mubr.bf16.gmra.mrb[0].mxu0 %v33
    %v273 = vpop.f32.mrb[0].mxu0
    %v274 = vadd.f32 %v72, %v273
    %v275 = vpop.f32.mrb[0].mxu0
    %v276 = vadd.f32 %v76, %v275
    %v277 = vpop.f32.mrb[0].mxu0
    %v278 = vpop.f32.mrb[0].mxu0
    %279 = vdwg.mxu0
    %v280 = vmax.f32 %v274, 0.0
    %v281 = vmax.f32 %v276, 0.0
    %v282 = vpack.c.bf16 %v280, %v280
    %v283 = vpack.c.bf16 %v281, %v281
    %v284 = vld [vmem:[%s4] sm:$0xf]
    %v285 = vld [vmem:[%s4 + $0x4] sm:$0xf]
    %v286 = vld [vmem:[%s4 + $0x8] sm:$0xf]
    %v287 = vld [vmem:[%s4 + $0xc] sm:$0xf]
    %v288 = vld [vmem:[%s4 + $0x10] sm:$0xf]
    %v289 = vld [vmem:[%s4 + $0x14] sm:$0xf]
    %v290 = vld [vmem:[%s4 + $0x18] sm:$0xf]
    %v291 = vld [vmem:[%s4 + $0x1c] sm:$0xf]
    %v292 = vld [vmem:[%s4 + $0x20] sm:$0xf]
    %v293 = vld [vmem:[%s4 + $0x24] sm:$0xf]
    %v294 = vld [vmem:[%s4 + $0x28] sm:$0xf]
    %v295 = vld [vmem:[%s4 + $0x2c] sm:$0xf]
    %v296 = vld [vmem:[%s4 + $0x30] sm:$0xf]
    %v297 = vld [vmem:[%s4 + $0x34] sm:$0xf]
    %v298 = vld [vmem:[%s4 + $0x38] sm:$0xf]
    %v299 = vld [vmem:[%s4 + $0x3c] sm:$0xf]
    %v300 = vld [vmem:[%s4 + $0x40] sm:$0xf]
    %v301 = vld [vmem:[%s4 + $0x44] sm:$0xf]
    %v302 = vld [vmem:[%s4 + $0x48] sm:$0xf]
    %v303 = vld [vmem:[%s4 + $0x4c] sm:$0xf]
    %v304 = vld [vmem:[%s4 + $0x50] sm:$0xf]
    %v305 = vld [vmem:[%s4 + $0x54] sm:$0xf]
    %v306 = vld [vmem:[%s4 + $0x58] sm:$0xf]
    %v307 = vld [vmem:[%s4 + $0x5c] sm:$0xf]
    %v308 = vld [vmem:[%s4 + $0x60] sm:$0xf]
    %v309 = vld [vmem:[%s4 + $0x64] sm:$0xf]
    %v310 = vld [vmem:[%s4 + $0x68] sm:$0xf]
    %v311 = vld [vmem:[%s4 + $0x6c] sm:$0xf]
    %v312 = vld [vmem:[%s4 + $0x70] sm:$0xf]
    %v313 = vld [vmem:[%s4 + $0x74] sm:$0xf]
    %v314 = vld [vmem:[%s4 + $0x78] sm:$0xf]
    %v315 = vld [vmem:[%s4 + $0x7c] sm:$0xf]
    %v316 = vld [vmem:[%s5] sm:$0x1]
    %v318 = vlaneseq
    %v319 = vshrl.u32 %v318, 7
    %v320 = vsub.s32 0, %v319
    %v321 = vrot.slane %v316, %v320
    %v355 = vunpack.c.l.b16 %v284
    %v356 = vunpack.c.l.b16 %v285
    %v357 = vunpack.c.l.b16 %v286
    %v358 = vunpack.c.l.b16 %v287
    %v359 = vunpack.c.l.b16 %v288
    %v360 = vunpack.c.l.b16 %v289
    %v361 = vunpack.c.l.b16 %v290
    %v362 = vunpack.c.l.b16 %v291
    %v363 = vunpack.c.l.b16 %v292
    %v364 = vunpack.c.l.b16 %v293
    %v365 = vunpack.c.l.b16 %v294
    %v366 = vunpack.c.l.b16 %v295
    %v367 = vunpack.c.l.b16 %v296
    %v368 = vunpack.c.l.b16 %v297
    %v369 = vunpack.c.l.b16 %v298
    %v370 = vunpack.c.l.b16 %v299
    %v371 = vunpack.c.l.b16 %v300
    %v372 = vunpack.c.l.b16 %v301
    %v373 = vunpack.c.l.b16 %v302
    %v374 = vunpack.c.l.b16 %v303
    %v375 = vunpack.c.l.b16 %v304
    %v376 = vunpack.c.l.b16 %v305
    %v377 = vunpack.c.l.b16 %v306
    %v378 = vunpack.c.l.b16 %v307
    %v379 = vunpack.c.l.b16 %v308
    %v380 = vunpack.c.l.b16 %v309
    %v381 = vunpack.c.l.b16 %v310
    %v382 = vunpack.c.l.b16 %v311
    %v383 = vunpack.c.l.b16 %v312
    %v384 = vunpack.c.l.b16 %v313
    %v385 = vunpack.c.l.b16 %v314
    %v386 = vunpack.c.l.b16 %v315
    %v387 = vpack.c.b16 %v356, %v355
    %v388 = vpack.c.b16 %v358, %v357
    %v389 = vpack.c.b16 %v360, %v359
    %v390 = vpack.c.b16 %v362, %v361
    %v391 = vpack.c.b16 %v364, %v363
    %v392 = vpack.c.b16 %v366, %v365
    %v393 = vpack.c.b16 %v368, %v367
    %v394 = vpack.c.b16 %v370, %v369
    %v395 = vpack.c.b16 %v372, %v371
    %v396 = vpack.c.b16 %v374, %v373
    %v397 = vpack.c.b16 %v376, %v375
    %v398 = vpack.c.b16 %v378, %v377
    %v399 = vpack.c.b16 %v380, %v379
    %v400 = vpack.c.b16 %v382, %v381
    %v401 = vpack.c.b16 %v384, %v383
    %v402 = vpack.c.b16 %v386, %v385
    %419 = vmatprep.subr.bf16.mxu0 0
    %420 = vmatpush1.bf16.msra.mxu0 %v387
    %421 = vmatprep.subr.bf16.mxu0 0
    %422 = vmatpush1.bf16.msra.mxu0 %v388
    %423 = vmatprep.subr.bf16.mxu0 0
    %424 = vmatpush1.bf16.msra.mxu0 %v389
    %425 = vmatprep.subr.bf16.mxu0 0
    %426 = vmatpush1.bf16.msra.mxu0 %v390
    %427 = vmatprep.subr.bf16.mxu0 0
    %428 = vmatpush1.bf16.msra.mxu0 %v391
    %429 = vmatprep.subr.bf16.mxu0 0
    %430 = vmatpush1.bf16.msra.mxu0 %v392
    %431 = vmatprep.subr.bf16.mxu0 0
    %432 = vmatpush1.bf16.msra.mxu0 %v393
    %433 = vmatprep.subr.bf16.mxu0 0
    %434 = vmatpush1.bf16.msra.mxu0 %v394
    %435 = vmatprep.subr.bf16.mxu0 0
    %436 = vmatpush1.bf16.msra.mxu0 %v395
    %437 = vmatprep.subr.bf16.mxu0 0
    %438 = vmatpush1.bf16.msra.mxu0 %v396
    %439 = vmatprep.subr.bf16.mxu0 0
    %440 = vmatpush1.bf16.msra.mxu0 %v397
    %441 = vmatprep.subr.bf16.mxu0 0
    %442 = vmatpush1.bf16.msra.mxu0 %v398
    %443 = vmatprep.subr.bf16.mxu0 0
    %444 = vmatpush1.bf16.msra.mxu0 %v399
    %445 = vmatprep.subr.bf16.mxu0 0
    %446 = vmatpush1.bf16.msra.mxu0 %v400
    %447 = vmatprep.subr.bf16.mxu0 0
    %448 = vmatpush1.bf16.msra.mxu0 %v401
    %449 = vmatprep.subr.bf16.mxu0 0
    %450 = vmatpush1.bf16.msra.mxu0 %v402
    %451 = vmatprep.mubr.bf16.mxu0 %v283
    %452 = vmatmul.mubr.bf16.gmra.mrb[0].mxu0 %v282
    %v453 = vpop.f32.mrb[0].mxu0
    %v454 = vadd.f32 %v321, %v453
    %v455 = vpop.f32.mrb[0].mxu0
    %v456 = vpop.f32.mrb[0].mxu0
    %v457 = vpop.f32.mrb[0].mxu0
    %458 = vdwg.mxu0
    %459 = vst [vmem:[#allocation5] sm:$0x3] %v454
    %v460 = vlaneseq
    %v461 = vand.u32 %v460, 127
    %vm462 = vcmp.lt.s32.totalorder %v461, 3
    %v463 = vsel %vm462, %v454, -1e+30
    %vm464 = vcmask 1041408
    %v465 = vsel %vm464, %v463, -inf
    %466 = vmax.xlane.f32.xlu0 %v465
    %v467 = vpop.xlane.xlu0 %466
    %v468 = vsub.f32 %v463, %v467
    %v469 = vmul.f32 %v468, 1.442695
    %v470 = vpow.pop %v469
    %v471 = vsel %vm464, %v470, 0.0
    %472 = vadd.xlane.f32.xlu0 %v471
    %v473 = vpop.xlane.xlu0 %472
    %v474 = vlog2.pop %v473
    %v475 = vmul.f32 %v474, 0.6931472
    %v476 = vld [vmem:[%s6] sm:$0x3]
    %477 = vset.pattern.permute.xlu0 0
    %478 = vperm.xlu0 %477, %v476
    %v479 = vpop.permute.xlu0 %478
    %vm480 = vcmp.eq.s32.totalorder %v461, %v479
    %v481 = vsel %vm480, 1, 0
    %v482 = vcvt.s32.f32 %v481
    %v483 = vmul.f32 %v468, %v482
    %v484 = vsel %vm464, %v483, 0.0
    %485 = vadd.xlane.f32.xlu0 %v484
    %v486 = vpop.xlane.xlu0 %485
    %v487 = vsub.f32 %v475, %v486
    %vm488 = vcmask 1024
    %v489 = vsel %vm488, %v487, 0.0
    %490 = vadd.xlane.f32.xlu0 %v489
    %v491 = vpop.xlane.xlu0 %490
    %v492 = vrot.slane %v491, 4
    %v493 = vadd.f32 %v491, %v492
    %v494 = vrot.slane %v493, 2
    %v495 = vadd.f32 %v493, %v494
    %v496 = vrot.slane %v495, 1
    %v497 = vadd.f32 %v495, %v496
    %s498 = vtos %v497
    %v499 = vrcp.pop 2.0
    %s500 = vtos %v499
    %s501 = smul.f32 %s498, %s500
    %s502 = scalar_lea.smem [#allocation2], 0
    %503 = sst [smem:[%s502]] %s501
    // Predicated region
    $region30: #{unshared_model.3} parent=1 // pred_check
      _
    $region31: #{unshared_model.3} parent=1 // pred_check_branch
      %505 = sbr.rel (0) target = $region33
    $region32: #{unshared_model.3} parent=1 // pred_region
      %s507 = ssub.s32 16, 16
      %508 = vsyncadd [#allocation4], %s507
      %511 = dma.smem_to_hbm [#allocation2], 16, %s7, [#allocation4]
    $region33: #{unshared_model.3} parent=1 // pred_fallthru
      _
    // Predicated region
    $region34: #{unshared_model.3} parent=1 // pred_check
      _
    $region35: #{unshared_model.3} parent=1 // pred_check_branch
      %513 = sbr.rel (0) target = $region37
    $region36: #{unshared_model.3} parent=1 // pred_region
      %s515 = ssub.s32 32, 32
      %516 = vsyncadd [#allocation3], %s515
      %s518 = sshll.u32 [#allocation5], 4
      %s519 = int_to_ptr.vmem [resolvable:$true] %s518
      %521 = dma.vmem_to_hbm [thread:$0]  %s519, 32, %s8, [#allocation3]
    $region37: #{unshared_model.3} parent=1 // pred_fallthru
      _
    // Predicated region
    $region38: #{unshared_model.3} parent=1 // pred_check
      _
    $region39: #{unshared_model.3} parent=1 // pred_check_branch
      %523 = sbr.rel (0) target = $region41
    $region40: #{unshared_model.3} parent=1 // pred_region
      %524 = dma.done [#allocation4], 16
    $region41: #{unshared_model.3} parent=1 // pred_fallthru
      _
    // Predicated region
    $region42: #{unshared_model.3} parent=1 // pred_check
      _
    $region43: #{unshared_model.3} parent=1 // pred_check_branch
      %526 = sbr.rel (0) target = $region45
    $region44: #{unshared_model.3} parent=1 // pred_region
      %527 = dma.done [#allocation3], 32
    $region45: #{unshared_model.3} parent=1 // pred_fallthru
      _
    %528 = sfence
    %529 = vsyncpa [#allocation3], 1
    %530 = vsyncpa [#allocation4], 1

// kernel: unshared_model.2
$region0: #{unshared_model.2}
  #allocation0 [shape = 'u32[]', space=smem, size = 0x4, offset = 0x4, fixed_abs, tag = 'smem constant byte address 0x4 - core index']
  #allocation1 [shape = 'u32[144,128]{1,0:T(1,128)}', space=vmem, size = 0x12000, scoped, tag = 'internal scratch']
  #allocation2 [shape = 'f32[32,128]{1,0:T(8,128)}', space=vmem, size = 0x4000, scoped, tag = 'scratch operand']
  %s0 = inlined_call_operand.vmem [shape: f32[2,32,128], index: 0, kind: input, shape index: {}]
  %s1 = inlined_call_operand.vmem [shape: f32[2,32,32], index: 1, kind: input, shape index: {}]
  %s2 = inlined_call_operand.hbm [shape: f32[2,1,128], index: 2, kind: input, shape index: {}]
  %s3 = inlined_call_operand.hbm [shape: f32[2,1,128], index: 3, kind: input, shape index: {}]
  %s4 = inlined_call_operand.vmem [shape: bf16[2,2,128,384], index: 4, kind: input, shape index: {}]
  %s5 = inlined_call_operand.vmem [shape: f32[2,2,1,384], index: 5, kind: input, shape index: {}]
  %s6 = inlined_call_operand.vmem [shape: bf16[2,2,128,128], index: 6, kind: input, shape index: {}]
  %s7 = inlined_call_operand.vmem [shape: f32[2,2,1,128], index: 7, kind: input, shape index: {}]
  %s8 = inlined_call_operand.hbm [shape: f32[2,2,1,128], index: 8, kind: input, shape index: {}]
  %s9 = inlined_call_operand.hbm [shape: f32[2,2,1,128], index: 9, kind: input, shape index: {}]
  %s10 = inlined_call_operand.vmem [shape: bf16[2,2,128,256], index: 10, kind: input, shape index: {}]
  %s11 = inlined_call_operand.hbm [shape: f32[2,2,1,256], index: 11, kind: input, shape index: {}]
  %s12 = inlined_call_operand.vmem [shape: bf16[2,2,256,128], index: 12, kind: input, shape index: {}]
  %s13 = inlined_call_operand.hbm [shape: f32[2,2,1,128], index: 13, kind: input, shape index: {}]
  %s14 = inlined_call_operand.hbm [shape: f32[2,2,1,128], index: 14, kind: input, shape index: {}]
  %s15 = inlined_call_operand.hbm [shape: f32[2,2,1,128], index: 15, kind: input, shape index: {}]
  %s16 = inlined_call_operand.vmem [shape: bf16[2,128,128], index: 16, kind: input, shape index: {}]
  %s17 = inlined_call_operand.hbm [shape: f32[2,1,128], index: 17, kind: input, shape index: {}]
  %s18 = inlined_call_operand.vmem [shape: f32[2,2,128], index: 18, kind: output, shape index: {}]
  %s19 = sld [smem:[#allocation0]]
  $region141: #{unshared_model.2} parent=0
    _
  %s21 = ssub.s32 1, %s19
  %s22 = scalar_select 0, %s21, %s19
  $region1: #{unshared_model.2} parent=0
    #allocation3 [shape = 'u8[1024]{0}', space=vmem, size = 0x400, scoped, tag = 'input window, operand 2']
    #allocation4 [shape = 's32[2]{0}', space=sflag, size = 0x8, scoped, tag = 'scoped memory for unshared_model.2']
    #allocation5 [shape = 'u8[1024]{0}', space=vmem, size = 0x400, scoped, tag = 'input window, operand 3']
    #allocation6 [shape = 's32[2]{0}', space=sflag, size = 0x8, scoped, tag = 'scoped memory for unshared_model.2']
    #allocation7 [shape = 'u8[2048]{0}', space=vmem, size = 0x800, scoped, tag = 'input window, operand 8']
    #allocation8 [shape = 'u8[2048]{0}', space=vmem, size = 0x800, scoped, tag = 'input window, operand 9']
    #allocation9 [shape = 's32[2]{0}', space=sflag, size = 0x8, scoped, tag = 'scoped memory for unshared_model.2']
    #allocation10 [shape = 'u8[4096]{0}', space=vmem, size = 0x1000, scoped, tag = 'input window, operand 11']
    #allocation11 [shape = 'u8[2048]{0}', space=vmem, size = 0x800, scoped, tag = 'input window, operand 13']
    #allocation12 [shape = 's32[2]{0}', space=sflag, size = 0x8, scoped, tag = 'scoped memory for unshared_model.2']
    #allocation13 [shape = 'u8[2048]{0}', space=vmem, size = 0x800, scoped, tag = 'input window, operand 14']
    #allocation14 [shape = 'u8[2048]{0}', space=vmem, size = 0x800, scoped, tag = 'input window, operand 15']
    #allocation15 [shape = 's32[2]{0}', space=sflag, size = 0x8, scoped, tag = 'scoped memory for unshared_model.2']
    #allocation16 [shape = 'u8[1024]{0}', space=vmem, size = 0x400, scoped, tag = 'input window, operand 17']
    %23 = vsyncpa [#allocation4], 0
    %s24 = scalar_lea.sflag [#allocation4], 1
    %25 = vsyncpa %s24, 0
    %26 = vsyncpa [#allocation6], 0
    %s27 = scalar_lea.sflag [#allocation6], 1
    %28 = vsyncpa %s27, 0
    %29 = vsyncpa [#allocation9], 0
    %s30 = scalar_lea.sflag [#allocation9], 1
    %31 = vsyncpa %s30, 0
    %32 = vsyncpa [#allocation12], 0
    %s33 = scalar_lea.sflag [#allocation12], 1
    %34 = vsyncpa %s33, 0
    %35 = vsyncpa [#allocation15], 0
    %s36 = scalar_lea.sflag [#allocation15], 1
    %37 = vsyncpa %s36, 0
    loop: start=0, step=1, limit=4
    $region2: #{unshared_model.2} parent=1 // loop_pre_header
      _
    $region3: #{unshared_model.2} parent=1 // loop_header
      %s39 = sphi 0, %s43
      %p40 = scmp.ge.s32.totalorder %s39, 4
      %s49 = sphi 0, %s51
      %s52 = sphi 0, %s49
      %s53 = sphi 0, %s52
      %s69 = sphi 0, %s53
      %s75 = sphi 0, %s77
      %s78 = sphi 0, %s75
      %s79 = sphi 0, %s78
      %s95 = sphi 0, %s79
      %s101 = sphi 0, %s103
      %s104 = sphi 0, %s101
      %s105 = sphi 0, %s104
      %s121 = sphi 0, %s105
      %s127 = sphi 0, %s129
      %s130 = sphi 0, %s127
      %s131 = sphi 0, %s130
      %s147 = sphi 0, %s131
      %s153 = sphi 0, %s155
      %s156 = sphi 0, %s153
      %s157 = sphi 0, %s156
      %s173 = sphi 0, %s157
      %s179 = sphi 0, %s181
      %s182 = sphi 0, %s179
      %s183 = sphi 0, %s182
      %s199 = sphi 0, %s183
      %s205 = sphi 0, %s207
      %s208 = sphi 0, %s205
      %s209 = sphi 0, %s208
      %s225 = sphi 0, %s209
      %s231 = sphi 0, %s233
      %s234 = sphi 0, %s231
      %s235 = sphi 0, %s234
      %s251 = sphi 0, %s235
      %s257 = sphi 0, %s259
      %s260 = sphi 0, %s257
      %s261 = sphi 0, %s260
      %s277 = sphi 0, %s261
      %s283 = sphi 0, %s285
      %s286 = sphi 0, %s283
      %s287 = sphi 0, %s286
      %s303 = sphi 0, %s287
      %s309 = sphi 0, %s311
      %s312 = sphi 0, %s309
      %s313 = sphi 0, %s312
      %s329 = sphi 0, %s313
      %s335 = sphi 0, %s337
      %s338 = sphi 0, %s335
      %s339 = sphi 0, %s338
      %s355 = sphi 0, %s339
      %s361 = sphi 0, %s363
      %s364 = sphi 0, %s361
      %s365 = sphi 0, %s364
      %s381 = sphi 0, %s365
      %s387 = sphi 0, %s389
      %s390 = sphi 0, %s387
      %s391 = sphi 0, %s390
      %s407 = sphi 0, %s391
      %s413 = sphi 0, %s415
      %s416 = sphi 0, %s413
      %s417 = sphi 0, %s416
      %s433 = sphi 0, %s417
      %s439 = sphi 0, %s441
      %s442 = sphi 0, %s439
      %s443 = sphi 0, %s442
      %s459 = sphi 0, %s443
      %s465 = sphi 0, %s467
      %s468 = sphi 0, %s465
      %s469 = sphi 0, %s468
      %s485 = sphi 0, %s469
      %s491 = sphi 0, %s493
      %s494 = sphi 0, %s491
      %s495 = sphi 0, %s494
      %s511 = sphi 0, %s495
      %s517 = sphi 0, %s519
      %s520 = sphi 0, %s517
      %s521 = sphi 0, %s520
      %s537 = sphi 0, %s521
    $region4: #{unshared_model.2} parent=1 // loop_header_branch
      %42 = sbr.rel (%p40) target = $region8
    $region5: #{unshared_model.2} parent=1 // loop_body
      %s44 = ssub.s32 %s39, 1
      %s45 = ssub.s32 %s39, 2
      %s46 = sadd.s32 %s39, 1
      %s47 = ssub.s32 %s39, %s46
      %p48 = scmp.eq.s32.totalorder %s47, 0
      %s50 = sadd.s32 %s49, 1
      %s51 = scalar_select %p48, %s49, %s50
      %p54 = pneg %p48
      %p55 = scmp.eq.s32.totalorder %s39, 1
      %p56 = por %p54, %p55
      %p57 = scmp.ne.s32.totalorder %s49, %s52
      %p58 = scmp.eq.s32.totalorder %s39, 0
      %p59 = por %p57, %p58
      %p60 = scmp.ne.s32.totalorder %s49, %s52
      %p61 = scmp.eq.s32.totalorder %s44, 1
      %p62 = por %p60, %p61
      %p63 = scmp.ne.s32.totalorder %s52, %s53
      %p64 = scmp.eq.s32.totalorder %s44, 0
      %p65 = por %p63, %p64
      %p66 = scmp.ne.s32.totalorder %s52, %s53
      %p67 = scmp.eq.s32.totalorder %s45, 1
      %p68 = por %p66, %p67
      %p70 = scmp.ne.s32.totalorder %s53, %s69
      %p71 = scmp.eq.s32.totalorder %s45, 0
      %p72 = por %p70, %p71
      %s73 = ssub.s32 %s39, %s46
      %p74 = scmp.eq.s32.totalorder %s73, 0
      %s76 = sadd.s32 %s75, 1
      %s77 = scalar_select %p74, %s75, %s76
      %p80 = pneg %p74
      %p81 = scmp.eq.s32.totalorder %s39, 1
      %p82 = por %p80, %p81
      %p83 = scmp.ne.s32.totalorder %s75, %s78
      %p84 = scmp.eq.s32.totalorder %s39, 0
      %p85 = por %p83, %p84
      %p86 = scmp.ne.s32.totalorder %s75, %s78
      %p87 = scmp.eq.s32.totalorder %s44, 1
      %p88 = por %p86, %p87
      %p89 = scmp.ne.s32.totalorder %s78, %s79
      %p90 = scmp.eq.s32.totalorder %s44, 0
      %p91 = por %p89, %p90
      %p92 = scmp.ne.s32.totalorder %s78, %s79
      %p93 = scmp.eq.s32.totalorder %s45, 1
      %p94 = por %p92, %p93
      %p96 = scmp.ne.s32.totalorder %s79, %s95
      %p97 = scmp.eq.s32.totalorder %s45, 0
      %p98 = por %p96, %p97
      %s99 = ssub.s32 %s39, %s46
      %p100 = scmp.eq.s32.totalorder %s99, 0
      %s102 = sadd.s32 %s101, 1
      %s103 = scalar_select %p100, %s101, %s102
      %p106 = pneg %p100
      %p107 = scmp.eq.s32.totalorder %s39, 1
      %p108 = por %p106, %p107
      %p109 = scmp.ne.s32.totalorder %s101, %s104
      %p110 = scmp.eq.s32.totalorder %s39, 0
      %p111 = por %p109, %p110
      %p112 = scmp.ne.s32.totalorder %s101, %s104
      %p113 = scmp.eq.s32.totalorder %s44, 1
      %p114 = por %p112, %p113
      %p115 = scmp.ne.s32.totalorder %s104, %s105
      %p116 = scmp.eq.s32.totalorder %s44, 0
      %p117 = por %p115, %p116
      %p118 = scmp.ne.s32.totalorder %s104, %s105
      %p119 = scmp.eq.s32.totalorder %s45, 1
      %p120 = por %p118, %p119
      %p122 = scmp.ne.s32.totalorder %s105, %s121
      %p123 = scmp.eq.s32.totalorder %s45, 0
      %p124 = por %p122, %p123
      %s125 = ssub.s32 %s39, %s46
      %p126 = scmp.eq.s32.totalorder %s125, 0
      %s128 = sadd.s32 %s127, 1
      %s129 = scalar_select %p126, %s127, %s128
      %p132 = pneg %p126
      %p133 = scmp.eq.s32.totalorder %s39, 1
      %p134 = por %p132, %p133
      %p135 = scmp.ne.s32.totalorder %s127, %s130
      %p136 = scmp.eq.s32.totalorder %s39, 0
      %p137 = por %p135, %p136
      %p138 = scmp.ne.s32.totalorder %s127, %s130
      %p139 = scmp.eq.s32.totalorder %s44, 1
      %p140 = por %p138, %p139
      %p141 = scmp.ne.s32.totalorder %s130, %s131
      %p142 = scmp.eq.s32.totalorder %s44, 0
      %p143 = por %p141, %p142
      %p144 = scmp.ne.s32.totalorder %s130, %s131
      %p145 = scmp.eq.s32.totalorder %s45, 1
      %p146 = por %p144, %p145
      %p148 = scmp.ne.s32.totalorder %s131, %s147
      %p149 = scmp.eq.s32.totalorder %s45, 0
      %p150 = por %p148, %p149
      %s151 = ssub.s32 %s39, %s46
      %p152 = scmp.eq.s32.totalorder %s151, 0
      %s154 = sadd.s32 %s153, 1
      %s155 = scalar_select %p152, %s153, %s154
      %p158 = pneg %p152
      %p159 = scmp.eq.s32.totalorder %s39, 1
      %p160 = por %p158, %p159
      %p161 = scmp.ne.s32.totalorder %s153, %s156
      %p162 = scmp.eq.s32.totalorder %s39, 0
      %p163 = por %p161, %p162
      %p164 = scmp.ne.s32.totalorder %s153, %s156
      %p165 = scmp.eq.s32.totalorder %s44, 1
      %p166 = por %p164, %p165
      %p167 = scmp.ne.s32.totalorder %s156, %s157
      %p168 = scmp.eq.s32.totalorder %s44, 0
      %p169 = por %p167, %p168
      %p170 = scmp.ne.s32.totalorder %s156, %s157
      %p171 = scmp.eq.s32.totalorder %s45, 1
      %p172 = por %p170, %p171
      %p174 = scmp.ne.s32.totalorder %s157, %s173
      %p175 = scmp.eq.s32.totalorder %s45, 0
      %p176 = por %p174, %p175
      %s177 = ssub.s32 %s39, %s46
      %p178 = scmp.eq.s32.totalorder %s177, 0
      %s180 = sadd.s32 %s179, 1
      %s181 = scalar_select %p178, %s179, %s180
      %p184 = pneg %p178
      %p185 = scmp.eq.s32.totalorder %s39, 1
      %p186 = por %p184, %p185
      %p187 = scmp.ne.s32.totalorder %s179, %s182
      %p188 = scmp.eq.s32.totalorder %s39, 0
      %p189 = por %p187, %p188
      %p190 = scmp.ne.s32.totalorder %s179, %s182
      %p191 = scmp.eq.s32.totalorder %s44, 1
      %p192 = por %p190, %p191
      %p193 = scmp.ne.s32.totalorder %s182, %s183
      %p194 = scmp.eq.s32.totalorder %s44, 0
      %p195 = por %p193, %p194
      %p196 = scmp.ne.s32.totalorder %s182, %s183
      %p197 = scmp.eq.s32.totalorder %s45, 1
      %p198 = por %p196, %p197
      %p200 = scmp.ne.s32.totalorder %s183, %s199
      %p201 = scmp.eq.s32.totalorder %s45, 0
      %p202 = por %p200, %p201
      %s203 = ssub.s32 %s39, %s46
      %p204 = scmp.eq.s32.totalorder %s203, 0
      %s206 = sadd.s32 %s205, 1
      %s207 = scalar_select %p204, %s205, %s206
      %p210 = pneg %p204
      %p211 = scmp.eq.s32.totalorder %s39, 1
      %p212 = por %p210, %p211
      %p213 = scmp.ne.s32.totalorder %s205, %s208
      %p214 = scmp.eq.s32.totalorder %s39, 0
      %p215 = por %p213, %p214
      %p216 = scmp.ne.s32.totalorder %s205, %s208
      %p217 = scmp.eq.s32.totalorder %s44, 1
      %p218 = por %p216, %p217
      %p219 = scmp.ne.s32.totalorder %s208, %s209
      %p220 = scmp.eq.s32.totalorder %s44, 0
      %p221 = por %p219, %p220
      %p222 = scmp.ne.s32.totalorder %s208, %s209
      %p223 = scmp.eq.s32.totalorder %s45, 1
      %p224 = por %p222, %p223
      %p226 = scmp.ne.s32.totalorder %s209, %s225
      %p227 = scmp.eq.s32.totalorder %s45, 0
      %p228 = por %p226, %p227
      %s229 = ssub.s32 %s39, %s46
      %p230 = scmp.eq.s32.totalorder %s229, 0
      %s232 = sadd.s32 %s231, 1
      %s233 = scalar_select %p230, %s231, %s232
      %p236 = pneg %p230
      %p237 = scmp.eq.s32.totalorder %s39, 1
      %p238 = por %p236, %p237
      %p239 = scmp.ne.s32.totalorder %s231, %s234
      %p240 = scmp.eq.s32.totalorder %s39, 0
      %p241 = por %p239, %p240
      %p242 = scmp.ne.s32.totalorder %s231, %s234
      %p243 = scmp.eq.s32.totalorder %s44, 1
      %p244 = por %p242, %p243
      %p245 = scmp.ne.s32.totalorder %s234, %s235
      %p246 = scmp.eq.s32.totalorder %s44, 0
      %p247 = por %p245, %p246
      %p248 = scmp.ne.s32.totalorder %s234, %s235
      %p249 = scmp.eq.s32.totalorder %s45, 1
      %p250 = por %p248, %p249
      %p252 = scmp.ne.s32.totalorder %s235, %s251
      %p253 = scmp.eq.s32.totalorder %s45, 0
      %p254 = por %p252, %p253
      %s255 = ssub.s32 %s39, %s46
      %p256 = scmp.eq.s32.totalorder %s255, 0
      %s258 = sadd.s32 %s257, 1
      %s259 = scalar_select %p256, %s257, %s258
      %p262 = pneg %p256
      %p263 = scmp.eq.s32.totalorder %s39, 1
      %p264 = por %p262, %p263
      %p265 = scmp.ne.s32.totalorder %s257, %s260
      %p266 = scmp.eq.s32.totalorder %s39, 0
      %p267 = por %p265, %p266
      %p268 = scmp.ne.s32.totalorder %s257, %s260
      %p269 = scmp.eq.s32.totalorder %s44, 1
      %p270 = por %p268, %p269
      %p271 = scmp.ne.s32.totalorder %s260, %s261
      %p272 = scmp.eq.s32.totalorder %s44, 0
      %p273 = por %p271, %p272
      %p274 = scmp.ne.s32.totalorder %s260, %s261
      %p275 = scmp.eq.s32.totalorder %s45, 1
      %p276 = por %p274, %p275
      %p278 = scmp.ne.s32.totalorder %s261, %s277
      %p279 = scmp.eq.s32.totalorder %s45, 0
      %p280 = por %p278, %p279
      %s281 = ssub.s32 %s39, %s46
      %p282 = scmp.eq.s32.totalorder %s281, 0
      %s284 = sadd.s32 %s283, 1
      %s285 = scalar_select %p282, %s283, %s284
      %p288 = pneg %p282
      %p289 = scmp.eq.s32.totalorder %s39, 1
      %p290 = por %p288, %p289
      %p291 = scmp.ne.s32.totalorder %s283, %s286
      %p292 = scmp.eq.s32.totalorder %s39, 0
      %p293 = por %p291, %p292
      %p294 = scmp.ne.s32.totalorder %s283, %s286
      %p295 = scmp.eq.s32.totalorder %s44, 1
      %p296 = por %p294, %p295
      %p297 = scmp.ne.s32.totalorder %s286, %s287
      %p298 = scmp.eq.s32.totalorder %s44, 0
      %p299 = por %p297, %p298
      %p300 = scmp.ne.s32.totalorder %s286, %s287
      %p301 = scmp.eq.s32.totalorder %s45, 1
      %p302 = por %p300, %p301
      %p304 = scmp.ne.s32.totalorder %s287, %s303
      %p305 = scmp.eq.s32.totalorder %s45, 0
      %p306 = por %p304, %p305
      %s307 = ssub.s32 %s39, %s46
      %p308 = scmp.eq.s32.totalorder %s307, 0
      %s310 = sadd.s32 %s309, 1
      %s311 = scalar_select %p308, %s309, %s310
      %p314 = pneg %p308
      %p315 = scmp.eq.s32.totalorder %s39, 1
      %p316 = por %p314, %p315
      %p317 = scmp.ne.s32.totalorder %s309, %s312
      %p318 = scmp.eq.s32.totalorder %s39, 0
      %p319 = por %p317, %p318
      %p320 = scmp.ne.s32.totalorder %s309, %s312
      %p321 = scmp.eq.s32.totalorder %s44, 1
      %p322 = por %p320, %p321
      %p323 = scmp.ne.s32.totalorder %s312, %s313
      %p324 = scmp.eq.s32.totalorder %s44, 0
      %p325 = por %p323, %p324
      %p326 = scmp.ne.s32.totalorder %s312, %s313
      %p327 = scmp.eq.s32.totalorder %s45, 1
      %p328 = por %p326, %p327
      %p330 = scmp.ne.s32.totalorder %s313, %s329
      %p331 = scmp.eq.s32.totalorder %s45, 0
      %p332 = por %p330, %p331
      %s333 = ssub.s32 %s39, %s46
      %p334 = scmp.eq.s32.totalorder %s333, 0
      %s336 = sadd.s32 %s335, 1
      %s337 = scalar_select %p334, %s335, %s336
      %p340 = pneg %p334
      %p341 = scmp.eq.s32.totalorder %s39, 1
      %p342 = por %p340, %p341
      %p343 = scmp.ne.s32.totalorder %s335, %s338
      %p344 = scmp.eq.s32.totalorder %s39, 0
      %p345 = por %p343, %p344
      %p346 = scmp.ne.s32.totalorder %s335, %s338
      %p347 = scmp.eq.s32.totalorder %s44, 1
      %p348 = por %p346, %p347
      %p349 = scmp.ne.s32.totalorder %s338, %s339
      %p350 = scmp.eq.s32.totalorder %s44, 0
      %p351 = por %p349, %p350
      %p352 = scmp.ne.s32.totalorder %s338, %s339
      %p353 = scmp.eq.s32.totalorder %s45, 1
      %p354 = por %p352, %p353
      %p356 = scmp.ne.s32.totalorder %s339, %s355
      %p357 = scmp.eq.s32.totalorder %s45, 0
      %p358 = por %p356, %p357
      %s359 = ssub.s32 %s39, %s46
      %p360 = scmp.eq.s32.totalorder %s359, 0
      %s362 = sadd.s32 %s361, 1
      %s363 = scalar_select %p360, %s361, %s362
      %p366 = pneg %p360
      %p367 = scmp.eq.s32.totalorder %s39, 1
      %p368 = por %p366, %p367
      %p369 = scmp.ne.s32.totalorder %s361, %s364
      %p370 = scmp.eq.s32.totalorder %s39, 0
      %p371 = por %p369, %p370
      %p372 = scmp.ne.s32.totalorder %s361, %s364
      %p373 = scmp.eq.s32.totalorder %s44, 1
      %p374 = por %p372, %p373
      %p375 = scmp.ne.s32.totalorder %s364, %s365
      %p376 = scmp.eq.s32.totalorder %s44, 0
      %p377 = por %p375, %p376
      %p378 = scmp.ne.s32.totalorder %s364, %s365
      %p379 = scmp.eq.s32.totalorder %s45, 1
      %p380 = por %p378, %p379
      %p382 = scmp.ne.s32.totalorder %s365, %s381
      %p383 = scmp.eq.s32.totalorder %s45, 0
      %p384 = por %p382, %p383
      %s385 = ssub.s32 %s39, %s46
      %p386 = scmp.eq.s32.totalorder %s385, 0
      %s388 = sadd.s32 %s387, 1
      %s389 = scalar_select %p386, %s387, %s388
      %p392 = pneg %p386
      %p393 = scmp.eq.s32.totalorder %s39, 1
      %p394 = por %p392, %p393
      %p395 = scmp.ne.s32.totalorder %s387, %s390
      %p396 = scmp.eq.s32.totalorder %s39, 0
      %p397 = por %p395, %p396
      %p398 = scmp.ne.s32.totalorder %s387, %s390
      %p399 = scmp.eq.s32.totalorder %s44, 1
      %p400 = por %p398, %p399
      %p401 = scmp.ne.s32.totalorder %s390, %s391
      %p402 = scmp.eq.s32.totalorder %s44, 0
      %p403 = por %p401, %p402
      %p404 = scmp.ne.s32.totalorder %s390, %s391
      %p405 = scmp.eq.s32.totalorder %s45, 1
      %p406 = por %p404, %p405
      %p408 = scmp.ne.s32.totalorder %s391, %s407
      %p409 = scmp.eq.s32.totalorder %s45, 0
      %p410 = por %p408, %p409
      %s411 = ssub.s32 %s39, %s46
      %p412 = scmp.eq.s32.totalorder %s411, 0
      %s414 = sadd.s32 %s413, 1
      %s415 = scalar_select %p412, %s413, %s414
      %p418 = pneg %p412
      %p419 = scmp.eq.s32.totalorder %s39, 1
      %p420 = por %p418, %p419
      %p421 = scmp.ne.s32.totalorder %s413, %s416
      %p422 = scmp.eq.s32.totalorder %s39, 0
      %p423 = por %p421, %p422
      %p424 = scmp.ne.s32.totalorder %s413, %s416
      %p425 = scmp.eq.s32.totalorder %s44, 1
      %p426 = por %p424, %p425
      %p427 = scmp.ne.s32.totalorder %s416, %s417
      %p428 = scmp.eq.s32.totalorder %s44, 0
      %p429 = por %p427, %p428
      %p430 = scmp.ne.s32.totalorder %s416, %s417
      %p431 = scmp.eq.s32.totalorder %s45, 1
      %p432 = por %p430, %p431
      %p434 = scmp.ne.s32.totalorder %s417, %s433
      %p435 = scmp.eq.s32.totalorder %s45, 0
      %p436 = por %p434, %p435
      %s437 = ssub.s32 %s39, %s46
      %p438 = scmp.eq.s32.totalorder %s437, 0
      %s440 = sadd.s32 %s439, 1
      %s441 = scalar_select %p438, %s439, %s440
      %p444 = pneg %p438
      %p445 = scmp.eq.s32.totalorder %s39, 1
      %p446 = por %p444, %p445
      %p447 = scmp.ne.s32.totalorder %s439, %s442
      %p448 = scmp.eq.s32.totalorder %s39, 0
      %p449 = por %p447, %p448
      %p450 = scmp.ne.s32.totalorder %s439, %s442
      %p451 = scmp.eq.s32.totalorder %s44, 1
      %p452 = por %p450, %p451
      %p453 = scmp.ne.s32.totalorder %s442, %s443
      %p454 = scmp.eq.s32.totalorder %s44, 0
      %p455 = por %p453, %p454
      %p456 = scmp.ne.s32.totalorder %s442, %s443
      %p457 = scmp.eq.s32.totalorder %s45, 1
      %p458 = por %p456, %p457
      %p460 = scmp.ne.s32.totalorder %s443, %s459
      %p461 = scmp.eq.s32.totalorder %s45, 0
      %p462 = por %p460, %p461
      %s463 = ssub.s32 %s39, %s46
      %p464 = scmp.eq.s32.totalorder %s463, 0
      %s466 = sadd.s32 %s465, 1
      %s467 = scalar_select %p464, %s465, %s466
      %p470 = pneg %p464
      %p471 = scmp.eq.s32.totalorder %s39, 1
      %p472 = por %p470, %p471
      %p473 = scmp.ne.s32.totalorder %s465, %s468
      %p474 = scmp.eq.s32.totalorder %s39, 0
      %p475 = por %p473, %p474
      %p476 = scmp.ne.s32.totalorder %s465, %s468
      %p477 = scmp.eq.s32.totalorder %s44, 1
      %p478 = por %p476, %p477
      %p479 = scmp.ne.s32.totalorder %s468, %s469
      %p480 = scmp.eq.s32.totalorder %s44, 0
      %p481 = por %p479, %p480
      %p482 = scmp.ne.s32.totalorder %s468, %s469
      %p483 = scmp.eq.s32.totalorder %s45, 1
      %p484 = por %p482, %p483
      %p486 = scmp.ne.s32.totalorder %s469, %s485
      %p487 = scmp.eq.s32.totalorder %s45, 0
      %p488 = por %p486, %p487
      %s489 = ssub.s32 %s39, %s46
      %p490 = scmp.eq.s32.totalorder %s489, 0
      %s492 = sadd.s32 %s491, 1
      %s493 = scalar_select %p490, %s491, %s492
      %p496 = pneg %p490
      %p497 = scmp.eq.s32.totalorder %s39, 1
      %p498 = por %p496, %p497
      %p499 = scmp.ne.s32.totalorder %s491, %s494
      %p500 = scmp.eq.s32.totalorder %s39, 0
      %p501 = por %p499, %p500
      %p502 = scmp.ne.s32.totalorder %s491, %s494
      %p503 = scmp.eq.s32.totalorder %s44, 1
      %p504 = por %p502, %p503
      %p505 = scmp.ne.s32.totalorder %s494, %s495
      %p506 = scmp.eq.s32.totalorder %s44, 0
      %p507 = por %p505, %p506
      %p508 = scmp.ne.s32.totalorder %s494, %s495
      %p509 = scmp.eq.s32.totalorder %s45, 1
      %p510 = por %p508, %p509
      %p512 = scmp.ne.s32.totalorder %s495, %s511
      %p513 = scmp.eq.s32.totalorder %s45, 0
      %p514 = por %p512, %p513
      %s515 = ssub.s32 %s39, %s46
      %p516 = scmp.eq.s32.totalorder %s515, 0
      %s518 = sadd.s32 %s517, 1
      %s519 = scalar_select %p516, %s517, %s518
      %p522 = pneg %p516
      %p523 = scmp.eq.s32.totalorder %s39, 1
      %p524 = por %p522, %p523
      %p525 = scmp.ne.s32.totalorder %s517, %s520
      %p526 = scmp.eq.s32.totalorder %s39, 0
      %p527 = por %p525, %p526
      %p528 = scmp.ne.s32.totalorder %s517, %s520
      %p529 = scmp.eq.s32.totalorder %s44, 1
      %p530 = por %p528, %p529
      %p531 = scmp.ne.s32.totalorder %s520, %s521
      %p532 = scmp.eq.s32.totalorder %s44, 0
      %p533 = por %p531, %p532
      %p534 = scmp.ne.s32.totalorder %s520, %s521
      %p535 = scmp.eq.s32.totalorder %s45, 1
      %p536 = por %p534, %p535
      %p538 = scmp.ne.s32.totalorder %s521, %s537
      %p539 = scmp.eq.s32.totalorder %s45, 0
      %p540 = por %p538, %p539
      %p541 = scmp.le.s32.totalorder 1, %s39
      %p542 = scmp.lt.s32.totalorder %s39, 3
      %p543 = pnand %p541, %p542
      %p544 = pneg %p543
      // Predicated region
      $region9: #{unshared_model.2} parent=5 // pred_check
        _
      $region10: #{unshared_model.2} parent=5 // pred_check_branch
        %546 = sbr.rel (%p543) target = $region12
      $region11: #{unshared_model.2} parent=5 // pred_region
        %s547 = ssub.s32 %s39, 1
      $region12: #{unshared_model.2} parent=5 // pred_fallthru
        _
      %p548 = scmp.lt.s32.totalorder %s39, 2
      // Predicated region
      $region13: #{unshared_model.2} parent=5 // pred_check
        %p549 = pneg %p548
      $region14: #{unshared_model.2} parent=5 // pred_check_branch
        %551 = sbr.rel (%p549) target = $region16
      $region15: #{unshared_model.2} parent=5 // pred_region
        // Predicated region
        $region17: #{unshared_model.2} parent=15 // pred_check
          %p552 = pneg %p59
        $region18: #{unshared_model.2} parent=15 // pred_check_branch
          %554 = sbr.rel (%p552) target = $region20
        $region19: #{unshared_model.2} parent=15 // pred_region
          %p555 = scmp.lt.s32.totalorder %s39, 1
          %s556 = scalar_select %p555, %s39, 1
          %s557 = smul.addr %s556, 4
          %s558 = smul.addr %s557, 8
          %s559 = scalar_lea.vmem %s0, %s558
        $region20: #{unshared_model.2} parent=15 // pred_fallthru
          _
        // Predicated region
        $region21: #{unshared_model.2} parent=15 // pred_check
          %p560 = pneg %p85
        $region22: #{unshared_model.2} parent=15 // pred_check_branch
          %562 = sbr.rel (%p560) target = $region24
        $region23: #{unshared_model.2} parent=15 // pred_region
          %p563 = scmp.lt.s32.totalorder %s39, 1
          %s564 = scalar_select %p563, %s39, 1
          %s565 = smul.addr %s564, 4
          %s566 = smul.addr %s565, 8
          %s567 = scalar_lea.vmem %s1, %s566
        $region24: #{unshared_model.2} parent=15 // pred_fallthru
          _
        // Predicated region
        $region25: #{unshared_model.2} parent=15 // pred_check
          %p568 = pneg %p111
        $region26: #{unshared_model.2} parent=15 // pred_check_branch
          %570 = sbr.rel (%p568) target = $region28
        $region27: #{unshared_model.2} parent=15 // pred_region
          %s571 = sand.u32 %s101, 1
          %s572 = scalar_lea.sflag [#allocation4], %s571
          %s573 = sand.u32 %s101, 1
          %s574 = scalar_lea.vmem [#allocation3], %s573
          %s576 = ssub.s32 16, 16
          %577 = vsyncadd %s572, %s576
          %s578 = smul.addr %s39, 16
          %s579 = scalar_lea.hbm %s2, %s578
          %s581 = sshll.u32 %s574, 4
          %s582 = int_to_ptr.vmem [resolvable:$true] %s581
          %584 = dma.hbm_to_vmem [thread:$0]  %s579, 16, %s582, %s572
        $region28: #{unshared_model.2} parent=15 // pred_fallthru
          _
        // Predicated region
        $region29: #{unshared_model.2} parent=15 // pred_check
          %p585 = pneg %p137
        $region30: #{unshared_model.2} parent=15 // pred_check_branch
          %587 = sbr.rel (%p585) target = $region32
        $region31: #{unshared_model.2} parent=15 // pred_region
          %s588 = sand.u32 %s39, 1
          %s589 = scalar_lea.sflag [#allocation6], %s588
          %s590 = sand.u32 %s127, 1
          %s591 = scalar_lea.vmem [#allocation5], %s590
          %s593 = ssub.s32 16, 16
          %594 = vsyncadd %s589, %s593
          %s595 = smul.addr %s39, 16
          %s596 = scalar_lea.hbm %s3, %s595
          %s598 = sshll.u32 %s591, 4
          %s599 = int_to_ptr.vmem [resolvable:$true] %s598
          %601 = dma.hbm_to_vmem [thread:$0]  %s596, 16, %s599, %s589
        $region32: #{unshared_model.2} parent=15 // pred_fallthru
          _
        // Predicated region
        $region33: #{unshared_model.2} parent=15 // pred_check
          %p602 = pneg %p163
        $region34: #{unshared_model.2} parent=15 // pred_check_branch
          %604 = sbr.rel (%p602) target = $region36
        $region35: #{unshared_model.2} parent=15 // pred_region
          %p605 = scmp.lt.s32.totalorder %s39, 1
          %s606 = scalar_select %p605, %s39, 1
          %s607 = smul.addr %s606, 96
          %s608 = smul.addr %s607, 4
          %s609 = scalar_lea.vmem %s4, %s608
        $region36: #{unshared_model.2} parent=15 // pred_fallthru
          _
        // Predicated region
        $region37: #{unshared_model.2} parent=15 // pred_check
          %p610 = pneg %p189
        $region38: #{unshared_model.2} parent=15 // pred_check_branch
          %612 = sbr.rel (%p610) target = $region40
        $region39: #{unshared_model.2} parent=15 // pred_region
          %p613 = scmp.lt.s32.totalorder %s39, 1
          %s614 = scalar_select %p613, %s39, 1
          %s615 = smul.addr %s614, 6
          %s616 = scalar_lea.vmem %s5, %s615
        $region40: #{unshared_model.2} parent=15 // pred_fallthru
          _
        // Predicated region
        $region41: #{unshared_model.2} parent=15 // pred_check
          %p617 = pneg %p215
        $region42: #{unshared_model.2} parent=15 // pred_check_branch
          %619 = sbr.rel (%p617) target = $region44
        $region43: #{unshared_model.2} parent=15 // pred_region
          %p620 = scmp.lt.s32.totalorder %s39, 1
          %s621 = scalar_select %p620, %s39, 1
          %s622 = smul.addr %s621, 32
          %s623 = smul.addr %s622, 4
          %s624 = scalar_lea.vmem %s6, %s623
        $region44: #{unshared_model.2} parent=15 // pred_fallthru
          _
        // Predicated region
        $region45: #{unshared_model.2} parent=15 // pred_check
          %p625 = pneg %p241
        $region46: #{unshared_model.2} parent=15 // pred_check_branch
          %627 = sbr.rel (%p625) target = $region48
        $region47: #{unshared_model.2} parent=15 // pred_region
          %p628 = scmp.lt.s32.totalorder %s39, 1
          %s629 = scalar_select %p628, %s39, 1
          %s630 = smul.addr %s629, 2
          %s631 = scalar_lea.vmem %s7, %s630
        $region48: #{unshared_model.2} parent=15 // pred_fallthru
          _
        // Predicated region
        $region49: #{unshared_model.2} parent=15 // pred_check
          %p632 = pneg %p267
        $region50: #{unshared_model.2} parent=15 // pred_check_branch
          %634 = sbr.rel (%p632) target = $region52
        $region51: #{unshared_model.2} parent=15 // pred_region
          %s635 = sand.u32 %s39, 1
          %s636 = scalar_lea.sflag [#allocation6], %s635
          %s637 = sand.u32 %s257, 1
          %s638 = smul.addr %s637, 2
          %s639 = scalar_lea.vmem [#allocation7], %s638
          %s641 = ssub.s32 32, 32
          %642 = vsyncadd %s636, %s641
          %s643 = smul.addr %s39, 2
          %s644 = smul.addr %s643, 16
          %s645 = scalar_lea.hbm %s8, %s644
          %s646 = sshll.u32 %s639, 4
          %s647 = int_to_ptr.vmem [resolvable:$true] %s646
          %652 = dma.hbm_to_vmem [thread:$0]  %s645, 32, %s647, %s636, 16, 16, 1
        $region52: #{unshared_model.2} parent=15 // pred_fallthru
          _
        // Predicated region
        $region53: #{unshared_model.2} parent=15 // pred_check
          %p653 = pneg %p293
        $region54: #{unshared_model.2} parent=15 // pred_check_branch
          %655 = sbr.rel (%p653) target = $region56
        $region55: #{unshared_model.2} parent=15 // pred_region
          %s656 = sand.u32 %s39, 1
          %s657 = scalar_lea.sflag [#allocation9], %s656
          %s658 = sand.u32 %s283, 1
          %s659 = smul.addr %s658, 2
          %s660 = scalar_lea.vmem [#allocation8], %s659
          %s662 = ssub.s32 32, 32
          %663 = vsyncadd %s657, %s662
          %s664 = smul.addr %s39, 2
          %s665 = smul.addr %s664, 16
          %s666 = scalar_lea.hbm %s9, %s665
          %s667 = sshll.u32 %s660, 4
          %s668 = int_to_ptr.vmem [resolvable:$true] %s667
          %673 = dma.hbm_to_vmem [thread:$0]  %s666, 32, %s668, %s657, 16, 16, 1
        $region56: #{unshared_model.2} parent=15 // pred_fallthru
          _
        // Predicated region
        $region57: #{unshared_model.2} parent=15 // pred_check
          %p674 = pneg %p319
        $region58: #{unshared_model.2} parent=15 // pred_check_branch
          %676 = sbr.rel (%p674) target = $region60
        $region59: #{unshared_model.2} parent=15 // pred_region
          %p677 = scmp.lt.s32.totalorder %s39, 1
          %s678 = scalar_select %p677, %s39, 1
          %s679 = smul.addr %s678, 64
          %s680 = smul.addr %s679, 4
          %s681 = scalar_lea.vmem %s10, %s680
        $region60: #{unshared_model.2} parent=15 // pred_fallthru
          _
        // Predicated region
        $region61: #{unshared_model.2} parent=15 // pred_check
          %p682 = pneg %p345
        $region62: #{unshared_model.2} parent=15 // pred_check_branch
          %684 = sbr.rel (%p682) target = $region64
        $region63: #{unshared_model.2} parent=15 // pred_region
          %s685 = sand.u32 %s39, 1
          %s686 = scalar_lea.sflag [#allocation9], %s685
          %s687 = sand.u32 %s335, 1
          %s688 = smul.addr %s687, 4
          %s689 = scalar_lea.vmem [#allocation10], %s688
          %s691 = ssub.s32 64, 64
          %692 = vsyncadd %s686, %s691
          %s693 = smul.addr %s39, 4
          %s694 = smul.addr %s693, 16
          %s695 = scalar_lea.hbm %s11, %s694
          %s696 = sshll.u32 %s689, 4
          %s697 = int_to_ptr.vmem [resolvable:$true] %s696
          %702 = dma.hbm_to_vmem [thread:$0]  %s695, 64, %s697, %s686, 32, 32, 2
        $region64: #{unshared_model.2} parent=15 // pred_fallthru
          _
        // Predicated region
        $region65: #{unshared_model.2} parent=15 // pred_check
          %p703 = pneg %p371
        $region66: #{unshared_model.2} parent=15 // pred_check_branch
          %705 = sbr.rel (%p703) target = $region68
        $region67: #{unshared_model.2} parent=15 // pred_region
          %p706 = scmp.lt.s32.totalorder %s39, 1
          %s707 = scalar_select %p706, %s39, 1
          %s708 = smul.addr %s707, 64
          %s709 = smul.addr %s708, 4
          %s710 = scalar_lea.vmem %s12, %s709
        $region68: #{unshared_model.2} parent=15 // pred_fallthru
          _
        // Predicated region
        $region69: #{unshared_model.2} parent=15 // pred_check
          %p711 = pneg %p397
        $region70: #{unshared_model.2} parent=15 // pred_check_branch
          %713 = sbr.rel (%p711) target = $region72
        $region71: #{unshared_model.2} parent=15 // pred_region
          %s714 = sand.u32 %s39, 1
          %s715 = scalar_lea.sflag [#allocation12], %s714
          %s716 = sand.u32 %s387, 1
          %s717 = smul.addr %s716, 2
          %s718 = scalar_lea.vmem [#allocation11], %s717
          %s720 = ssub.s32 32, 32
          %721 = vsyncadd %s715, %s720
          %s722 = smul.addr %s39, 2
          %s723 = smul.addr %s722, 16
          %s724 = scalar_lea.hbm %s13, %s723
          %s725 = sshll.u32 %s718, 4
          %s726 = int_to_ptr.vmem [resolvable:$true] %s725
          %731 = dma.hbm_to_vmem [thread:$0]  %s724, 32, %s726, %s715, 16, 16, 1
        $region72: #{unshared_model.2} parent=15 // pred_fallthru
          _
        // Predicated region
        $region73: #{unshared_model.2} parent=15 // pred_check
          %p732 = pneg %p423
        $region74: #{unshared_model.2} parent=15 // pred_check_branch
          %734 = sbr.rel (%p732) target = $region76
        $region75: #{unshared_model.2} parent=15 // pred_region
          %s735 = sand.u32 %s39, 1
          %s736 = scalar_lea.sflag [#allocation12], %s735
          %s737 = sand.u32 %s413, 1
          %s738 = smul.addr %s737, 2
          %s739 = scalar_lea.vmem [#allocation13], %s738
          %s741 = ssub.s32 32, 32
          %742 = vsyncadd %s736, %s741
          %s743 = smul.addr %s39, 2
          %s744 = smul.addr %s743, 16
          %s745 = scalar_lea.hbm %s14, %s744
          %s746 = sshll.u32 %s739, 4
          %s747 = int_to_ptr.vmem [resolvable:$true] %s746
          %752 = dma.hbm_to_vmem [thread:$0]  %s745, 32, %s747, %s736, 16, 16, 1
        $region76: #{unshared_model.2} parent=15 // pred_fallthru
          _
        // Predicated region
        $region77: #{unshared_model.2} parent=15 // pred_check
          %p753 = pneg %p449
        $region78: #{unshared_model.2} parent=15 // pred_check_branch
          %755 = sbr.rel (%p753) target = $region80
        $region79: #{unshared_model.2} parent=15 // pred_region
          %s756 = sand.u32 %s39, 1
          %s757 = scalar_lea.sflag [#allocation15], %s756
          %s758 = sand.u32 %s439, 1
          %s759 = smul.addr %s758, 2
          %s760 = scalar_lea.vmem [#allocation14], %s759
          %s762 = ssub.s32 32, 32
          %763 = vsyncadd %s757, %s762
          %s764 = smul.addr %s39, 2
          %s765 = smul.addr %s764, 16
          %s766 = scalar_lea.hbm %s15, %s765
          %s767 = sshll.u32 %s760, 4
          %s768 = int_to_ptr.vmem [resolvable:$true] %s767
          %773 = dma.hbm_to_vmem [thread:$0]  %s766, 32, %s768, %s757, 16, 16, 1
        $region80: #{unshared_model.2} parent=15 // pred_fallthru
          _
        // Predicated region
        $region81: #{unshared_model.2} parent=15 // pred_check
          %p774 = pneg %p475
        $region82: #{unshared_model.2} parent=15 // pred_check_branch
          %776 = sbr.rel (%p774) target = $region84
        $region83: #{unshared_model.2} parent=15 // pred_region
          %p777 = scmp.lt.s32.totalorder %s39, 1
          %s778 = scalar_select %p777, %s39, 1
          %s779 = smul.addr %s778, 16
          %s780 = smul.addr %s779, 4
          %s781 = scalar_lea.vmem %s16, %s780
        $region84: #{unshared_model.2} parent=15 // pred_fallthru
          _
        // Predicated region
        $region85: #{unshared_model.2} parent=15 // pred_check
          %p782 = pneg %p501
        $region86: #{unshared_model.2} parent=15 // pred_check_branch
          %784 = sbr.rel (%p782) target = $region88
        $region87: #{unshared_model.2} parent=15 // pred_region
          %s785 = sand.u32 %s39, 1
          %s786 = scalar_lea.sflag [#allocation15], %s785
          %s787 = sand.u32 %s491, 1
          %s788 = scalar_lea.vmem [#allocation16], %s787
          %s790 = ssub.s32 16, 16
          %791 = vsyncadd %s786, %s790
          %s792 = smul.addr %s39, 16
          %s793 = scalar_lea.hbm %s17, %s792
          %s795 = sshll.u32 %s788, 4
          %s796 = int_to_ptr.vmem [resolvable:$true] %s795
          %798 = dma.hbm_to_vmem [thread:$0]  %s793, 16, %s796, %s786
        $region88: #{unshared_model.2} parent=15 // pred_fallthru
          _
      $region16: #{unshared_model.2} parent=5 // pred_fallthru
        _
      %p799 = scmp.le.s32.totalorder 1, %s39
      %p800 = scmp.lt.s32.totalorder %s39, 3
      %p801 = pnand %p799, %p800
      %p802 = pneg %p801
      // Predicated region
      $region89: #{unshared_model.2} parent=5 // pred_check
        _
      $region90: #{unshared_model.2} parent=5 // pred_check_branch
        %804 = sbr.rel (%p801) target = $region92
      $region91: #{unshared_model.2} parent=5 // pred_region
        %s805 = ssub.s32 %s39, 1
        %s806 = sand.u32 %s104, 1
        %s807 = scalar_lea.sflag [#allocation4], %s806
        %s808 = sand.u32 %s104, 1
        %s809 = scalar_lea.vmem [#allocation3], %s808
        // Predicated region
        $region93: #{unshared_model.2} parent=91 // pred_check
          %p810 = pneg %p117
        $region94: #{unshared_model.2} parent=91 // pred_check_branch
          %812 = sbr.rel (%p810) target = $region96
        $region95: #{unshared_model.2} parent=91 // pred_region
          %813 = dma.done %s807, 16
        $region96: #{unshared_model.2} parent=91 // pred_fallthru
          _
        %s814 = sand.u32 %s44, 1
        %s815 = scalar_lea.sflag [#allocation6], %s814
        %s816 = sand.u32 %s130, 1
        %s817 = scalar_lea.vmem [#allocation5], %s816
        // Predicated region
        $region97: #{unshared_model.2} parent=91 // pred_check
          %p818 = pneg %p143
        $region98: #{unshared_model.2} parent=91 // pred_check_branch
          %820 = sbr.rel (%p818) target = $region100
        $region99: #{unshared_model.2} parent=91 // pred_region
          %821 = dma.done %s815, 16
        $region100: #{unshared_model.2} parent=91 // pred_fallthru
          _
        %s822 = sand.u32 %s44, 1
        %s823 = scalar_lea.sflag [#allocation6], %s822
        %s824 = sand.u32 %s260, 1
        %s825 = smul.addr %s824, 2
        %s826 = scalar_lea.vmem [#allocation7], %s825
        // Predicated region
        $region101: #{unshared_model.2} parent=91 // pred_check
          %p827 = pneg %p273
        $region102: #{unshared_model.2} parent=91 // pred_check_branch
          %829 = sbr.rel (%p827) target = $region104
        $region103: #{unshared_model.2} parent=91 // pred_region
          %830 = dma.done %s823, 32
        $region104: #{unshared_model.2} parent=91 // pred_fallthru
          _
        %s831 = sand.u32 %s44, 1
        %s832 = scalar_lea.sflag [#allocation9], %s831
        %s833 = sand.u32 %s286, 1
        %s834 = smul.addr %s833, 2
        %s835 = scalar_lea.vmem [#allocation8], %s834
        // Predicated region
        $region105: #{unshared_model.2} parent=91 // pred_check
          %p836 = pneg %p299
        $region106: #{unshared_model.2} parent=91 // pred_check_branch
          %838 = sbr.rel (%p836) target = $region108
        $region107: #{unshared_model.2} parent=91 // pred_region
          %839 = dma.done %s832, 32
        $region108: #{unshared_model.2} parent=91 // pred_fallthru
          _
        %s840 = sand.u32 %s44, 1
        %s841 = scalar_lea.sflag [#allocation9], %s840
        %s842 = sand.u32 %s338, 1
        %s843 = smul.addr %s842, 4
        %s844 = scalar_lea.vmem [#allocation10], %s843
        // Predicated region
        $region109: #{unshared_model.2} parent=91 // pred_check
          %p845 = pneg %p351
        $region110: #{unshared_model.2} parent=91 // pred_check_branch
          %847 = sbr.rel (%p845) target = $region112
        $region111: #{unshared_model.2} parent=91 // pred_region
          %848 = dma.done %s841, 64
        $region112: #{unshared_model.2} parent=91 // pred_fallthru
          _
        %s849 = sand.u32 %s44, 1
        %s850 = scalar_lea.sflag [#allocation12], %s849
        %s851 = sand.u32 %s390, 1
        %s852 = smul.addr %s851, 2
        %s853 = scalar_lea.vmem [#allocation11], %s852
        // Predicated region
        $region113: #{unshared_model.2} parent=91 // pred_check
          %p854 = pneg %p403
        $region114: #{unshared_model.2} parent=91 // pred_check_branch
          %856 = sbr.rel (%p854) target = $region116
        $region115: #{unshared_model.2} parent=91 // pred_region
          %857 = dma.done %s850, 32
        $region116: #{unshared_model.2} parent=91 // pred_fallthru
          _
        %s858 = sand.u32 %s44, 1
        %s859 = scalar_lea.sflag [#allocation12], %s858
        %s860 = sand.u32 %s416, 1
        %s861 = smul.addr %s860, 2
        %s862 = scalar_lea.vmem [#allocation13], %s861
        // Predicated region
        $region117: #{unshared_model.2} parent=91 // pred_check
          %p863 = pneg %p429
        $region118: #{unshared_model.2} parent=91 // pred_check_branch
          %865 = sbr.rel (%p863) target = $region120
        $region119: #{unshared_model.2} parent=91 // pred_region
          %866 = dma.done %s859, 32
        $region120: #{unshared_model.2} parent=91 // pred_fallthru
          _
        %s867 = sand.u32 %s44, 1
        %s868 = scalar_lea.sflag [#allocation15], %s867
        %s869 = sand.u32 %s442, 1
        %s870 = smul.addr %s869, 2
        %s871 = scalar_lea.vmem [#allocation14], %s870
        // Predicated region
        $region121: #{unshared_model.2} parent=91 // pred_check
          %p872 = pneg %p455
        $region122: #{unshared_model.2} parent=91 // pred_check_branch
          %874 = sbr.rel (%p872) target = $region124
        $region123: #{unshared_model.2} parent=91 // pred_region
          %875 = dma.done %s868, 32
        $region124: #{unshared_model.2} parent=91 // pred_fallthru
          _
        %s876 = sand.u32 %s44, 1
        %s877 = scalar_lea.sflag [#allocation15], %s876
        %s878 = sand.u32 %s494, 1
        %s879 = scalar_lea.vmem [#allocation16], %s878
        // Predicated region
        $region125: #{unshared_model.2} parent=91 // pred_check
          %p880 = pneg %p507
        $region126: #{unshared_model.2} parent=91 // pred_check_branch
          %882 = sbr.rel (%p880) target = $region128
        $region127: #{unshared_model.2} parent=91 // pred_region
          %883 = dma.done %s877, 16
        $region128: #{unshared_model.2} parent=91 // pred_fallthru
          _
        %p884 = scmp.lt.s32.totalorder %s44, 1
        %s885 = scalar_select %p884, %s44, 1
        %s886 = smul.addr %s885, 4
        %s887 = smul.addr %s886, 8
        %s888 = scalar_lea.vmem %s0, %s887
        %p889 = pneg %p65
        %p890 = pneg %p62
        %p891 = scmp.lt.s32.totalorder %s44, 1
        %s892 = scalar_select %p891, %s44, 1
        %s893 = smul.addr %s892, 4
        %s894 = smul.addr %s893, 8
        %s895 = scalar_lea.vmem %s1, %s894
        %p896 = pneg %p91
        %p897 = pneg %p88
        %s898 = sand.u32 %s104, 1
        %s899 = scalar_lea.sflag [#allocation4], %s898
        %s900 = sand.u32 %s104, 1
        %s901 = scalar_lea.vmem [#allocation3], %s900
        %p902 = pneg %p117
        %p903 = pneg %p114
        %s904 = sand.u32 %s44, 1
        %s905 = scalar_lea.sflag [#allocation6], %s904
        %s906 = sand.u32 %s130, 1
        %s907 = scalar_lea.vmem [#allocation5], %s906
        %p908 = pneg %p143
        %p909 = pneg %p140
        %p910 = scmp.lt.s32.totalorder %s44, 1
        %s911 = scalar_select %p910, %s44, 1
        %s912 = smul.addr %s911, 96
        %s913 = smul.addr %s912, 4
        %s914 = scalar_lea.vmem %s4, %s913
        %p915 = pneg %p169
        %p916 = pneg %p166
        %p917 = scmp.lt.s32.totalorder %s44, 1
        %s918 = scalar_select %p917, %s44, 1
        %s919 = smul.addr %s918, 6
        %s920 = scalar_lea.vmem %s5, %s919
        %p921 = pneg %p195
        %p922 = pneg %p192
        %p923 = scmp.lt.s32.totalorder %s44, 1
        %s924 = scalar_select %p923, %s44, 1
        %s925 = smul.addr %s924, 32
        %s926 = smul.addr %s925, 4
        %s927 = scalar_lea.vmem %s6, %s926
        %p928 = pneg %p221
        %p929 = pneg %p218
        %p930 = scmp.lt.s32.totalorder %s44, 1
        %s931 = scalar_select %p930, %s44, 1
        %s932 = smul.addr %s931, 2
        %s933 = scalar_lea.vmem %s7, %s932
        %p934 = pneg %p247
        %p935 = pneg %p244
        %s936 = sand.u32 %s44, 1
        %s937 = scalar_lea.sflag [#allocation6], %s936
        %s938 = sand.u32 %s260, 1
        %s939 = smul.addr %s938, 2
        %s940 = scalar_lea.vmem [#allocation7], %s939
        %p941 = pneg %p273
        %p942 = pneg %p270
        %s943 = sand.u32 %s44, 1
        %s944 = scalar_lea.sflag [#allocation9], %s943
        %s945 = sand.u32 %s286, 1
        %s946 = smul.addr %s945, 2
        %s947 = scalar_lea.vmem [#allocation8], %s946
        %p948 = pneg %p299
        %p949 = pneg %p296
        %p950 = scmp.lt.s32.totalorder %s44, 1
        %s951 = scalar_select %p950, %s44, 1
        %s952 = smul.addr %s951, 64
        %s953 = smul.addr %s952, 4
        %s954 = scalar_lea.vmem %s10, %s953
        %p955 = pneg %p325
        %p956 = pneg %p322
        %s957 = sand.u32 %s44, 1
        %s958 = scalar_lea.sflag [#allocation9], %s957
        %s959 = sand.u32 %s338, 1
        %s960 = smul.addr %s959, 4
        %s961 = scalar_lea.vmem [#allocation10], %s960
        %p962 = pneg %p351
        %p963 = pneg %p348
        %p964 = scmp.lt.s32.totalorder %s44, 1
        %s965 = scalar_select %p964, %s44, 1
        %s966 = smul.addr %s965, 64
        %s967 = smul.addr %s966, 4
        %s968 = scalar_lea.vmem %s12, %s967
        %p969 = pneg %p377
        %p970 = pneg %p374
        %s971 = sand.u32 %s44, 1
        %s972 = scalar_lea.sflag [#allocation12], %s971
        %s973 = sand.u32 %s390, 1
        %s974 = smul.addr %s973, 2
        %s975 = scalar_lea.vmem [#allocation11], %s974
        %p976 = pneg %p403
        %p977 = pneg %p400
        %s978 = sand.u32 %s44, 1
        %s979 = scalar_lea.sflag [#allocation12], %s978
        %s980 = sand.u32 %s416, 1
        %s981 = smul.addr %s980, 2
        %s982 = scalar_lea.vmem [#allocation13], %s981
        %p983 = pneg %p429
        %p984 = pneg %p426
        %s985 = sand.u32 %s44, 1
        %s986 = scalar_lea.sflag [#allocation15], %s985
        %s987 = sand.u32 %s442, 1
        %s988 = smul.addr %s987, 2
        %s989 = scalar_lea.vmem [#allocation14], %s988
        %p990 = pneg %p455
        %p991 = pneg %p452
        %p992 = scmp.lt.s32.totalorder %s44, 1
        %s993 = scalar_select %p992, %s44, 1
        %s994 = smul.addr %s993, 16
        %s995 = smul.addr %s994, 4
        %s996 = scalar_lea.vmem %s16, %s995
        %p997 = pneg %p481
        %p998 = pneg %p478
        %s999 = sand.u32 %s44, 1
        %s1000 = scalar_lea.sflag [#allocation15], %s999
        %s1001 = sand.u32 %s494, 1
        %s1002 = scalar_lea.vmem [#allocation16], %s1001
        %p1003 = pneg %p507
        %p1004 = pneg %p504
        %p1005 = pneg %p533
        %p1006 = pneg %p530
        %p1007 = scmp.lt.s32.totalorder %s44, 1
        %s1008 = scalar_select %p1007, %s44, 1
        %s1009 = smul.addr %s1008, 2
        %s1010 = scalar_lea.vmem %s18, %s1009
        %p1011 = scmp.lt.s32.totalorder %s44, 1
        %s1012 = scalar_select %p1011, %s44, 1
        %s1013 = smul.addr %s1012, 4
        %s1014 = smul.addr %s1013, 8
        %s1015 = scalar_lea.vmem %s0, %s1014
        %p1016 = scmp.lt.s32.totalorder %s44, 1
        %s1017 = scalar_select %p1016, %s44, 1
        %s1018 = smul.addr %s1017, 4
        %s1019 = smul.addr %s1018, 8
        %s1020 = scalar_lea.vmem %s1, %s1019
        %p1021 = scmp.lt.s32.totalorder %s44, 1
        %s1022 = scalar_select %p1021, %s44, 1
        %s1023 = smul.addr %s1022, 96
        %s1024 = smul.addr %s1023, 4
        %s1025 = scalar_lea.vmem %s4, %s1024
        %p1026 = scmp.lt.s32.totalorder %s44, 1
        %s1027 = scalar_select %p1026, %s44, 1
        %s1028 = smul.addr %s1027, 6
        %s1029 = scalar_lea.vmem %s5, %s1028
        %p1030 = scmp.lt.s32.totalorder %s44, 1
        %s1031 = scalar_select %p1030, %s44, 1
        %s1032 = smul.addr %s1031, 32
        %s1033 = smul.addr %s1032, 4
        %s1034 = scalar_lea.vmem %s6, %s1033
        %p1035 = scmp.lt.s32.totalorder %s44, 1
        %s1036 = scalar_select %p1035, %s44, 1
        %s1037 = smul.addr %s1036, 2
        %s1038 = scalar_lea.vmem %s7, %s1037
        %p1039 = scmp.lt.s32.totalorder %s44, 1
        %s1040 = scalar_select %p1039, %s44, 1
        %s1041 = smul.addr %s1040, 64
        %s1042 = smul.addr %s1041, 4
        %s1043 = scalar_lea.vmem %s10, %s1042
        %p1044 = scmp.lt.s32.totalorder %s44, 1
        %s1045 = scalar_select %p1044, %s44, 1
        %s1046 = smul.addr %s1045, 64
        %s1047 = smul.addr %s1046, 4
        %s1048 = scalar_lea.vmem %s12, %s1047
        %p1049 = scmp.lt.s32.totalorder %s44, 1
        %s1050 = scalar_select %p1049, %s44, 1
        %s1051 = smul.addr %s1050, 16
        %s1052 = smul.addr %s1051, 4
        %s1053 = scalar_lea.vmem %s16, %s1052
        %p1054 = scmp.lt.s32.totalorder %s44, 1
        %s1055 = scalar_select %p1054, %s44, 1
        %s1056 = smul.addr %s1055, 2
        %s1057 = scalar_lea.vmem %s18, %s1056
        %v1059 = vld [vmem:[%s1020] sm:$0xff]
        %v1060 = vld [vmem:[%s1020 + $0x8] sm:$0xff]
        %v1061 = vld [vmem:[%s1020 + $0x10] sm:$0xff]
        %v1062 = vld [vmem:[%s1020 + $0x18] sm:$0xff]
        %v1063 = vld [vmem:[%s1015] sm:$0xff]
        %v1064 = vld [vmem:[%s1015 + $0x8] sm:$0xff]
        %v1065 = vld [vmem:[%s1015 + $0x10] sm:$0xff]
        %v1066 = vld [vmem:[%s1015 + $0x18] sm:$0xff]
        %v1067 = vld [vmem:[%s809] sm:$0x1]
        %v1068 = vld [vmem:[%s817] sm:$0x1]
        %1069 = vadd.xlane.f32.xlu0 %v1063
        %v1070 = vpop.xlane.xlu0 %1069
        %1071 = vadd.xlane.f32.xlu0 %v1064
        %v1072 = vpop.xlane.xlu0 %1071
        %1073 = vadd.xlane.f32.xlu0 %v1065
        %v1074 = vpop.xlane.xlu0 %1073
        %1075 = vadd.xlane.f32.xlu0 %v1066
        %v1076 = vpop.xlane.xlu0 %1075
        %v1077 = vrcp.pop 128.0
        %v1078 = vmul.f32 %v1070, %v1077
        %v1079 = vmul.f32 %v1072, %v1077
        %v1080 = vmul.f32 %v1074, %v1077
        %v1081 = vmul.f32 %v1076, %v1077
        %v1082 = vsub.f32 %v1063, %v1078
        %v1083 = vsub.f32 %v1064, %v1079
        %v1084 = vsub.f32 %v1065, %v1080
        %v1085 = vsub.f32 %v1066, %v1081
        %v1086 = vmul.f32 %v1082, %v1082
        %v1087 = vmul.f32 %v1083, %v1083
        %v1088 = vmul.f32 %v1084, %v1084
        %v1089 = vmul.f32 %v1085, %v1085
        %1090 = vadd.xlane.f32.xlu0 %v1086
        %v1091 = vpop.xlane.xlu0 %1090
        %1092 = vadd.xlane.f32.xlu0 %v1087
        %v1093 = vpop.xlane.xlu0 %1092
        %1094 = vadd.xlane.f32.xlu0 %v1088
        %v1095 = vpop.xlane.xlu0 %1094
        %1096 = vadd.xlane.f32.xlu0 %v1089
        %v1097 = vpop.xlane.xlu0 %1096
        %v1098 = vmul.f32 %v1091, %v1077
        %v1099 = vmul.f32 %v1093, %v1077
        %v1100 = vmul.f32 %v1095, %v1077
        %v1101 = vmul.f32 %v1097, %v1077
        %v1102 = vadd.f32 %v1098, 1e-12
        %v1103 = vadd.f32 %v1099, 1e-12
        %v1104 = vadd.f32 %v1100, 1e-12
        %v1105 = vadd.f32 %v1101, 1e-12
        %v1106 = vrsqrt.pop %v1102
        %v1107 = vrsqrt.pop %v1103
        %v1108 = vrsqrt.pop %v1104
        %v1109 = vrsqrt.pop %v1105
        %v1110 = vmul.f32 %v1082, %v1106
        %v1111 = vmul.f32 %v1083, %v1107
        %v1112 = vmul.f32 %v1084, %v1108
        %v1113 = vmul.f32 %v1085, %v1109
        %v1115 = vlaneseq
        %v1116 = vshrl.u32 %v1115, 7
        %v1117 = vsub.s32 0, %v1116
        %v1118 = vrot.slane %v1067, %v1117
        %v1120 = vmul.f32 %v1110, %v1118
        %v1121 = vmul.f32 %v1111, %v1118
        %v1122 = vmul.f32 %v1112, %v1118
        %v1123 = vmul.f32 %v1113, %v1118
        %v1125 = vlaneseq
        %v1126 = vshrl.u32 %v1125, 7
        %v1127 = vsub.s32 0, %v1126
        %v1128 = vrot.slane %v1068, %v1127
        %v1130 = vadd.f32 %v1120, %v1128
        %v1131 = vadd.f32 %v1121, %v1128
        %v1132 = vadd.f32 %v1122, %v1128
        %v1133 = vadd.f32 %v1123, %v1128
        %v1134 = vpack.c.bf16 %v1131, %v1130
        %v1135 = vpack.c.bf16 %v1133, %v1132
        %v1136 = vld [vmem:[%s1025] sm:$0xff]
        %v1137 = vld [vmem:[%s1025 + $0x8] sm:$0xf]
        %v1138 = vld [vmem:[%s1025 + $0xc] sm:$0xff]
        %v1139 = vld [vmem:[%s1025 + $0x14] sm:$0xf]
        %v1140 = vld [vmem:[%s1025 + $0x18] sm:$0xff]
        %v1141 = vld [vmem:[%s1025 + $0x20] sm:$0xf]
        %v1142 = vld [vmem:[%s1025 + $0x24] sm:$0xff]
        %v1143 = vld [vmem:[%s1025 + $0x2c] sm:$0xf]
        %v1144 = vld [vmem:[%s1025 + $0x30] sm:$0xff]
        %v1145 = vld [vmem:[%s1025 + $0x38] sm:$0xf]
        %v1146 = vld [vmem:[%s1025 + $0x3c] sm:$0xff]
        %v1147 = vld [vmem:[%s1025 + $0x44] sm:$0xf]
        %v1148 = vld [vmem:[%s1025 + $0x48] sm:$0xff]
        %v1149 = vld [vmem:[%s1025 + $0x50] sm:$0xf]
        %v1150 = vld [vmem:[%s1025 + $0x54] sm:$0xff]
        %v1151 = vld [vmem:[%s1025 + $0x5c] sm:$0xf]
        %v1152 = vld [vmem:[%s1025 + $0x60] sm:$0xff]
        %v1153 = vld [vmem:[%s1025 + $0x68] sm:$0xf]
        %v1154 = vld [vmem:[%s1025 + $0x6c] sm:$0xff]
        %v1155 = vld [vmem:[%s1025 + $0x74] sm:$0xf]
        %v1156 = vld [vmem:[%s1025 + $0x78] sm:$0xff]
        %v1157 = vld [vmem:[%s1025 + $0x80] sm:$0xf]
        %v1158 = vld [vmem:[%s1025 + $0x84] sm:$0xff]
        %v1159 = vld [vmem:[%s1025 + $0x8c] sm:$0xf]
        %v1160 = vld [vmem:[%s1025 + $0x90] sm:$0xff]
        %v1161 = vld [vmem:[%s1025 + $0x98] sm:$0xf]
        %v1162 = vld [vmem:[%s1025 + $0x9c] sm:$0xff]
        %v1163 = vld [vmem:[%s1025 + $0xa4] sm:$0xf]
        %v1164 = vld [vmem:[%s1025 + $0xa8] sm:$0xff]
        %v1165 = vld [vmem:[%s1025 + $0xb0] sm:$0xf]
        %v1166 = vld [vmem:[%s1025 + $0xb4] sm:$0xff]
        %v1167 = vld [vmem:[%s1025 + $0xbc] sm:$0xf]
        %v1168 = vld [vmem:[%s1029] sm:$0x7]
        %v1170 = vlaneseq
        %v1171 = vshrl.u32 %v1170, 7
        %v1172 = vsub.s32 0, %v1171
        %v1173 = vrot.slane %v1168, %v1172
        %v1174 = vlaneseq
        %v1175 = vshrl.u32 %v1174, 7
        %v1176 = vsub.s32 1, %v1175
        %v1177 = vrot.slane %v1168, %v1176
        %v1178 = vlaneseq
        %v1179 = vshrl.u32 %v1178, 7
        %v1180 = vsub.s32 2, %v1179
        %v1181 = vrot.slane %v1168, %v1180
        %v1217 = vunpack.c.l.b16 %v1136
        %v1218 = vunpack.c.h.b16 %v1136
        %v1219 = vunpack.c.l.b16 %v1137
        %v1220 = vunpack.c.l.b16 %v1138
        %v1221 = vunpack.c.h.b16 %v1138
        %v1222 = vunpack.c.l.b16 %v1139
        %v1223 = vunpack.c.l.b16 %v1140
        %v1224 = vunpack.c.h.b16 %v1140
        %v1225 = vunpack.c.l.b16 %v1141
        %v1226 = vunpack.c.l.b16 %v1142
        %v1227 = vunpack.c.h.b16 %v1142
        %v1228 = vunpack.c.l.b16 %v1143
        %v1229 = vunpack.c.l.b16 %v1144
        %v1230 = vunpack.c.h.b16 %v1144
        %v1231 = vunpack.c.l.b16 %v1145
        %v1232 = vunpack.c.l.b16 %v1146
        %v1233 = vunpack.c.h.b16 %v1146
        %v1234 = vunpack.c.l.b16 %v1147
        %v1235 = vunpack.c.l.b16 %v1148
        %v1236 = vunpack.c.h.b16 %v1148
        %v1237 = vunpack.c.l.b16 %v1149
        %v1238 = vunpack.c.l.b16 %v1150
        %v1239 = vunpack.c.h.b16 %v1150
        %v1240 = vunpack.c.l.b16 %v1151
        %v1241 = vunpack.c.l.b16 %v1152
        %v1242 = vunpack.c.h.b16 %v1152
        %v1243 = vunpack.c.l.b16 %v1153
        %v1244 = vunpack.c.l.b16 %v1154
        %v1245 = vunpack.c.h.b16 %v1154
        %v1246 = vunpack.c.l.b16 %v1155
        %v1247 = vunpack.c.l.b16 %v1156
        %v1248 = vunpack.c.h.b16 %v1156
        %v1249 = vunpack.c.l.b16 %v1157
        %v1250 = vunpack.c.l.b16 %v1158
        %v1251 = vunpack.c.h.b16 %v1158
        %v1252 = vunpack.c.l.b16 %v1159
        %v1253 = vunpack.c.l.b16 %v1160
        %v1254 = vunpack.c.h.b16 %v1160
        %v1255 = vunpack.c.l.b16 %v1161
        %v1256 = vunpack.c.l.b16 %v1162
        %v1257 = vunpack.c.h.b16 %v1162
        %v1258 = vunpack.c.l.b16 %v1163
        %v1259 = vunpack.c.l.b16 %v1164
        %v1260 = vunpack.c.h.b16 %v1164
        %v1261 = vunpack.c.l.b16 %v1165
        %v1262 = vunpack.c.l.b16 %v1166
        %v1263 = vunpack.c.h.b16 %v1166
        %v1264 = vunpack.c.l.b16 %v1167
        %v1265 = vpack.c.b16 %v1220, %v1217
        %v1266 = vpack.c.b16 %v1221, %v1218
        %v1267 = vpack.c.b16 %v1222, %v1219
        %v1268 = vpack.c.b16 %v1226, %v1223
        %v1269 = vpack.c.b16 %v1227, %v1224
        %v1270 = vpack.c.b16 %v1228, %v1225
        %v1271 = vpack.c.b16 %v1232, %v1229
        %v1272 = vpack.c.b16 %v1233, %v1230
        %v1273 = vpack.c.b16 %v1234, %v1231
        %v1274 = vpack.c.b16 %v1238, %v1235
        %v1275 = vpack.c.b16 %v1239, %v1236
        %v1276 = vpack.c.b16 %v1240, %v1237
        %v1277 = vpack.c.b16 %v1244, %v1241
        %v1278 = vpack.c.b16 %v1245, %v1242
        %v1279 = vpack.c.b16 %v1246, %v1243
        %v1280 = vpack.c.b16 %v1250, %v1247
        %v1281 = vpack.c.b16 %v1251, %v1248
        %v1282 = vpack.c.b16 %v1252, %v1249
        %v1283 = vpack.c.b16 %v1256, %v1253
        %v1284 = vpack.c.b16 %v1257, %v1254
        %v1285 = vpack.c.b16 %v1258, %v1255
        %v1286 = vpack.c.b16 %v1262, %v1259
        %v1287 = vpack.c.b16 %v1263, %v1260
        %v1288 = vpack.c.b16 %v1264, %v1261
        %1313 = vmatprep.subr.bf16.mxu0 %v1266
        %1314 = vmatpush1.bf16.msra.mxu0 %v1265
        %1315 = vmatprep.subr.bf16.mxu0 %v1269
        %1316 = vmatpush1.bf16.msra.mxu0 %v1268
        %1317 = vmatprep.subr.bf16.mxu0 %v1272
        %1318 = vmatpush1.bf16.msra.mxu0 %v1271
        %1319 = vmatprep.subr.bf16.mxu0 %v1275
        %1320 = vmatpush1.bf16.msra.mxu0 %v1274
        %1321 = vmatprep.subr.bf16.mxu0 %v1278
        %1322 = vmatpush1.bf16.msra.mxu0 %v1277
        %1323 = vmatprep.subr.bf16.mxu0 %v1281
        %1324 = vmatpush1.bf16.msra.mxu0 %v1280
        %1325 = vmatprep.subr.bf16.mxu0 %v1284
        %1326 = vmatpush1.bf16.msra.mxu0 %v1283
        %1327 = vmatprep.subr.bf16.mxu0 %v1287
        %1328 = vmatpush1.bf16.msra.mxu0 %v1286
        %1329 = vmatprep.subr.bf16.mxu0 0
        %1330 = vmatpush1.bf16.msra.mxu0 0
        %1331 = vmatprep.subr.bf16.mxu0 0
        %1332 = vmatpush1.bf16.msra.mxu0 0
        %1333 = vmatprep.subr.bf16.mxu0 0
        %1334 = vmatpush1.bf16.msra.mxu0 0
        %1335 = vmatprep.subr.bf16.mxu0 0
        %1336 = vmatpush1.bf16.msra.mxu0 0
        %1337 = vmatprep.subr.bf16.mxu0 0
        %1338 = vmatpush1.bf16.msra.mxu0 0
        %1339 = vmatprep.subr.bf16.mxu0 0
        %1340 = vmatpush1.bf16.msra.mxu0 0
        %1341 = vmatprep.subr.bf16.mxu0 0
        %1342 = vmatpush1.bf16.msra.mxu0 0
        %1343 = vmatprep.subr.bf16.mxu0 0
        %1344 = vmatpush1.bf16.msra.mxu0 0
        %1345 = vmatprep.mubr.bf16.mxu0 0
        %1346 = vmatmul.mubr.bf16.gmra.mrb[0].mxu0 %v1134
        %v1347 = vpop.f32.mrb[0].mxu0
        %v1348 = vadd.f32 %v1173, %v1347
        %v1349 = vpop.f32.mrb[0].mxu0
        %v1350 = vadd.f32 %v1177, %v1349
        %v1351 = vpop.f32.mrb[0].mxu0
        %v1352 = vadd.f32 %v1173, %v1351
        %v1353 = vpop.f32.mrb[0].mxu0
        %v1354 = vadd.f32 %v1177, %v1353
        %1355 = vmatprep.mubr.bf16.mxu0 0
        %1356 = vmatmul.mubr.bf16.gmra.mrb[0].mxu0 %v1135
        %v1357 = vpop.f32.mrb[0].mxu0
        %v1358 = vadd.f32 %v1173, %v1357
        %v1359 = vpop.f32.mrb[0].mxu0
        %v1360 = vadd.f32 %v1177, %v1359
        %v1361 = vpop.f32.mrb[0].mxu0
        %v1362 = vadd.f32 %v1173, %v1361
        %v1363 = vpop.f32.mrb[0].mxu0
        %v1364 = vadd.f32 %v1177, %v1363
        %1365 = vdwg.mxu0
        %1366 = vmatprep.subr.bf16.mxu0 0
        %1367 = vmatpush1.bf16.msra.mxu0 %v1267
        %1368 = vmatprep.subr.bf16.mxu0 0
        %1369 = vmatpush1.bf16.msra.mxu0 %v1270
        %1370 = vmatprep.subr.bf16.mxu0 0
        %1371 = vmatpush1.bf16.msra.mxu0 %v1273
        %1372 = vmatprep.subr.bf16.mxu0 0
        %1373 = vmatpush1.bf16.msra.mxu0 %v1276
        %1374 = vmatprep.subr.bf16.mxu0 0
        %1375 = vmatpush1.bf16.msra.mxu0 %v1279
        %1376 = vmatprep.subr.bf16.mxu0 0
        %1377 = vmatpush1.bf16.msra.mxu0 %v1282
        %1378 = vmatprep.subr.bf16.mxu0 0
        %1379 = vmatpush1.bf16.msra.mxu0 %v1285
        %1380 = vmatprep.subr.bf16.mxu0 0
        %1381 = vmatpush1.bf16.msra.mxu0 %v1288
        %1382 = vmatprep.subr.bf16.mxu0 0
        %1383 = vmatpush1.bf16.msra.mxu0 0
        %1384 = vmatprep.subr.bf16.mxu0 0
        %1385 = vmatpush1.bf16.msra.mxu0 0
        %1386 = vmatprep.subr.bf16.mxu0 0
        %1387 = vmatpush1.bf16.msra.mxu0 0
        %1388 = vmatprep.subr.bf16.mxu0 0
        %1389 = vmatpush1.bf16.msra.mxu0 0
        %1390 = vmatprep.subr.bf16.mxu0 0
        %1391 = vmatpush1.bf16.msra.mxu0 0
        %1392 = vmatprep.subr.bf16.mxu0 0
        %1393 = vmatpush1.bf16.msra.mxu0 0
        %1394 = vmatprep.subr.bf16.mxu0 0
        %1395 = vmatpush1.bf16.msra.mxu0 0
        %1396 = vmatprep.subr.bf16.mxu0 0
        %1397 = vmatpush1.bf16.msra.mxu0 0
        %1398 = vmatprep.mubr.bf16.mxu0 0
        %1399 = vmatmul.mubr.bf16.gmra.mrb[0].mxu0 %v1134
        %v1400 = vpop.f32.mrb[0].mxu0
        %v1401 = vadd.f32 %v1181, %v1400
        %v1402 = vpop.f32.mrb[0].mxu0
        %v1403 = vpop.f32.mrb[0].mxu0
        %v1404 = vadd.f32 %v1181, %v1403
        %v1405 = vpop.f32.mrb[0].mxu0
        %1406 = vmatprep.mubr.bf16.mxu0 0
        %1407 = vmatmul.mubr.bf16.gmra.mrb[0].mxu0 %v1135
        %v1408 = vpop.f32.mrb[0].mxu0
        %v1409 = vadd.f32 %v1181, %v1408
        %v1410 = vpop.f32.mrb[0].mxu0
        %v1411 = vpop.f32.mrb[0].mxu0
        %v1412 = vadd.f32 %v1181, %v1411
        %v1413 = vpop.f32.mrb[0].mxu0
        %1414 = vdwg.mxu0
        %v1415 = vpack.c.bf16 %v1352, %v1348
        %v1416 = vpack.c.bf16 %v1362, %v1358
        %v1417 = vpack.c.bf16 %v1354, %v1350
        %v1418 = vpack.c.bf16 %v1364, %v1360
        %v1419 = vpack.c.bf16 %v1404, %v1401
        %v1420 = vpack.c.bf16 %v1412, %v1409
        %vm1421 = vcmask 523264
        %v1423 = vsel %vm1421, %v1415, 0
        %v1426 = vsel %vm1421, %v1416, 0
        %v1429 = vsel %vm1421, %v1417, 0
        %v1432 = vsel %vm1421, %v1418, 0
        %1434 = vmatprep.subr.bf16.mxu0 0
        %1435 = vmatpush1.bf16.xpose.msra.mxu0 %v1429
        %1436 = vmatprep.subr.bf16.mxu0 0
        %1437 = vmatpush1.bf16.xpose.msra.mxu0 %v1432
        %1438 = vmatprep.subr.bf16.mxu0 0
        %1439 = vmatpush1.bf16.xpose.msra.mxu0 0
        %1440 = vmatprep.subr.bf16.mxu0 0
        %1441 = vmatpush1.bf16.xpose.msra.mxu0 0
        %1442 = vmatprep.subr.bf16.mxu0 0
        %1443 = vmatpush1.bf16.xpose.msra.mxu0 0
        %1444 = vmatprep.subr.bf16.mxu0 0
        %1445 = vmatpush1.bf16.xpose.msra.mxu0 0
        %1446 = vmatprep.subr.bf16.mxu0 0
        %1447 = vmatpush1.bf16.xpose.msra.mxu0 0
        %1448 = vmatprep.subr.bf16.mxu0 0
        %1449 = vmatpush1.bf16.xpose.msra.mxu0 0
        %1450 = vmatprep.subr.bf16.mxu0 0
        %1451 = vmatpush1.bf16.xpose.msra.mxu0 0
        %1452 = vmatprep.subr.bf16.mxu0 0
        %1453 = vmatpush1.bf16.xpose.msra.mxu0 0
        %1454 = vmatprep.subr.bf16.mxu0 0
        %1455 = vmatpush1.bf16.xpose.msra.mxu0 0
        %1456 = vmatprep.subr.bf16.mxu0 0
        %1457 = vmatpush1.bf16.xpose.msra.mxu0 0
        %1458 = vmatprep.subr.bf16.mxu0 0
        %1459 = vmatpush1.bf16.xpose.msra.mxu0 0
        %1460 = vmatprep.subr.bf16.mxu0 0
        %1461 = vmatpush1.bf16.xpose.msra.mxu0 0
        %1462 = vmatprep.subr.bf16.mxu0 0
        %1463 = vmatpush1.bf16.xpose.msra.mxu0 0
        %1464 = vmatprep.subr.bf16.mxu0 0
        %1465 = vmatpush1.bf16.xpose.msra.mxu0 0
        %1466 = vmatprep.mubr.bf16.mxu0 0
        %1467 = vmatmul.mubr.bf16.gmra.mrb[0].mxu0 %v1423
        %v1468 = vpop.f32.mrb[0].mxu0
        %v1469 = vadd.f32 0.0, %v1468
        %v1470 = vpop.f32.mrb[0].mxu0
        %v1471 = vpop.f32.mrb[0].mxu0
        %v1472 = vadd.f32 0.0, %v1471
        %v1473 = vpop.f32.mrb[0].mxu0
        %1474 = vmatprep.mubr.bf16.mxu0 0
        %1475 = vmatmul.mubr.bf16.gmra.mrb[0].mxu0 %v1426
        %v1476 = vpop.f32.mrb[0].mxu0
        %v1477 = vadd.f32 0.0, %v1476
        %v1478 = vpop.f32.mrb[0].mxu0
        %v1479 = vpop.f32.mrb[0].mxu0
        %v1480 = vadd.f32 0.0, %v1479
        %v1481 = vpop.f32.mrb[0].mxu0
        %1482 = vdwg.mxu0
        %v1483 = vmul.f32 %v1469, 0.125
        %v1484 = vmul.f32 %v1472, 0.125
        %v1485 = vmul.f32 %v1477, 0.125
        %v1486 = vmul.f32 %v1480, 0.125
        %v1487 = vadd.f32 %v1483, %v1059
        %v1488 = vadd.f32 %v1484, %v1060
        %v1489 = vadd.f32 %v1485, %v1061
        %v1490 = vadd.f32 %v1486, %v1062
        %vm1491 = vcmask 261120
        %v1492 = vsel %vm1491, %v1487, -inf
        %1493 = vmax.xlane.f32.xlu0 %v1492
        %v1494 = vpop.xlane.xlu0 %1493
        %v1495 = vsel %vm1491, %v1488, -inf
        %1496 = vmax.xlane.f32.xlu0 %v1495
        %v1497 = vpop.xlane.xlu0 %1496
        %v1498 = vsel %vm1491, %v1489, -inf
        %1499 = vmax.xlane.f32.xlu0 %v1498
        %v1500 = vpop.xlane.xlu0 %1499
        %v1501 = vsel %vm1491, %v1490, -inf
        %1502 = vmax.xlane.f32.xlu0 %v1501
        %v1503 = vpop.xlane.xlu0 %1502
        %v1504 = vsub.f32 %v1487, %v1494
        %v1505 = vsub.f32 %v1488, %v1497
        %v1506 = vsub.f32 %v1489, %v1500
        %v1507 = vsub.f32 %v1490, %v1503
        %v1508 = vmul.f32 %v1504, 1.442695
        %v1509 = vpow.pop %v1508
        %v1510 = vmul.f32 %v1505, 1.442695
        %v1511 = vpow.pop %v1510
        %v1512 = vmul.f32 %v1506, 1.442695
        %v1513 = vpow.pop %v1512
        %v1514 = vmul.f32 %v1507, 1.442695
        %v1515 = vpow.pop %v1514
        %v1516 = vsel %vm1491, %v1509, 0.0
        %1517 = vadd.xlane.f32.xlu0 %v1516
        %v1518 = vpop.xlane.xlu0 %1517
        %v1519 = vsel %vm1491, %v1511, 0.0
        %1520 = vadd.xlane.f32.xlu0 %v1519
        %v1521 = vpop.xlane.xlu0 %1520
        %v1522 = vsel %vm1491, %v1513, 0.0
        %1523 = vadd.xlane.f32.xlu0 %v1522
        %v1524 = vpop.xlane.xlu0 %1523
        %v1525 = vsel %vm1491, %v1515, 0.0
        %1526 = vadd.xlane.f32.xlu0 %v1525
        %v1527 = vpop.xlane.xlu0 %1526
        %v1528 = vrcp.pop %v1518
        %v1529 = vrcp.pop %v1521
        %v1530 = vrcp.pop %v1524
        %v1531 = vrcp.pop %v1527
        %v1532 = vmul.f32 %v1509, %v1528
        %v1533 = vmul.f32 %v1511, %v1529
        %v1534 = vmul.f32 %v1513, %v1530
        %v1535 = vmul.f32 %v1515, %v1531
        %v1536 = vpack.c.bf16 %v1533, %v1532
        %v1537 = vpack.c.bf16 %v1535, %v1534
        %v1539 = vsel %vm1491, %v1536, 0
        %v1542 = vsel %vm1491, %v1537, 0
        %1544 = vmatprep.subr.bf16.mxu0 0
        %1545 = vmatpush1.bf16.msra.mxu0 %v1419
        %1546 = vmatprep.subr.bf16.mxu0 0
        %1547 = vmatpush1.bf16.msra.mxu0 %v1420
        %1548 = vmatprep.subr.bf16.mxu0 0
        %1549 = vmatpush1.bf16.msra.mxu0 0
        %1550 = vmatprep.subr.bf16.mxu0 0
        %1551 = vmatpush1.bf16.msra.mxu0 0
        %1552 = vmatprep.subr.bf16.mxu0 0
        %1553 = vmatpush1.bf16.msra.mxu0 0
        %1554 = vmatprep.subr.bf16.mxu0 0
        %1555 = vmatpush1.bf16.msra.mxu0 0
        %1556 = vmatprep.subr.bf16.mxu0 0
        %1557 = vmatpush1.bf16.msra.mxu0 0
        %1558 = vmatprep.subr.bf16.mxu0 0
        %1559 = vmatpush1.bf16.msra.mxu0 0
        %1560 = vmatprep.subr.bf16.mxu0 0
        %1561 = vmatpush1.bf16.msra.mxu0 0
        %1562 = vmatprep.subr.bf16.mxu0 0
        %1563 = vmatpush1.bf16.msra.mxu0 0
        %1564 = vmatprep.subr.bf16.mxu0 0
        %1565 = vmatpush1.bf16.msra.mxu0 0
        %1566 = vmatprep.subr.bf16.mxu0 0
        %1567 = vmatpush1.bf16.msra.mxu0 0
        %1568 = vmatprep.subr.bf16.mxu0 0
        %1569 = vmatpush1.bf16.msra.mxu0 0
        %1570 = vmatprep.subr.bf16.mxu0 0
        %1571 = vmatpush1.bf16.msra.mxu0 0
        %1572 = vmatprep.subr.bf16.mxu0 0
        %1573 = vmatpush1.bf16.msra.mxu0 0
        %1574 = vmatprep.subr.bf16.mxu0 0
        %1575 = vmatpush1.bf16.msra.mxu0 0
        %1576 = vmatprep.mubr.bf16.mxu0 0
        %1577 = vmatmul.mubr.bf16.gmra.mrb[0].mxu0 %v1539
        %v1578 = vpop.f32.mrb[0].mxu0
        %v1579 = vadd.f32 0.0, %v1578
        %v1580 = vpop.f32.mrb[0].mxu0
        %v1581 = vpop.f32.mrb[0].mxu0
        %v1582 = vadd.f32 0.0, %v1581
        %v1583 = vpop.f32.mrb[0].mxu0
        %1584 = vmatprep.mubr.bf16.mxu0 0
        %1585 = vmatmul.mubr.bf16.gmra.mrb[0].mxu0 %v1542
        %v1586 = vpop.f32.mrb[0].mxu0
        %v1587 = vadd.f32 0.0, %v1586
        %v1588 = vpop.f32.mrb[0].mxu0
        %v1589 = vpop.f32.mrb[0].mxu0
        %v1590 = vadd.f32 0.0, %v1589
        %v1591 = vpop.f32.mrb[0].mxu0
        %1592 = vdwg.mxu0
        %1593 = vst.msk [vmem:[#allocation2] sm:$0xff] %vm1421, %v1579
        %1594 = vst.msk [vmem:[#allocation2 + $0x8] sm:$0xff] %vm1421, %v1582
        %1595 = vst.msk [vmem:[#allocation2 + $0x10] sm:$0xff] %vm1421, %v1587
        %1596 = vst.msk [vmem:[#allocation2 + $0x18] sm:$0xff] %vm1421, %v1590
        %1599 = vrot.lane.b32.xlu0 %v1415, 64
        %v1600 = vpop.permute.xlu0 %1599
        %1601 = vrot.lane.b32.xlu0 %v1416, 64
        %v1602 = vpop.permute.xlu0 %1601
        %1605 = vrot.lane.b32.xlu0 %v1417, 64
        %v1606 = vpop.permute.xlu0 %1605
        %1607 = vrot.lane.b32.xlu0 %v1418, 64
        %v1608 = vpop.permute.xlu0 %1607
        %v1610 = vsel %vm1421, %v1600, 0
        %v1613 = vsel %vm1421, %v1602, 0
        %v1616 = vsel %vm1421, %v1606, 0
        %v1619 = vsel %vm1421, %v1608, 0
        %1621 = vmatprep.subr.bf16.mxu0 0
        %1622 = vmatpush1.bf16.xpose.msra.mxu0 %v1616
        %1623 = vmatprep.subr.bf16.mxu0 0
        %1624 = vmatpush1.bf16.xpose.msra.mxu0 %v1619
        %1625 = vmatprep.subr.bf16.mxu0 0
        %1626 = vmatpush1.bf16.xpose.msra.mxu0 0
        %1627 = vmatprep.subr.bf16.mxu0 0
        %1628 = vmatpush1.bf16.xpose.msra.mxu0 0
        %1629 = vmatprep.subr.bf16.mxu0 0
        %1630 = vmatpush1.bf16.xpose.msra.mxu0 0
        %1631 = vmatprep.subr.bf16.mxu0 0
        %1632 = vmatpush1.bf16.xpose.msra.mxu0 0
        %1633 = vmatprep.subr.bf16.mxu0 0
        %1634 = vmatpush1.bf16.xpose.msra.mxu0 0
        %1635 = vmatprep.subr.bf16.mxu0 0
        %1636 = vmatpush1.bf16.xpose.msra.mxu0 0
        %1637 = vmatprep.subr.bf16.mxu0 0
        %1638 = vmatpush1.bf16.xpose.msra.mxu0 0
        %1639 = vmatprep.subr.bf16.mxu0 0
        %1640 = vmatpush1.bf16.xpose.msra.mxu0 0
        %1641 = vmatprep.subr.bf16.mxu0 0
        %1642 = vmatpush1.bf16.xpose.msra.mxu0 0
        %1643 = vmatprep.subr.bf16.mxu0 0
        %1644 = vmatpush1.bf16.xpose.msra.mxu0 0
        %1645 = vmatprep.subr.bf16.mxu0 0
        %1646 = vmatpush1.bf16.xpose.msra.mxu0 0
        %1647 = vmatprep.subr.bf16.mxu0 0
        %1648 = vmatpush1.bf16.xpose.msra.mxu0 0
        %1649 = vmatprep.subr.bf16.mxu0 0
        %1650 = vmatpush1.bf16.xpose.msra.mxu0 0
        %1651 = vmatprep.subr.bf16.mxu0 0
        %1652 = vmatpush1.bf16.xpose.msra.mxu0 0
        %1653 = vmatprep.mubr.bf16.mxu0 0
        %1654 = vmatmul.mubr.bf16.gmra.mrb[0].mxu0 %v1610
        %v1655 = vpop.f32.mrb[0].mxu0
        %v1656 = vadd.f32 0.0, %v1655
        %v1657 = vpop.f32.mrb[0].mxu0
        %v1658 = vpop.f32.mrb[0].mxu0
        %v1659 = vadd.f32 0.0, %v1658
        %v1660 = vpop.f32.mrb[0].mxu0
        %1661 = vmatprep.mubr.bf16.mxu0 0
        %1662 = vmatmul.mubr.bf16.gmra.mrb[0].mxu0 %v1613
        %v1663 = vpop.f32.mrb[0].mxu0
        %v1664 = vadd.f32 0.0, %v1663
        %v1665 = vpop.f32.mrb[0].mxu0
        %v1666 = vpop.f32.mrb[0].mxu0
        %v1667 = vadd.f32 0.0, %v1666
        %v1668 = vpop.f32.mrb[0].mxu0
        %1669 = vdwg.mxu0
        %v1670 = vmul.f32 %v1656, 0.125
        %v1671 = vmul.f32 %v1659, 0.125
        %v1672 = vmul.f32 %v1664, 0.125
        %v1673 = vmul.f32 %v1667, 0.125
        %v1674 = vadd.f32 %v1670, %v1059
        %v1675 = vadd.f32 %v1671, %v1060
        %v1676 = vadd.f32 %v1672, %v1061
        %v1677 = vadd.f32 %v1673, %v1062
        %v1678 = vsel %vm1491, %v1674, -inf
        %1679 = vmax.xlane.f32.xlu0 %v1678
        %v1680 = vpop.xlane.xlu0 %1679
        %v1681 = vsel %vm1491, %v1675, -inf
        %1682 = vmax.xlane.f32.xlu0 %v1681
        %v1683 = vpop.xlane.xlu0 %1682
        %v1684 = vsel %vm1491, %v1676, -inf
        %1685 = vmax.xlane.f32.xlu0 %v1684
        %v1686 = vpop.xlane.xlu0 %1685
        %v1687 = vsel %vm1491, %v1677, -inf
        %1688 = vmax.xlane.f32.xlu0 %v1687
        %v1689 = vpop.xlane.xlu0 %1688
        %v1690 = vsub.f32 %v1674, %v1680
        %v1691 = vsub.f32 %v1675, %v1683
        %v1692 = vsub.f32 %v1676, %v1686
        %v1693 = vsub.f32 %v1677, %v1689
        %v1694 = vmul.f32 %v1690, 1.442695
        %v1695 = vpow.pop %v1694
        %v1696 = vmul.f32 %v1691, 1.442695
        %v1697 = vpow.pop %v1696
        %v1698 = vmul.f32 %v1692, 1.442695
        %v1699 = vpow.pop %v1698
        %v1700 = vmul.f32 %v1693, 1.442695
        %v1701 = vpow.pop %v1700
        %v1702 = vsel %vm1491, %v1695, 0.0
        %1703 = vadd.xlane.f32.xlu0 %v1702
        %v1704 = vpop.xlane.xlu0 %1703
        %v1705 = vsel %vm1491, %v1697, 0.0
        %1706 = vadd.xlane.f32.xlu0 %v1705
        %v1707 = vpop.xlane.xlu0 %1706
        %v1708 = vsel %vm1491, %v1699, 0.0
        %1709 = vadd.xlane.f32.xlu0 %v1708
        %v1710 = vpop.xlane.xlu0 %1709
        %v1711 = vsel %vm1491, %v1701, 0.0
        %1712 = vadd.xlane.f32.xlu0 %v1711
        %v1713 = vpop.xlane.xlu0 %1712
        %v1714 = vrcp.pop %v1704
        %v1715 = vrcp.pop %v1707
        %v1716 = vrcp.pop %v1710
        %v1717 = vrcp.pop %v1713
        %v1718 = vmul.f32 %v1695, %v1714
        %v1719 = vmul.f32 %v1697, %v1715
        %v1720 = vmul.f32 %v1699, %v1716
        %v1721 = vmul.f32 %v1701, %v1717
        %v1722 = vpack.c.bf16 %v1719, %v1718
        %v1723 = vpack.c.bf16 %v1721, %v1720
        %1726 = vrot.lane.b32.xlu0 %v1419, 64
        %v1727 = vpop.permute.xlu0 %1726
        %1728 = vrot.lane.b32.xlu0 %v1420, 64
        %v1729 = vpop.permute.xlu0 %1728
        %v1733 = vsel %vm1491, %v1722, 0
        %v1736 = vsel %vm1491, %v1723, 0
        %1738 = vmatprep.subr.bf16.mxu0 0
        %1739 = vmatpush1.bf16.msra.mxu0 %v1727
        %1740 = vmatprep.subr.bf16.mxu0 0
        %1741 = vmatpush1.bf16.msra.mxu0 %v1729
        %1742 = vmatprep.subr.bf16.mxu0 0
        %1743 = vmatpush1.bf16.msra.mxu0 0
        %1744 = vmatprep.subr.bf16.mxu0 0
        %1745 = vmatpush1.bf16.msra.mxu0 0
        %1746 = vmatprep.subr.bf16.mxu0 0
        %1747 = vmatpush1.bf16.msra.mxu0 0
        %1748 = vmatprep.subr.bf16.mxu0 0
        %1749 = vmatpush1.bf16.msra.mxu0 0
        %1750 = vmatprep.subr.bf16.mxu0 0
        %1751 = vmatpush1.bf16.msra.mxu0 0
        %1752 = vmatprep.subr.bf16.mxu0 0
        %1753 = vmatpush1.bf16.msra.mxu0 0
        %1754 = vmatprep.subr.bf16.mxu0 0
        %1755 = vmatpush1.bf16.msra.mxu0 0
        %1756 = vmatprep.subr.bf16.mxu0 0
        %1757 = vmatpush1.bf16.msra.mxu0 0
        %1758 = vmatprep.subr.bf16.mxu0 0
        %1759 = vmatpush1.bf16.msra.mxu0 0
        %1760 = vmatprep.subr.bf16.mxu0 0
        %1761 = vmatpush1.bf16.msra.mxu0 0
        %1762 = vmatprep.subr.bf16.mxu0 0
        %1763 = vmatpush1.bf16.msra.mxu0 0
        %1764 = vmatprep.subr.bf16.mxu0 0
        %1765 = vmatpush1.bf16.msra.mxu0 0
        %1766 = vmatprep.subr.bf16.mxu0 0
        %1767 = vmatpush1.bf16.msra.mxu0 0
        %1768 = vmatprep.subr.bf16.mxu0 0
        %1769 = vmatpush1.bf16.msra.mxu0 0
        %1770 = vmatprep.mubr.bf16.mxu0 0
        %1771 = vmatmul.mubr.bf16.gmra.mrb[0].mxu0 %v1733
        %v1772 = vpop.f32.mrb[0].mxu0
        %v1773 = vadd.f32 0.0, %v1772
        %v1774 = vpop.f32.mrb[0].mxu0
        %v1775 = vpop.f32.mrb[0].mxu0
        %v1776 = vadd.f32 0.0, %v1775
        %v1777 = vpop.f32.mrb[0].mxu0
        %1778 = vmatprep.mubr.bf16.mxu0 0
        %1779 = vmatmul.mubr.bf16.gmra.mrb[0].mxu0 %v1736
        %v1780 = vpop.f32.mrb[0].mxu0
        %v1781 = vadd.f32 0.0, %v1780
        %v1782 = vpop.f32.mrb[0].mxu0
        %v1783 = vpop.f32.mrb[0].mxu0
        %v1784 = vadd.f32 0.0, %v1783
        %v1785 = vpop.f32.mrb[0].mxu0
        %1786 = vdwg.mxu0
        %1791 = vrot.lane.b32.xlu0 %v1773, 64
        %v1792 = vpop.permute.xlu0 %1791
        %1793 = vrot.lane.b32.xlu0 %v1776, 64
        %v1794 = vpop.permute.xlu0 %1793
        %1795 = vrot.lane.b32.xlu0 %v1781, 64
        %v1796 = vpop.permute.xlu0 %1795
        %1797 = vrot.lane.b32.xlu0 %v1784, 64
        %v1798 = vpop.permute.xlu0 %1797
        %vm1803 = vcmask 1048064
        %1804 = vst.msk [vmem:[#allocation2] sm:$0xff] %vm1803, %v1792
        %1805 = vst.msk [vmem:[#allocation2 + $0x8] sm:$0xff] %vm1803, %v1794
        %1806 = vst.msk [vmem:[#allocation2 + $0x10] sm:$0xff] %vm1803, %v1796
        %1807 = vst.msk [vmem:[#allocation2 + $0x18] sm:$0xff] %vm1803, %v1798
        %v1808 = vld [vmem:[#allocation2] sm:$0xff]
        %v1809 = vld [vmem:[#allocation2 + $0x8] sm:$0xff]
        %v1810 = vld [vmem:[#allocation2 + $0x10] sm:$0xff]
        %v1811 = vld [vmem:[#allocation2 + $0x18] sm:$0xff]
        %v1812 = vpack.c.bf16 %v1809, %v1808
        %v1813 = vpack.c.bf16 %v1811, %v1810
        %v1814 = vld [vmem:[%s1034] sm:$0xf]
        %v1815 = vld [vmem:[%s1034 + $0x4] sm:$0xf]
        %v1816 = vld [vmem:[%s1034 + $0x8] sm:$0xf]
        %v1817 = vld [vmem:[%s1034 + $0xc] sm:$0xf]
        %v1818 = vld [vmem:[%s1034 + $0x10] sm:$0xf]
        %v1819 = vld [vmem:[%s1034 + $0x14] sm:$0xf]
        %v1820 = vld [vmem:[%s1034 + $0x18] sm:$0xf]
        %v1821 = vld [vmem:[%s1034 + $0x1c] sm:$0xf]
        %v1822 = vld [vmem:[%s1034 + $0x20] sm:$0xf]
        %v1823 = vld [vmem:[%s1034 + $0x24] sm:$0xf]
        %v1824 = vld [vmem:[%s1034 + $0x28] sm:$0xf]
        %v1825 = vld [vmem:[%s1034 + $0x2c] sm:$0xf]
        %v1826 = vld [vmem:[%s1034 + $0x30] sm:$0xf]
        %v1827 = vld [vmem:[%s1034 + $0x34] sm:$0xf]
        %v1828 = vld [vmem:[%s1034 + $0x38] sm:$0xf]
        %v1829 = vld [vmem:[%s1034 + $0x3c] sm:$0xf]
        %v1830 = vld [vmem:[%s1038] sm:$0x1]
        %v1832 = vlaneseq
        %v1833 = vshrl.u32 %v1832, 7
        %v1834 = vsub.s32 0, %v1833
        %v1835 = vrot.slane %v1830, %v1834
        %v1853 = vunpack.c.l.b16 %v1814
        %v1854 = vunpack.c.l.b16 %v1815
        %v1855 = vunpack.c.l.b16 %v1816
        %v1856 = vunpack.c.l.b16 %v1817
        %v1857 = vunpack.c.l.b16 %v1818
        %v1858 = vunpack.c.l.b16 %v1819
        %v1859 = vunpack.c.l.b16 %v1820
        %v1860 = vunpack.c.l.b16 %v1821
        %v1861 = vunpack.c.l.b16 %v1822
        %v1862 = vunpack.c.l.b16 %v1823
        %v1863 = vunpack.c.l.b16 %v1824
        %v1864 = vunpack.c.l.b16 %v1825
        %v1865 = vunpack.c.l.b16 %v1826
        %v1866 = vunpack.c.l.b16 %v1827
        %v1867 = vunpack.c.l.b16 %v1828
        %v1868 = vunpack.c.l.b16 %v1829
        %v1869 = vpack.c.b16 %v1854, %v1853
        %v1870 = vpack.c.b16 %v1856, %v1855
        %v1871 = vpack.c.b16 %v1858, %v1857
        %v1872 = vpack.c.b16 %v1860, %v1859
        %v1873 = vpack.c.b16 %v1862, %v1861
        %v1874 = vpack.c.b16 %v1864, %v1863
        %v1875 = vpack.c.b16 %v1866, %v1865
        %v1876 = vpack.c.b16 %v1868, %v1867
        %1885 = vmatprep.subr.bf16.mxu0 0
        %1886 = vmatpush1.bf16.msra.mxu0 %v1869
        %1887 = vmatprep.subr.bf16.mxu0 0
        %1888 = vmatpush1.bf16.msra.mxu0 %v1870
        %1889 = vmatprep.subr.bf16.mxu0 0
        %1890 = vmatpush1.bf16.msra.mxu0 %v1871
        %1891 = vmatprep.subr.bf16.mxu0 0
        %1892 = vmatpush1.bf16.msra.mxu0 %v1872
        %1893 = vmatprep.subr.bf16.mxu0 0
        %1894 = vmatpush1.bf16.msra.mxu0 %v1873
        %1895 = vmatprep.subr.bf16.mxu0 0
        %1896 = vmatpush1.bf16.msra.mxu0 %v1874
        %1897 = vmatprep.subr.bf16.mxu0 0
        %1898 = vmatpush1.bf16.msra.mxu0 %v1875
        %1899 = vmatprep.subr.bf16.mxu0 0
        %1900 = vmatpush1.bf16.msra.mxu0 %v1876
        %1901 = vmatprep.subr.bf16.mxu0 0
        %1902 = vmatpush1.bf16.msra.mxu0 0
        %1903 = vmatprep.subr.bf16.mxu0 0
        %1904 = vmatpush1.bf16.msra.mxu0 0
        %1905 = vmatprep.subr.bf16.mxu0 0
        %1906 = vmatpush1.bf16.msra.mxu0 0
        %1907 = vmatprep.subr.bf16.mxu0 0
        %1908 = vmatpush1.bf16.msra.mxu0 0
        %1909 = vmatprep.subr.bf16.mxu0 0
        %1910 = vmatpush1.bf16.msra.mxu0 0
        %1911 = vmatprep.subr.bf16.mxu0 0
        %1912 = vmatpush1.bf16.msra.mxu0 0
        %1913 = vmatprep.subr.bf16.mxu0 0
        %1914 = vmatpush1.bf16.msra.mxu0 0
        %1915 = vmatprep.subr.bf16.mxu0 0
        %1916 = vmatpush1.bf16.msra.mxu0 0
        %1917 = vmatprep.mubr.bf16.mxu0 0
        %1918 = vmatmul.mubr.bf16.gmra.mrb[0].mxu0 %v1812
        %v1919 = vpop.f32.mrb[0].mxu0
        %v1920 = vadd.f32 %v1835, %v1919
        %v1921 = vpop.f32.mrb[0].mxu0
        %v1922 = vpop.f32.mrb[0].mxu0
        %v1923 = vadd.f32 %v1835, %v1922
        %v1924 = vpop.f32.mrb[0].mxu0
        %1925 = vmatprep.mubr.bf16.mxu0 0
        %1926 = vmatmul.mubr.bf16.gmra.mrb[0].mxu0 %v1813
        %v1927 = vpop.f32.mrb[0].mxu0
        %v1928 = vadd.f32 %v1835, %v1927
        %v1929 = vpop.f32.mrb[0].mxu0
        %v1930 = vpop.f32.mrb[0].mxu0
        %v1931 = vadd.f32 %v1835, %v1930
        %v1932 = vpop.f32.mrb[0].mxu0
        %1933 = vdwg.mxu0
        %v1934 = vadd.f32 %v1920, %v1130
        %v1935 = vadd.f32 %v1923, %v1131
        %v1936 = vadd.f32 %v1928, %v1132
        %v1937 = vadd.f32 %v1931, %v1133
        %v1938 = vld [vmem:[%s826] sm:$0x1]
        %v1939 = vld [vmem:[%s835] sm:$0x1]
        %1940 = vadd.xlane.f32.xlu0 %v1934
        %v1941 = vpop.xlane.xlu0 %1940
        %1942 = vadd.xlane.f32.xlu0 %v1935
        %v1943 = vpop.xlane.xlu0 %1942
        %1944 = vadd.xlane.f32.xlu0 %v1936
        %v1945 = vpop.xlane.xlu0 %1944
        %1946 = vadd.xlane.f32.xlu0 %v1937
        %v1947 = vpop.xlane.xlu0 %1946
        %v1948 = vmul.f32 %v1941, %v1077
        %v1949 = vmul.f32 %v1943, %v1077
        %v1950 = vmul.f32 %v1945, %v1077
        %v1951 = vmul.f32 %v1947, %v1077
        %v1952 = vsub.f32 %v1934, %v1948
        %v1953 = vsub.f32 %v1935, %v1949
        %v1954 = vsub.f32 %v1936, %v1950
        %v1955 = vsub.f32 %v1937, %v1951
        %v1956 = vmul.f32 %v1952, %v1952
        %v1957 = vmul.f32 %v1953, %v1953
        %v1958 = vmul.f32 %v1954, %v1954
        %v1959 = vmul.f32 %v1955, %v1955
        %1960 = vadd.xlane.f32.xlu0 %v1956
        %v1961 = vpop.xlane.xlu0 %1960
        %1962 = vadd.xlane.f32.xlu0 %v1957
        %v1963 = vpop.xlane.xlu0 %1962
        %1964 = vadd.xlane.f32.xlu0 %v1958
        %v1965 = vpop.xlane.xlu0 %1964
        %1966 = vadd.xlane.f32.xlu0 %v1959
        %v1967 = vpop.xlane.xlu0 %1966
        %v1968 = vmul.f32 %v1961, %v1077
        %v1969 = vmul.f32 %v1963, %v1077
        %v1970 = vmul.f32 %v1965, %v1077
        %v1971 = vmul.f32 %v1967, %v1077
        %v1972 = vadd.f32 %v1968, 1e-12
        %v1973 = vadd.f32 %v1969, 1e-12
        %v1974 = vadd.f32 %v1970, 1e-12
        %v1975 = vadd.f32 %v1971, 1e-12
        %v1976 = vrsqrt.pop %v1972
        %v1977 = vrsqrt.pop %v1973
        %v1978 = vrsqrt.pop %v1974
        %v1979 = vrsqrt.pop %v1975
        %v1980 = vmul.f32 %v1952, %v1976
        %v1981 = vmul.f32 %v1953, %v1977
        %v1982 = vmul.f32 %v1954, %v1978
        %v1983 = vmul.f32 %v1955, %v1979
        %v1985 = vlaneseq
        %v1986 = vshrl.u32 %v1985, 7
        %v1987 = vsub.s32 0, %v1986
        %v1988 = vrot.slane %v1938, %v1987
        %v1990 = vmul.f32 %v1980, %v1988
        %v1991 = vmul.f32 %v1981, %v1988
        %v1992 = vmul.f32 %v1982, %v1988
        %v1993 = vmul.f32 %v1983, %v1988
        %v1995 = vlaneseq
        %v1996 = vshrl.u32 %v1995, 7
        %v1997 = vsub.s32 0, %v1996
        %v1998 = vrot.slane %v1939, %v1997
        %v2000 = vadd.f32 %v1990, %v1998
        %v2001 = vadd.f32 %v1991, %v1998
        %v2002 = vadd.f32 %v1992, %v1998
        %v2003 = vadd.f32 %v1993, %v1998
        %v2004 = vpack.c.bf16 %v2001, %v2000
        %v2005 = vpack.c.bf16 %v2003, %v2002
        %v2006 = vld [vmem:[%s1043] sm:$0xff]
        %v2007 = vld [vmem:[%s1043 + $0x8] sm:$0xff]
        %v2008 = vld [vmem:[%s1043 + $0x10] sm:$0xff]
        %v2009 = vld [vmem:[%s1043 + $0x18] sm:$0xff]
        %v2010 = vld [vmem:[%s1043 + $0x20] sm:$0xff]
        %v2011 = vld [vmem:[%s1043 + $0x28] sm:$0xff]
        %v2012 = vld [vmem:[%s1043 + $0x30] sm:$0xff]
        %v2013 = vld [vmem:[%s1043 + $0x38] sm:$0xff]
        %v2014 = vld [vmem:[%s1043 + $0x40] sm:$0xff]
        %v2015 = vld [vmem:[%s1043 + $0x48] sm:$0xff]
        %v2016 = vld [vmem:[%s1043 + $0x50] sm:$0xff]
        %v2017 = vld [vmem:[%s1043 + $0x58] sm:$0xff]
        %v2018 = vld [vmem:[%s1043 + $0x60] sm:$0xff]
        %v2019 = vld [vmem:[%s1043 + $0x68] sm:$0xff]
        %v2020 = vld [vmem:[%s1043 + $0x70] sm:$0xff]
        %v2021 = vld [vmem:[%s1043 + $0x78] sm:$0xff]
        %v2022 = vld [vmem:[%s844] sm:$0x3]
        %v2024 = vlaneseq
        %v2025 = vshrl.u32 %v2024, 7
        %v2026 = vsub.s32 0, %v2025
        %v2027 = vrot.slane %v2022, %v2026
        %v2028 = vlaneseq
        %v2029 = vshrl.u32 %v2028, 7
        %v2030 = vsub.s32 1, %v2029
        %v2031 = vrot.slane %v2022, %v2030
        %v2050 = vunpack.c.l.b16 %v2006
        %v2051 = vunpack.c.h.b16 %v2006
        %v2052 = vunpack.c.l.b16 %v2007
        %v2053 = vunpack.c.h.b16 %v2007
        %v2054 = vunpack.c.l.b16 %v2008
        %v2055 = vunpack.c.h.b16 %v2008
        %v2056 = vunpack.c.l.b16 %v2009
        %v2057 = vunpack.c.h.b16 %v2009
        %v2058 = vunpack.c.l.b16 %v2010
        %v2059 = vunpack.c.h.b16 %v2010
        %v2060 = vunpack.c.l.b16 %v2011
        %v2061 = vunpack.c.h.b16 %v2011
        %v2062 = vunpack.c.l.b16 %v2012
        %v2063 = vunpack.c.h.b16 %v2012
        %v2064 = vunpack.c.l.b16 %v2013
        %v2065 = vunpack.c.h.b16 %v2013
        %v2066 = vunpack.c.l.b16 %v2014
        %v2067 = vunpack.c.h.b16 %v2014
        %v2068 = vunpack.c.l.b16 %v2015
        %v2069 = vunpack.c.h.b16 %v2015
        %v2070 = vunpack.c.l.b16 %v2016
        %v2071 = vunpack.c.h.b16 %v2016
        %v2072 = vunpack.c.l.b16 %v2017
        %v2073 = vunpack.c.h.b16 %v2017
        %v2074 = vunpack.c.l.b16 %v2018
        %v2075 = vunpack.c.h.b16 %v2018
        %v2076 = vunpack.c.l.b16 %v2019
        %v2077 = vunpack.c.h.b16 %v2019
        %v2078 = vunpack.c.l.b16 %v2020
        %v2079 = vunpack.c.h.b16 %v2020
        %v2080 = vunpack.c.l.b16 %v2021
        %v2081 = vunpack.c.h.b16 %v2021
        %v2082 = vpack.c.b16 %v2052, %v2050
        %v2083 = vpack.c.b16 %v2053, %v2051
        %v2084 = vpack.c.b16 %v2056, %v2054
        %v2085 = vpack.c.b16 %v2057, %v2055
        %v2086 = vpack.c.b16 %v2060, %v2058
        %v2087 = vpack.c.b16 %v2061, %v2059
        %v2088 = vpack.c.b16 %v2064, %v2062
        %v2089 = vpack.c.b16 %v2065, %v2063
        %v2090 = vpack.c.b16 %v2068, %v2066
        %v2091 = vpack.c.b16 %v2069, %v2067
        %v2092 = vpack.c.b16 %v2072, %v2070
        %v2093 = vpack.c.b16 %v2073, %v2071
        %v2094 = vpack.c.b16 %v2076, %v2074
        %v2095 = vpack.c.b16 %v2077, %v2075
        %v2096 = vpack.c.b16 %v2080, %v2078
        %v2097 = vpack.c.b16 %v2081, %v2079
        %2114 = vmatprep.subr.bf16.mxu0 %v2083
        %2115 = vmatpush1.bf16.msra.mxu0 %v2082
        %2116 = vmatprep.subr.bf16.mxu0 %v2085
        %2117 = vmatpush1.bf16.msra.mxu0 %v2084
        %2118 = vmatprep.subr.bf16.mxu0 %v2087
        %2119 = vmatpush1.bf16.msra.mxu0 %v2086
        %2120 = vmatprep.subr.bf16.mxu0 %v2089
        %2121 = vmatpush1.bf16.msra.mxu0 %v2088
        %2122 = vmatprep.subr.bf16.mxu0 %v2091
        %2123 = vmatpush1.bf16.msra.mxu0 %v2090
        %2124 = vmatprep.subr.bf16.mxu0 %v2093
        %2125 = vmatpush1.bf16.msra.mxu0 %v2092
        %2126 = vmatprep.subr.bf16.mxu0 %v2095
        %2127 = vmatpush1.bf16.msra.mxu0 %v2094
        %2128 = vmatprep.subr.bf16.mxu0 %v2097
        %2129 = vmatpush1.bf16.msra.mxu0 %v2096
        %2130 = vmatprep.subr.bf16.mxu0 0
        %2131 = vmatpush1.bf16.msra.mxu0 0
        %2132 = vmatprep.subr.bf16.mxu0 0
        %2133 = vmatpush1.bf16.msra.mxu0 0
        %2134 = vmatprep.subr.bf16.mxu0 0
        %2135 = vmatpush1.bf16.msra.mxu0 0
        %2136 = vmatprep.subr.bf16.mxu0 0
        %2137 = vmatpush1.bf16.msra.mxu0 0
        %2138 = vmatprep.subr.bf16.mxu0 0
        %2139 = vmatpush1.bf16.msra.mxu0 0
        %2140 = vmatprep.subr.bf16.mxu0 0
        %2141 = vmatpush1.bf16.msra.mxu0 0
        %2142 = vmatprep.subr.bf16.mxu0 0
        %2143 = vmatpush1.bf16.msra.mxu0 0
        %2144 = vmatprep.subr.bf16.mxu0 0
        %2145 = vmatpush1.bf16.msra.mxu0 0
        %2146 = vmatprep.mubr.bf16.mxu0 0
        %2147 = vmatmul.mubr.bf16.gmra.mrb[0].mxu0 %v2004
        %v2148 = vpop.f32.mrb[0].mxu0
        %v2149 = vadd.f32 %v2027, %v2148
        %v2150 = vpop.f32.mrb[0].mxu0
        %v2151 = vadd.f32 %v2031, %v2150
        %v2152 = vpop.f32.mrb[0].mxu0
        %v2153 = vadd.f32 %v2027, %v2152
        %v2154 = vpop.f32.mrb[0].mxu0
        %v2155 = vadd.f32 %v2031, %v2154
        %2156 = vmatprep.mubr.bf16.mxu0 0
        %2157 = vmatmul.mubr.bf16.gmra.mrb[0].mxu0 %v2005
        %v2158 = vpop.f32.mrb[0].mxu0
        %v2159 = vadd.f32 %v2027, %v2158
        %v2160 = vpop.f32.mrb[0].mxu0
        %v2161 = vadd.f32 %v2031, %v2160
        %v2162 = vpop.f32.mrb[0].mxu0
        %v2163 = vadd.f32 %v2027, %v2162
        %v2164 = vpop.f32.mrb[0].mxu0
        %v2165 = vadd.f32 %v2031, %v2164
        %2166 = vdwg.mxu0
        %v2167 = vmul.f32 %v2149, 0.5
        %v2168 = vmul.f32 %v2151, 0.5
        %v2169 = vmul.f32 %v2153, 0.5
        %v2170 = vmul.f32 %v2155, 0.5
        %v2171 = vmul.f32 %v2159, 0.5
        %v2172 = vmul.f32 %v2161, 0.5
        %v2173 = vmul.f32 %v2163, 0.5
        %v2174 = vmul.f32 %v2165, 0.5
        %v2175 = vmul.f32 %v2149, 0.044715
        %v2176 = vmul.f32 %v2151, 0.044715
        %v2177 = vmul.f32 %v2153, 0.044715
        %v2178 = vmul.f32 %v2155, 0.044715
        %v2179 = vmul.f32 %v2159, 0.044715
        %v2180 = vmul.f32 %v2161, 0.044715
        %v2181 = vmul.f32 %v2163, 0.044715
        %v2182 = vmul.f32 %v2165, 0.044715
        %v2183 = vmul.f32 %v2175, %v2149
        %v2184 = vmul.f32 %v2176, %v2151
        %v2185 = vmul.f32 %v2177, %v2153
        %v2186 = vmul.f32 %v2178, %v2155
        %v2187 = vmul.f32 %v2179, %v2159
        %v2188 = vmul.f32 %v2180, %v2161
        %v2189 = vmul.f32 %v2181, %v2163
        %v2190 = vmul.f32 %v2182, %v2165
        %v2191 = vmul.f32 %v2183, %v2149
        %v2192 = vmul.f32 %v2184, %v2151
        %v2193 = vmul.f32 %v2185, %v2153
        %v2194 = vmul.f32 %v2186, %v2155
        %v2195 = vmul.f32 %v2187, %v2159
        %v2196 = vmul.f32 %v2188, %v2161
        %v2197 = vmul.f32 %v2189, %v2163
        %v2198 = vmul.f32 %v2190, %v2165
        %v2199 = vadd.f32 %v2149, %v2191
        %v2200 = vadd.f32 %v2151, %v2192
        %v2201 = vadd.f32 %v2153, %v2193
        %v2202 = vadd.f32 %v2155, %v2194
        %v2203 = vadd.f32 %v2159, %v2195
        %v2204 = vadd.f32 %v2161, %v2196
        %v2205 = vadd.f32 %v2163, %v2197
        %v2206 = vadd.f32 %v2165, %v2198
        %v2207 = vmul.f32 %v2199, 0.7978846
        %v2208 = vmul.f32 %v2200, 0.7978846
        %v2209 = vmul.f32 %v2201, 0.7978846
        %v2210 = vmul.f32 %v2202, 0.7978846
        %v2211 = vmul.f32 %v2203, 0.7978846
        %v2212 = vmul.f32 %v2204, 0.7978846
        %v2213 = vmul.f32 %v2205, 0.7978846
        %v2214 = vmul.f32 %v2206, 0.7978846
        %v2215 = vtanh.pop %v2207
        %v2216 = vtanh.pop %v2208
        %v2217 = vtanh.pop %v2209
        %v2218 = vtanh.pop %v2210
        %v2219 = vtanh.pop %v2211
        %v2220 = vtanh.pop %v2212
        %v2221 = vtanh.pop %v2213
        %v2222 = vtanh.pop %v2214
        %v2223 = vadd.f32 %v2215, 1.0
        %v2224 = vadd.f32 %v2216, 1.0
        %v2225 = vadd.f32 %v2217, 1.0
        %v2226 = vadd.f32 %v2218, 1.0
        %v2227 = vadd.f32 %v2219, 1.0
        %v2228 = vadd.f32 %v2220, 1.0
        %v2229 = vadd.f32 %v2221, 1.0
        %v2230 = vadd.f32 %v2222, 1.0
        %v2231 = vmul.f32 %v2167, %v2223
        %v2232 = vmul.f32 %v2168, %v2224
        %v2233 = vmul.f32 %v2169, %v2225
        %v2234 = vmul.f32 %v2170, %v2226
        %v2235 = vmul.f32 %v2171, %v2227
        %v2236 = vmul.f32 %v2172, %v2228
        %v2237 = vmul.f32 %v2173, %v2229
        %v2238 = vmul.f32 %v2174, %v2230
        %v2239 = vpack.c.bf16 %v2233, %v2231
        %v2240 = vpack.c.bf16 %v2234, %v2232
        %v2241 = vpack.c.bf16 %v2237, %v2235
        %v2242 = vpack.c.bf16 %v2238, %v2236
        %v2243 = vld [vmem:[%s1048] sm:$0xf]
        %v2244 = vld [vmem:[%s1048 + $0x4] sm:$0xf]
        %v2245 = vld [vmem:[%s1048 + $0x8] sm:$0xf]
        %v2246 = vld [vmem:[%s1048 + $0xc] sm:$0xf]
        %v2247 = vld [vmem:[%s1048 + $0x10] sm:$0xf]
        %v2248 = vld [vmem:[%s1048 + $0x14] sm:$0xf]
        %v2249 = vld [vmem:[%s1048 + $0x18] sm:$0xf]
        %v2250 = vld [vmem:[%s1048 + $0x1c] sm:$0xf]
        %v2251 = vld [vmem:[%s1048 + $0x20] sm:$0xf]
        %v2252 = vld [vmem:[%s1048 + $0x24] sm:$0xf]
        %v2253 = vld [vmem:[%s1048 + $0x28] sm:$0xf]
        %v2254 = vld [vmem:[%s1048 + $0x2c] sm:$0xf]
        %v2255 = vld [vmem:[%s1048 + $0x30] sm:$0xf]
        %v2256 = vld [vmem:[%s1048 + $0x34] sm:$0xf]
        %v2257 = vld [vmem:[%s1048 + $0x38] sm:$0xf]
        %v2258 = vld [vmem:[%s1048 + $0x3c] sm:$0xf]
        %v2259 = vld [vmem:[%s1048 + $0x40] sm:$0xf]
        %v2260 = vld [vmem:[%s1048 + $0x44] sm:$0xf]
        %v2261 = vld [vmem:[%s1048 + $0x48] sm:$0xf]
        %v2262 = vld [vmem:[%s1048 + $0x4c] sm:$0xf]
        %v2263 = vld [vmem:[%s1048 + $0x50] sm:$0xf]
        %v2264 = vld [vmem:[%s1048 + $0x54] sm:$0xf]
        %v2265 = vld [vmem:[%s1048 + $0x58] sm:$0xf]
        %v2266 = vld [vmem:[%s1048 + $0x5c] sm:$0xf]
        %v2267 = vld [vmem:[%s1048 + $0x60] sm:$0xf]
        %v2268 = vld [vmem:[%s1048 + $0x64] sm:$0xf]
        %v2269 = vld [vmem:[%s1048 + $0x68] sm:$0xf]
        %v2270 = vld [vmem:[%s1048 + $0x6c] sm:$0xf]
        %v2271 = vld [vmem:[%s1048 + $0x70] sm:$0xf]
        %v2272 = vld [vmem:[%s1048 + $0x74] sm:$0xf]
        %v2273 = vld [vmem:[%s1048 + $0x78] sm:$0xf]
        %v2274 = vld [vmem:[%s1048 + $0x7c] sm:$0xf]
        %v2275 = vld [vmem:[%s853] sm:$0x1]
        %v2277 = vlaneseq
        %v2278 = vshrl.u32 %v2277, 7
        %v2279 = vsub.s32 0, %v2278
        %v2280 = vrot.slane %v2275, %v2279
        %v2314 = vunpack.c.l.b16 %v2243
        %v2315 = vunpack.c.l.b16 %v2244
        %v2316 = vunpack.c.l.b16 %v2245
        %v2317 = vunpack.c.l.b16 %v2246
        %v2318 = vunpack.c.l.b16 %v2247
        %v2319 = vunpack.c.l.b16 %v2248
        %v2320 = vunpack.c.l.b16 %v2249
        %v2321 = vunpack.c.l.b16 %v2250
        %v2322 = vunpack.c.l.b16 %v2251
        %v2323 = vunpack.c.l.b16 %v2252
        %v2324 = vunpack.c.l.b16 %v2253
        %v2325 = vunpack.c.l.b16 %v2254
        %v2326 = vunpack.c.l.b16 %v2255
        %v2327 = vunpack.c.l.b16 %v2256
        %v2328 = vunpack.c.l.b16 %v2257
        %v2329 = vunpack.c.l.b16 %v2258
        %v2330 = vunpack.c.l.b16 %v2259
        %v2331 = vunpack.c.l.b16 %v2260
        %v2332 = vunpack.c.l.b16 %v2261
        %v2333 = vunpack.c.l.b16 %v2262
        %v2334 = vunpack.c.l.b16 %v2263
        %v2335 = vunpack.c.l.b16 %v2264
        %v2336 = vunpack.c.l.b16 %v2265
        %v2337 = vunpack.c.l.b16 %v2266
        %v2338 = vunpack.c.l.b16 %v2267
        %v2339 = vunpack.c.l.b16 %v2268
        %v2340 = vunpack.c.l.b16 %v2269
        %v2341 = vunpack.c.l.b16 %v2270
        %v2342 = vunpack.c.l.b16 %v2271
        %v2343 = vunpack.c.l.b16 %v2272
        %v2344 = vunpack.c.l.b16 %v2273
        %v2345 = vunpack.c.l.b16 %v2274
        %v2346 = vpack.c.b16 %v2315, %v2314
        %v2347 = vpack.c.b16 %v2317, %v2316
        %v2348 = vpack.c.b16 %v2319, %v2318
        %v2349 = vpack.c.b16 %v2321, %v2320
        %v2350 = vpack.c.b16 %v2323, %v2322
        %v2351 = vpack.c.b16 %v2325, %v2324
        %v2352 = vpack.c.b16 %v2327, %v2326
        %v2353 = vpack.c.b16 %v2329, %v2328
        %v2354 = vpack.c.b16 %v2331, %v2330
        %v2355 = vpack.c.b16 %v2333, %v2332
        %v2356 = vpack.c.b16 %v2335, %v2334
        %v2357 = vpack.c.b16 %v2337, %v2336
        %v2358 = vpack.c.b16 %v2339, %v2338
        %v2359 = vpack.c.b16 %v2341, %v2340
        %v2360 = vpack.c.b16 %v2343, %v2342
        %v2361 = vpack.c.b16 %v2345, %v2344
        %2378 = vmatprep.subr.bf16.mxu0 0
        %2379 = vmatpush1.bf16.msra.mxu0 %v2346
        %2380 = vmatprep.subr.bf16.mxu0 0
        %2381 = vmatpush1.bf16.msra.mxu0 %v2347
        %2382 = vmatprep.subr.bf16.mxu0 0
        %2383 = vmatpush1.bf16.msra.mxu0 %v2348
        %2384 = vmatprep.subr.bf16.mxu0 0
        %2385 = vmatpush1.bf16.msra.mxu0 %v2349
        %2386 = vmatprep.subr.bf16.mxu0 0
        %2387 = vmatpush1.bf16.msra.mxu0 %v2350
        %2388 = vmatprep.subr.bf16.mxu0 0
        %2389 = vmatpush1.bf16.msra.mxu0 %v2351
        %2390 = vmatprep.subr.bf16.mxu0 0
        %2391 = vmatpush1.bf16.msra.mxu0 %v2352
        %2392 = vmatprep.subr.bf16.mxu0 0
        %2393 = vmatpush1.bf16.msra.mxu0 %v2353
        %2394 = vmatprep.subr.bf16.mxu0 0
        %2395 = vmatpush1.bf16.msra.mxu0 %v2354
        %2396 = vmatprep.subr.bf16.mxu0 0
        %2397 = vmatpush1.bf16.msra.mxu0 %v2355
        %2398 = vmatprep.subr.bf16.mxu0 0
        %2399 = vmatpush1.bf16.msra.mxu0 %v2356
        %2400 = vmatprep.subr.bf16.mxu0 0
        %2401 = vmatpush1.bf16.msra.mxu0 %v2357
        %2402 = vmatprep.subr.bf16.mxu0 0
        %2403 = vmatpush1.bf16.msra.mxu0 %v2358
        %2404 = vmatprep.subr.bf16.mxu0 0
        %2405 = vmatpush1.bf16.msra.mxu0 %v2359
        %2406 = vmatprep.subr.bf16.mxu0 0
        %2407 = vmatpush1.bf16.msra.mxu0 %v2360
        %2408 = vmatprep.subr.bf16.mxu0 0
        %2409 = vmatpush1.bf16.msra.mxu0 %v2361
        %2410 = vmatprep.mubr.bf16.mxu0 %v2240
        %2411 = vmatmul.mubr.bf16.gmra.mrb[0].mxu0 %v2239
        %v2412 = vpop.f32.mrb[0].mxu0
        %v2413 = vadd.f32 %v2280, %v2412
        %v2414 = vpop.f32.mrb[0].mxu0
        %v2415 = vpop.f32.mrb[0].mxu0
        %v2416 = vadd.f32 %v2280, %v2415
        %v2417 = vpop.f32.mrb[0].mxu0
        %2418 = vmatprep.mubr.bf16.mxu0 %v2242
        %2419 = vmatmul.mubr.bf16.gmra.mrb[0].mxu0 %v2241
        %v2420 = vpop.f32.mrb[0].mxu0
        %v2421 = vadd.f32 %v2280, %v2420
        %v2422 = vpop.f32.mrb[0].mxu0
        %v2423 = vpop.f32.mrb[0].mxu0
        %v2424 = vadd.f32 %v2280, %v2423
        %v2425 = vpop.f32.mrb[0].mxu0
        %2426 = vdwg.mxu0
        %v2427 = vadd.f32 %v2413, %v2000
        %v2428 = vadd.f32 %v2416, %v2001
        %v2429 = vadd.f32 %v2421, %v2002
        %v2430 = vadd.f32 %v2424, %v2003
        %v2431 = vld [vmem:[%s862] sm:$0x1]
        %v2432 = vld [vmem:[%s871] sm:$0x1]
        %2433 = vadd.xlane.f32.xlu0 %v2427
        %v2434 = vpop.xlane.xlu0 %2433
        %2435 = vadd.xlane.f32.xlu0 %v2428
        %v2436 = vpop.xlane.xlu0 %2435
        %2437 = vadd.xlane.f32.xlu0 %v2429
        %v2438 = vpop.xlane.xlu0 %2437
        %2439 = vadd.xlane.f32.xlu0 %v2430
        %v2440 = vpop.xlane.xlu0 %2439
        %v2441 = vmul.f32 %v2434, %v1077
        %v2442 = vmul.f32 %v2436, %v1077
        %v2443 = vmul.f32 %v2438, %v1077
        %v2444 = vmul.f32 %v2440, %v1077
        %v2445 = vsub.f32 %v2427, %v2441
        %v2446 = vsub.f32 %v2428, %v2442
        %v2447 = vsub.f32 %v2429, %v2443
        %v2448 = vsub.f32 %v2430, %v2444
        %v2449 = vmul.f32 %v2445, %v2445
        %v2450 = vmul.f32 %v2446, %v2446
        %v2451 = vmul.f32 %v2447, %v2447
        %v2452 = vmul.f32 %v2448, %v2448
        %2453 = vadd.xlane.f32.xlu0 %v2449
        %v2454 = vpop.xlane.xlu0 %2453
        %2455 = vadd.xlane.f32.xlu0 %v2450
        %v2456 = vpop.xlane.xlu0 %2455
        %2457 = vadd.xlane.f32.xlu0 %v2451
        %v2458 = vpop.xlane.xlu0 %2457
        %2459 = vadd.xlane.f32.xlu0 %v2452
        %v2460 = vpop.xlane.xlu0 %2459
        %v2461 = vmul.f32 %v2454, %v1077
        %v2462 = vmul.f32 %v2456, %v1077
        %v2463 = vmul.f32 %v2458, %v1077
        %v2464 = vmul.f32 %v2460, %v1077
        %v2465 = vadd.f32 %v2461, 1e-12
        %v2466 = vadd.f32 %v2462, 1e-12
        %v2467 = vadd.f32 %v2463, 1e-12
        %v2468 = vadd.f32 %v2464, 1e-12
        %v2469 = vrsqrt.pop %v2465
        %v2470 = vrsqrt.pop %v2466
        %v2471 = vrsqrt.pop %v2467
        %v2472 = vrsqrt.pop %v2468
        %v2473 = vmul.f32 %v2445, %v2469
        %v2474 = vmul.f32 %v2446, %v2470
        %v2475 = vmul.f32 %v2447, %v2471
        %v2476 = vmul.f32 %v2448, %v2472
        %v2478 = vlaneseq
        %v2479 = vshrl.u32 %v2478, 7
        %v2480 = vsub.s32 0, %v2479
        %v2481 = vrot.slane %v2431, %v2480
        %v2483 = vmul.f32 %v2473, %v2481
        %v2484 = vmul.f32 %v2474, %v2481
        %v2485 = vmul.f32 %v2475, %v2481
        %v2486 = vmul.f32 %v2476, %v2481
        %v2488 = vlaneseq
        %v2489 = vshrl.u32 %v2488, 7
        %v2490 = vsub.s32 0, %v2489
        %v2491 = vrot.slane %v2432, %v2490
        %v2493 = vadd.f32 %v2483, %v2491
        %v2494 = vadd.f32 %v2484, %v2491
        %v2495 = vadd.f32 %v2485, %v2491
        %v2496 = vadd.f32 %v2486, %v2491
        %v2497 = vpack.c.bf16 %v2494, %v2493
        %v2498 = vpack.c.bf16 %v2496, %v2495
        %s2499 = scalar_lea.vmem %s1025, 192
        %v2500 = vld [vmem:[%s2499] sm:$0xff]
        %v2501 = vld [vmem:[%s2499 + $0x8] sm:$0xf]
        %v2502 = vld [vmem:[%s2499 + $0xc] sm:$0xff]
        %v2503 = vld [vmem:[%s2499 + $0x14] sm:$0xf]
        %v2504 = vld [vmem:[%s2499 + $0x18] sm:$0xff]
        %v2505 = vld [vmem:[%s2499 + $0x20] sm:$0xf]
        %v2506 = vld [vmem:[%s2499 + $0x24] sm:$0xff]
        %v2507 = vld [vmem:[%s2499 + $0x2c] sm:$0xf]
        %v2508 = vld [vmem:[%s2499 + $0x30] sm:$0xff]
        %v2509 = vld [vmem:[%s2499 + $0x38] sm:$0xf]
        %v2510 = vld [vmem:[%s2499 + $0x3c] sm:$0xff]
        %v2511 = vld [vmem:[%s2499 + $0x44] sm:$0xf]
        %v2512 = vld [vmem:[%s2499 + $0x48] sm:$0xff]
        %v2513 = vld [vmem:[%s2499 + $0x50] sm:$0xf]
        %v2514 = vld [vmem:[%s2499 + $0x54] sm:$0xff]
        %v2515 = vld [vmem:[%s2499 + $0x5c] sm:$0xf]
        %v2516 = vld [vmem:[%s2499 + $0x60] sm:$0xff]
        %v2517 = vld [vmem:[%s2499 + $0x68] sm:$0xf]
        %v2518 = vld [vmem:[%s2499 + $0x6c] sm:$0xff]
        %v2519 = vld [vmem:[%s2499 + $0x74] sm:$0xf]
        %v2520 = vld [vmem:[%s2499 + $0x78] sm:$0xff]
        %v2521 = vld [vmem:[%s2499 + $0x80] sm:$0xf]
        %v2522 = vld [vmem:[%s2499 + $0x84] sm:$0xff]
        %v2523 = vld [vmem:[%s2499 + $0x8c] sm:$0xf]
        %v2524 = vld [vmem:[%s2499 + $0x90] sm:$0xff]
        %v2525 = vld [vmem:[%s2499 + $0x98] sm:$0xf]
        %v2526 = vld [vmem:[%s2499 + $0x9c] sm:$0xff]
        %v2527 = vld [vmem:[%s2499 + $0xa4] sm:$0xf]
        %v2528 = vld [vmem:[%s2499 + $0xa8] sm:$0xff]
        %v2529 = vld [vmem:[%s2499 + $0xb0] sm:$0xf]
        %v2530 = vld [vmem:[%s2499 + $0xb4] sm:$0xff]
        %v2531 = vld [vmem:[%s2499 + $0xbc] sm:$0xf]
        %s2532 = scalar_lea.vmem %s1029, 3
        %v2533 = vld [vmem:[%s2532] sm:$0x7]
        %v2535 = vlaneseq
        %v2536 = vshrl.u32 %v2535, 7
        %v2537 = vsub.s32 0, %v2536
        %v2538 = vrot.slane %v2533, %v2537
        %v2539 = vlaneseq
        %v2540 = vshrl.u32 %v2539, 7
        %v2541 = vsub.s32 1, %v2540
        %v2542 = vrot.slane %v2533, %v2541
        %v2543 = vlaneseq
        %v2544 = vshrl.u32 %v2543, 7
        %v2545 = vsub.s32 2, %v2544
        %v2546 = vrot.slane %v2533, %v2545
        %v2582 = vunpack.c.l.b16 %v2500
        %v2583 = vunpack.c.h.b16 %v2500
        %v2584 = vunpack.c.l.b16 %v2501
        %v2585 = vunpack.c.l.b16 %v2502
        %v2586 = vunpack.c.h.b16 %v2502
        %v2587 = vunpack.c.l.b16 %v2503
        %v2588 = vunpack.c.l.b16 %v2504
        %v2589 = vunpack.c.h.b16 %v2504
        %v2590 = vunpack.c.l.b16 %v2505
        %v2591 = vunpack.c.l.b16 %v2506
        %v2592 = vunpack.c.h.b16 %v2506
        %v2593 = vunpack.c.l.b16 %v2507
        %v2594 = vunpack.c.l.b16 %v2508
        %v2595 = vunpack.c.h.b16 %v2508
        %v2596 = vunpack.c.l.b16 %v2509
        %v2597 = vunpack.c.l.b16 %v2510
        %v2598 = vunpack.c.h.b16 %v2510
        %v2599 = vunpack.c.l.b16 %v2511
        %v2600 = vunpack.c.l.b16 %v2512
        %v2601 = vunpack.c.h.b16 %v2512
        %v2602 = vunpack.c.l.b16 %v2513
        %v2603 = vunpack.c.l.b16 %v2514
        %v2604 = vunpack.c.h.b16 %v2514
        %v2605 = vunpack.c.l.b16 %v2515
        %v2606 = vunpack.c.l.b16 %v2516
        %v2607 = vunpack.c.h.b16 %v2516
        %v2608 = vunpack.c.l.b16 %v2517
        %v2609 = vunpack.c.l.b16 %v2518
        %v2610 = vunpack.c.h.b16 %v2518
        %v2611 = vunpack.c.l.b16 %v2519
        %v2612 = vunpack.c.l.b16 %v2520
        %v2613 = vunpack.c.h.b16 %v2520
        %v2614 = vunpack.c.l.b16 %v2521
        %v2615 = vunpack.c.l.b16 %v2522
        %v2616 = vunpack.c.h.b16 %v2522
        %v2617 = vunpack.c.l.b16 %v2523
        %v2618 = vunpack.c.l.b16 %v2524
        %v2619 = vunpack.c.h.b16 %v2524
        %v2620 = vunpack.c.l.b16 %v2525
        %v2621 = vunpack.c.l.b16 %v2526
        %v2622 = vunpack.c.h.b16 %v2526
        %v2623 = vunpack.c.l.b16 %v2527
        %v2624 = vunpack.c.l.b16 %v2528
        %v2625 = vunpack.c.h.b16 %v2528
        %v2626 = vunpack.c.l.b16 %v2529
        %v2627 = vunpack.c.l.b16 %v2530
        %v2628 = vunpack.c.h.b16 %v2530
        %v2629 = vunpack.c.l.b16 %v2531
        %v2630 = vpack.c.b16 %v2585, %v2582
        %v2631 = vpack.c.b16 %v2586, %v2583
        %v2632 = vpack.c.b16 %v2587, %v2584
        %v2633 = vpack.c.b16 %v2591, %v2588
        %v2634 = vpack.c.b16 %v2592, %v2589
        %v2635 = vpack.c.b16 %v2593, %v2590
        %v2636 = vpack.c.b16 %v2597, %v2594
        %v2637 = vpack.c.b16 %v2598, %v2595
        %v2638 = vpack.c.b16 %v2599, %v2596
        %v2639 = vpack.c.b16 %v2603, %v2600
        %v2640 = vpack.c.b16 %v2604, %v2601
        %v2641 = vpack.c.b16 %v2605, %v2602
        %v2642 = vpack.c.b16 %v2609, %v2606
        %v2643 = vpack.c.b16 %v2610, %v2607
        %v2644 = vpack.c.b16 %v2611, %v2608
        %v2645 = vpack.c.b16 %v2615, %v2612
        %v2646 = vpack.c.b16 %v2616, %v2613
        %v2647 = vpack.c.b16 %v2617, %v2614
        %v2648 = vpack.c.b16 %v2621, %v2618
        %v2649 = vpack.c.b16 %v2622, %v2619
        %v2650 = vpack.c.b16 %v2623, %v2620
        %v2651 = vpack.c.b16 %v2627, %v2624
        %v2652 = vpack.c.b16 %v2628, %v2625
        %v2653 = vpack.c.b16 %v2629, %v2626
        %2678 = vmatprep.subr.bf16.mxu0 %v2631
        %2679 = vmatpush1.bf16.msra.mxu0 %v2630
        %2680 = vmatprep.subr.bf16.mxu0 %v2634
        %2681 = vmatpush1.bf16.msra.mxu0 %v2633
        %2682 = vmatprep.subr.bf16.mxu0 %v2637
        %2683 = vmatpush1.bf16.msra.mxu0 %v2636
        %2684 = vmatprep.subr.bf16.mxu0 %v2640
        %2685 = vmatpush1.bf16.msra.mxu0 %v2639
        %2686 = vmatprep.subr.bf16.mxu0 %v2643
        %2687 = vmatpush1.bf16.msra.mxu0 %v2642
        %2688 = vmatprep.subr.bf16.mxu0 %v2646
        %2689 = vmatpush1.bf16.msra.mxu0 %v2645
        %2690 = vmatprep.subr.bf16.mxu0 %v2649
        %2691 = vmatpush1.bf16.msra.mxu0 %v2648
        %2692 = vmatprep.subr.bf16.mxu0 %v2652
        %2693 = vmatpush1.bf16.msra.mxu0 %v2651
        %2694 = vmatprep.subr.bf16.mxu0 0
        %2695 = vmatpush1.bf16.msra.mxu0 0
        %2696 = vmatprep.subr.bf16.mxu0 0
        %2697 = vmatpush1.bf16.msra.mxu0 0
        %2698 = vmatprep.subr.bf16.mxu0 0
        %2699 = vmatpush1.bf16.msra.mxu0 0
        %2700 = vmatprep.subr.bf16.mxu0 0
        %2701 = vmatpush1.bf16.msra.mxu0 0
        %2702 = vmatprep.subr.bf16.mxu0 0
        %2703 = vmatpush1.bf16.msra.mxu0 0
        %2704 = vmatprep.subr.bf16.mxu0 0
        %2705 = vmatpush1.bf16.msra.mxu0 0
        %2706 = vmatprep.subr.bf16.mxu0 0
        %2707 = vmatpush1.bf16.msra.mxu0 0
        %2708 = vmatprep.subr.bf16.mxu0 0
        %2709 = vmatpush1.bf16.msra.mxu0 0
        %2710 = vmatprep.mubr.bf16.mxu0 0
        %2711 = vmatmul.mubr.bf16.gmra.mrb[0].mxu0 %v2497
        %v2712 = vpop.f32.mrb[0].mxu0
        %v2713 = vadd.f32 %v2538, %v2712
        %v2714 = vpop.f32.mrb[0].mxu0
        %v2715 = vadd.f32 %v2542, %v2714
        %v2716 = vpop.f32.mrb[0].mxu0
        %v2717 = vadd.f32 %v2538, %v2716
        %v2718 = vpop.f32.mrb[0].mxu0
        %v2719 = vadd.f32 %v2542, %v2718
        %2720 = vmatprep.mubr.bf16.mxu0 0
        %2721 = vmatmul.mubr.bf16.gmra.mrb[0].mxu0 %v2498
        %v2722 = vpop.f32.mrb[0].mxu0
        %v2723 = vadd.f32 %v2538, %v2722
        %v2724 = vpop.f32.mrb[0].mxu0
        %v2725 = vadd.f32 %v2542, %v2724
        %v2726 = vpop.f32.mrb[0].mxu0
        %v2727 = vadd.f32 %v2538, %v2726
        %v2728 = vpop.f32.mrb[0].mxu0
        %v2729 = vadd.f32 %v2542, %v2728
        %2730 = vdwg.mxu0
        %2731 = vmatprep.subr.bf16.mxu0 0
        %2732 = vmatpush1.bf16.msra.mxu0 %v2632
        %2733 = vmatprep.subr.bf16.mxu0 0
        %2734 = vmatpush1.bf16.msra.mxu0 %v2635
        %2735 = vmatprep.subr.bf16.mxu0 0
        %2736 = vmatpush1.bf16.msra.mxu0 %v2638
        %2737 = vmatprep.subr.bf16.mxu0 0
        %2738 = vmatpush1.bf16.msra.mxu0 %v2641
        %2739 = vmatprep.subr.bf16.mxu0 0
        %2740 = vmatpush1.bf16.msra.mxu0 %v2644
        %2741 = vmatprep.subr.bf16.mxu0 0
        %2742 = vmatpush1.bf16.msra.mxu0 %v2647
        %2743 = vmatprep.subr.bf16.mxu0 0
        %2744 = vmatpush1.bf16.msra.mxu0 %v2650
        %2745 = vmatprep.subr.bf16.mxu0 0
        %2746 = vmatpush1.bf16.msra.mxu0 %v2653
        %2747 = vmatprep.subr.bf16.mxu0 0
        %2748 = vmatpush1.bf16.msra.mxu0 0
        %2749 = vmatprep.subr.bf16.mxu0 0
        %2750 = vmatpush1.bf16.msra.mxu0 0
        %2751 = vmatprep.subr.bf16.mxu0 0
        %2752 = vmatpush1.bf16.msra.mxu0 0
        %2753 = vmatprep.subr.bf16.mxu0 0
        %2754 = vmatpush1.bf16.msra.mxu0 0
        %2755 = vmatprep.subr.bf16.mxu0 0
        %2756 = vmatpush1.bf16.msra.mxu0 0
        %2757 = vmatprep.subr.bf16.mxu0 0
        %2758 = vmatpush1.bf16.msra.mxu0 0
        %2759 = vmatprep.subr.bf16.mxu0 0
        %2760 = vmatpush1.bf16.msra.mxu0 0
        %2761 = vmatprep.subr.bf16.mxu0 0
        %2762 = vmatpush1.bf16.msra.mxu0 0
        %2763 = vmatprep.mubr.bf16.mxu0 0
        %2764 = vmatmul.mubr.bf16.gmra.mrb[0].mxu0 %v2497
        %v2765 = vpop.f32.mrb[0].mxu0
        %v2766 = vadd.f32 %v2546, %v2765
        %v2767 = vpop.f32.mrb[0].mxu0
        %v2768 = vpop.f32.mrb[0].mxu0
        %v2769 = vadd.f32 %v2546, %v2768
        %v2770 = vpop.f32.mrb[0].mxu0
        %2771 = vmatprep.mubr.bf16.mxu0 0
        %2772 = vmatmul.mubr.bf16.gmra.mrb[0].mxu0 %v2498
        %v2773 = vpop.f32.mrb[0].mxu0
        %v2774 = vadd.f32 %v2546, %v2773
        %v2775 = vpop.f32.mrb[0].mxu0
        %v2776 = vpop.f32.mrb[0].mxu0
        %v2777 = vadd.f32 %v2546, %v2776
        %v2778 = vpop.f32.mrb[0].mxu0
        %2779 = vdwg.mxu0
        %v2780 = vpack.c.bf16 %v2717, %v2713
        %v2781 = vpack.c.bf16 %v2727, %v2723
        %v2782 = vpack.c.bf16 %v2719, %v2715
        %v2783 = vpack.c.bf16 %v2729, %v2725
        %v2784 = vpack.c.bf16 %v2769, %v2766
        %v2785 = vpack.c.bf16 %v2777, %v2774
        %v2787 = vsel %vm1421, %v2780, 0
        %v2790 = vsel %vm1421, %v2781, 0
        %v2793 = vsel %vm1421, %v2782, 0
        %v2796 = vsel %vm1421, %v2783, 0
        %2798 = vmatprep.subr.bf16.mxu0 0
        %2799 = vmatpush1.bf16.xpose.msra.mxu0 %v2793
        %2800 = vmatprep.subr.bf16.mxu0 0
        %2801 = vmatpush1.bf16.xpose.msra.mxu0 %v2796
        %2802 = vmatprep.subr.bf16.mxu0 0
        %2803 = vmatpush1.bf16.xpose.msra.mxu0 0
        %2804 = vmatprep.subr.bf16.mxu0 0
        %2805 = vmatpush1.bf16.xpose.msra.mxu0 0
        %2806 = vmatprep.subr.bf16.mxu0 0
        %2807 = vmatpush1.bf16.xpose.msra.mxu0 0
        %2808 = vmatprep.subr.bf16.mxu0 0
        %2809 = vmatpush1.bf16.xpose.msra.mxu0 0
        %2810 = vmatprep.subr.bf16.mxu0 0
        %2811 = vmatpush1.bf16.xpose.msra.mxu0 0
        %2812 = vmatprep.subr.bf16.mxu0 0
        %2813 = vmatpush1.bf16.xpose.msra.mxu0 0
        %2814 = vmatprep.subr.bf16.mxu0 0
        %2815 = vmatpush1.bf16.xpose.msra.mxu0 0
        %2816 = vmatprep.subr.bf16.mxu0 0
        %2817 = vmatpush1.bf16.xpose.msra.mxu0 0
        %2818 = vmatprep.subr.bf16.mxu0 0
        %2819 = vmatpush1.bf16.xpose.msra.mxu0 0
        %2820 = vmatprep.subr.bf16.mxu0 0
        %2821 = vmatpush1.bf16.xpose.msra.mxu0 0
        %2822 = vmatprep.subr.bf16.mxu0 0
        %2823 = vmatpush1.bf16.xpose.msra.mxu0 0
        %2824 = vmatprep.subr.bf16.mxu0 0
        %2825 = vmatpush1.bf16.xpose.msra.mxu0 0
        %2826 = vmatprep.subr.bf16.mxu0 0
        %2827 = vmatpush1.bf16.xpose.msra.mxu0 0
        %2828 = vmatprep.subr.bf16.mxu0 0
        %2829 = vmatpush1.bf16.xpose.msra.mxu0 0
        %2830 = vmatprep.mubr.bf16.mxu0 0
        %2831 = vmatmul.mubr.bf16.gmra.mrb[0].mxu0 %v2787
        %v2832 = vpop.f32.mrb[0].mxu0
        %v2833 = vadd.f32 0.0, %v2832
        %v2834 = vpop.f32.mrb[0].mxu0
        %v2835 = vpop.f32.mrb[0].mxu0
        %v2836 = vadd.f32 0.0, %v2835
        %v2837 = vpop.f32.mrb[0].mxu0
        %2838 = vmatprep.mubr.bf16.mxu0 0
        %2839 = vmatmul.mubr.bf16.gmra.mrb[0].mxu0 %v2790
        %v2840 = vpop.f32.mrb[0].mxu0
        %v2841 = vadd.f32 0.0, %v2840
        %v2842 = vpop.f32.mrb[0].mxu0
        %v2843 = vpop.f32.mrb[0].mxu0
        %v2844 = vadd.f32 0.0, %v2843
        %v2845 = vpop.f32.mrb[0].mxu0
        %2846 = vdwg.mxu0
        %v2847 = vmul.f32 %v2833, 0.125
        %v2848 = vmul.f32 %v2836, 0.125
        %v2849 = vmul.f32 %v2841, 0.125
        %v2850 = vmul.f32 %v2844, 0.125
        %v2851 = vadd.f32 %v2847, %v1059
        %v2852 = vadd.f32 %v2848, %v1060
        %v2853 = vadd.f32 %v2849, %v1061
        %v2854 = vadd.f32 %v2850, %v1062
        %v2855 = vsel %vm1491, %v2851, -inf
        %2856 = vmax.xlane.f32.xlu0 %v2855
        %v2857 = vpop.xlane.xlu0 %2856
        %v2858 = vsel %vm1491, %v2852, -inf
        %2859 = vmax.xlane.f32.xlu0 %v2858
        %v2860 = vpop.xlane.xlu0 %2859
        %v2861 = vsel %vm1491, %v2853, -inf
        %2862 = vmax.xlane.f32.xlu0 %v2861
        %v2863 = vpop.xlane.xlu0 %2862
        %v2864 = vsel %vm1491, %v2854, -inf
        %2865 = vmax.xlane.f32.xlu0 %v2864
        %v2866 = vpop.xlane.xlu0 %2865
        %v2867 = vsub.f32 %v2851, %v2857
        %v2868 = vsub.f32 %v2852, %v2860
        %v2869 = vsub.f32 %v2853, %v2863
        %v2870 = vsub.f32 %v2854, %v2866
        %v2871 = vmul.f32 %v2867, 1.442695
        %v2872 = vpow.pop %v2871
        %v2873 = vmul.f32 %v2868, 1.442695
        %v2874 = vpow.pop %v2873
        %v2875 = vmul.f32 %v2869, 1.442695
        %v2876 = vpow.pop %v2875
        %v2877 = vmul.f32 %v2870, 1.442695
        %v2878 = vpow.pop %v2877
        %v2879 = vsel %vm1491, %v2872, 0.0
        %2880 = vadd.xlane.f32.xlu0 %v2879
        %v2881 = vpop.xlane.xlu0 %2880
        %v2882 = vsel %vm1491, %v2874, 0.0
        %2883 = vadd.xlane.f32.xlu0 %v2882
        %v2884 = vpop.xlane.xlu0 %2883
        %v2885 = vsel %vm1491, %v2876, 0.0
        %2886 = vadd.xlane.f32.xlu0 %v2885
        %v2887 = vpop.xlane.xlu0 %2886
        %v2888 = vsel %vm1491, %v2878, 0.0
        %2889 = vadd.xlane.f32.xlu0 %v2888
        %v2890 = vpop.xlane.xlu0 %2889
        %v2891 = vrcp.pop %v2881
        %v2892 = vrcp.pop %v2884
        %v2893 = vrcp.pop %v2887
        %v2894 = vrcp.pop %v2890
        %v2895 = vmul.f32 %v2872, %v2891
        %v2896 = vmul.f32 %v2874, %v2892
        %v2897 = vmul.f32 %v2876, %v2893
        %v2898 = vmul.f32 %v2878, %v2894
        %v2899 = vpack.c.bf16 %v2896, %v2895
        %v2900 = vpack.c.bf16 %v2898, %v2897
        %v2902 = vsel %vm1491, %v2899, 0
        %v2905 = vsel %vm1491, %v2900, 0
        %2907 = vmatprep.subr.bf16.mxu0 0
        %2908 = vmatpush1.bf16.msra.mxu0 %v2784
        %2909 = vmatprep.subr.bf16.mxu0 0
        %2910 = vmatpush1.bf16.msra.mxu0 %v2785
        %2911 = vmatprep.subr.bf16.mxu0 0
        %2912 = vmatpush1.bf16.msra.mxu0 0
        %2913 = vmatprep.subr.bf16.mxu0 0
        %2914 = vmatpush1.bf16.msra.mxu0 0
        %2915 = vmatprep.subr.bf16.mxu0 0
        %2916 = vmatpush1.bf16.msra.mxu0 0
        %2917 = vmatprep.subr.bf16.mxu0 0
        %2918 = vmatpush1.bf16.msra.mxu0 0
        %2919 = vmatprep.subr.bf16.mxu0 0
        %2920 = vmatpush1.bf16.msra.mxu0 0
        %2921 = vmatprep.subr.bf16.mxu0 0
        %2922 = vmatpush1.bf16.msra.mxu0 0
        %2923 = vmatprep.subr.bf16.mxu0 0
        %2924 = vmatpush1.bf16.msra.mxu0 0
        %2925 = vmatprep.subr.bf16.mxu0 0
        %2926 = vmatpush1.bf16.msra.mxu0 0
        %2927 = vmatprep.subr.bf16.mxu0 0
        %2928 = vmatpush1.bf16.msra.mxu0 0
        %2929 = vmatprep.subr.bf16.mxu0 0
        %2930 = vmatpush1.bf16.msra.mxu0 0
        %2931 = vmatprep.subr.bf16.mxu0 0
        %2932 = vmatpush1.bf16.msra.mxu0 0
        %2933 = vmatprep.subr.bf16.mxu0 0
        %2934 = vmatpush1.bf16.msra.mxu0 0
        %2935 = vmatprep.subr.bf16.mxu0 0
        %2936 = vmatpush1.bf16.msra.mxu0 0
        %2937 = vmatprep.subr.bf16.mxu0 0
        %2938 = vmatpush1.bf16.msra.mxu0 0
        %2939 = vmatprep.mubr.bf16.mxu0 0
        %2940 = vmatmul.mubr.bf16.gmra.mrb[0].mxu0 %v2902
        %v2941 = vpop.f32.mrb[0].mxu0
        %v2942 = vadd.f32 0.0, %v2941
        %v2943 = vpop.f32.mrb[0].mxu0
        %v2944 = vpop.f32.mrb[0].mxu0
        %v2945 = vadd.f32 0.0, %v2944
        %v2946 = vpop.f32.mrb[0].mxu0
        %2947 = vmatprep.mubr.bf16.mxu0 0
        %2948 = vmatmul.mubr.bf16.gmra.mrb[0].mxu0 %v2905
        %v2949 = vpop.f32.mrb[0].mxu0
        %v2950 = vadd.f32 0.0, %v2949
        %v2951 = vpop.f32.mrb[0].mxu0
        %v2952 = vpop.f32.mrb[0].mxu0
        %v2953 = vadd.f32 0.0, %v2952
        %v2954 = vpop.f32.mrb[0].mxu0
        %2955 = vdwg.mxu0
        %2956 = vst.msk [vmem:[#allocation2] sm:$0xff] %vm1421, %v2942
        %2957 = vst.msk [vmem:[#allocation2 + $0x8] sm:$0xff] %vm1421, %v2945
        %2958 = vst.msk [vmem:[#allocation2 + $0x10] sm:$0xff] %vm1421, %v2950
        %2959 = vst.msk [vmem:[#allocation2 + $0x18] sm:$0xff] %vm1421, %v2953
        %2962 = vrot.lane.b32.xlu0 %v2780, 64
        %v2963 = vpop.permute.xlu0 %2962
        %2964 = vrot.lane.b32.xlu0 %v2781, 64
        %v2965 = vpop.permute.xlu0 %2964
        %2968 = vrot.lane.b32.xlu0 %v2782, 64
        %v2969 = vpop.permute.xlu0 %2968
        %2970 = vrot.lane.b32.xlu0 %v2783, 64
        %v2971 = vpop.permute.xlu0 %2970
        %v2973 = vsel %vm1421, %v2963, 0
        %v2976 = vsel %vm1421, %v2965, 0
        %v2979 = vsel %vm1421, %v2969, 0
        %v2982 = vsel %vm1421, %v2971, 0
        %2984 = vmatprep.subr.bf16.mxu0 0
        %2985 = vmatpush1.bf16.xpose.msra.mxu0 %v2979
        %2986 = vmatprep.subr.bf16.mxu0 0
        %2987 = vmatpush1.bf16.xpose.msra.mxu0 %v2982
        %2988 = vmatprep.subr.bf16.mxu0 0
        %2989 = vmatpush1.bf16.xpose.msra.mxu0 0
        %2990 = vmatprep.subr.bf16.mxu0 0
        %2991 = vmatpush1.bf16.xpose.msra.mxu0 0
        %2992 = vmatprep.subr.bf16.mxu0 0
        %2993 = vmatpush1.bf16.xpose.msra.mxu0 0
        %2994 = vmatprep.subr.bf16.mxu0 0
        %2995 = vmatpush1.bf16.xpose.msra.mxu0 0
        %2996 = vmatprep.subr.bf16.mxu0 0
        %2997 = vmatpush1.bf16.xpose.msra.mxu0 0
        %2998 = vmatprep.subr.bf16.mxu0 0
        %2999 = vmatpush1.bf16.xpose.msra.mxu0 0
        %3000 = vmatprep.subr.bf16.mxu0 0
        %3001 = vmatpush1.bf16.xpose.msra.mxu0 0
        %3002 = vmatprep.subr.bf16.mxu0 0
        %3003 = vmatpush1.bf16.xpose.msra.mxu0 0
        %3004 = vmatprep.subr.bf16.mxu0 0
        %3005 = vmatpush1.bf16.xpose.msra.mxu0 0
        %3006 = vmatprep.subr.bf16.mxu0 0
        %3007 = vmatpush1.bf16.xpose.msra.mxu0 0
        %3008 = vmatprep.subr.bf16.mxu0 0
        %3009 = vmatpush1.bf16.xpose.msra.mxu0 0
        %3010 = vmatprep.subr.bf16.mxu0 0
        %3011 = vmatpush1.bf16.xpose.msra.mxu0 0
        %3012 = vmatprep.subr.bf16.mxu0 0
        %3013 = vmatpush1.bf16.xpose.msra.mxu0 0
        %3014 = vmatprep.subr.bf16.mxu0 0
        %3015 = vmatpush1.bf16.xpose.msra.mxu0 0
        %3016 = vmatprep.mubr.bf16.mxu0 0
        %3017 = vmatmul.mubr.bf16.gmra.mrb[0].mxu0 %v2973
        %v3018 = vpop.f32.mrb[0].mxu0
        %v3019 = vadd.f32 0.0, %v3018
        %v3020 = vpop.f32.mrb[0].mxu0
        %v3021 = vpop.f32.mrb[0].mxu0
        %v3022 = vadd.f32 0.0, %v3021
        %v3023 = vpop.f32.mrb[0].mxu0
        %3024 = vmatprep.mubr.bf16.mxu0 0
        %3025 = vmatmul.mubr.bf16.gmra.mrb[0].mxu0 %v2976
        %v3026 = vpop.f32.mrb[0].mxu0
        %v3027 = vadd.f32 0.0, %v3026
        %v3028 = vpop.f32.mrb[0].mxu0
        %v3029 = vpop.f32.mrb[0].mxu0
        %v3030 = vadd.f32 0.0, %v3029
        %v3031 = vpop.f32.mrb[0].mxu0
        %3032 = vdwg.mxu0
        %v3033 = vmul.f32 %v3019, 0.125
        %v3034 = vmul.f32 %v3022, 0.125
        %v3035 = vmul.f32 %v3027, 0.125
        %v3036 = vmul.f32 %v3030, 0.125
        %v3037 = vadd.f32 %v3033, %v1059
        %v3038 = vadd.f32 %v3034, %v1060
        %v3039 = vadd.f32 %v3035, %v1061
        %v3040 = vadd.f32 %v3036, %v1062
        %v3041 = vsel %vm1491, %v3037, -inf
        %3042 = vmax.xlane.f32.xlu0 %v3041
        %v3043 = vpop.xlane.xlu0 %3042
        %v3044 = vsel %vm1491, %v3038, -inf
        %3045 = vmax.xlane.f32.xlu0 %v3044
        %v3046 = vpop.xlane.xlu0 %3045
        %v3047 = vsel %vm1491, %v3039, -inf
        %3048 = vmax.xlane.f32.xlu0 %v3047
        %v3049 = vpop.xlane.xlu0 %3048
        %v3050 = vsel %vm1491, %v3040, -inf
        %3051 = vmax.xlane.f32.xlu0 %v3050
        %v3052 = vpop.xlane.xlu0 %3051
        %v3053 = vsub.f32 %v3037, %v3043
        %v3054 = vsub.f32 %v3038, %v3046
        %v3055 = vsub.f32 %v3039, %v3049
        %v3056 = vsub.f32 %v3040, %v3052
        %v3057 = vmul.f32 %v3053, 1.442695
        %v3058 = vpow.pop %v3057
        %v3059 = vmul.f32 %v3054, 1.442695
        %v3060 = vpow.pop %v3059
        %v3061 = vmul.f32 %v3055, 1.442695
        %v3062 = vpow.pop %v3061
        %v3063 = vmul.f32 %v3056, 1.442695
        %v3064 = vpow.pop %v3063
        %v3065 = vsel %vm1491, %v3058, 0.0
        %3066 = vadd.xlane.f32.xlu0 %v3065
        %v3067 = vpop.xlane.xlu0 %3066
        %v3068 = vsel %vm1491, %v3060, 0.0
        %3069 = vadd.xlane.f32.xlu0 %v3068
        %v3070 = vpop.xlane.xlu0 %3069
        %v3071 = vsel %vm1491, %v3062, 0.0
        %3072 = vadd.xlane.f32.xlu0 %v3071
        %v3073 = vpop.xlane.xlu0 %3072
        %v3074 = vsel %vm1491, %v3064, 0.0
        %3075 = vadd.xlane.f32.xlu0 %v3074
        %v3076 = vpop.xlane.xlu0 %3075
        %v3077 = vrcp.pop %v3067
        %v3078 = vrcp.pop %v3070
        %v3079 = vrcp.pop %v3073
        %v3080 = vrcp.pop %v3076
        %v3081 = vmul.f32 %v3058, %v3077
        %v3082 = vmul.f32 %v3060, %v3078
        %v3083 = vmul.f32 %v3062, %v3079
        %v3084 = vmul.f32 %v3064, %v3080
        %v3085 = vpack.c.bf16 %v3082, %v3081
        %v3086 = vpack.c.bf16 %v3084, %v3083
        %3089 = vrot.lane.b32.xlu0 %v2784, 64
        %v3090 = vpop.permute.xlu0 %3089
        %3091 = vrot.lane.b32.xlu0 %v2785, 64
        %v3092 = vpop.permute.xlu0 %3091
        %v3096 = vsel %vm1491, %v3085, 0
        %v3099 = vsel %vm1491, %v3086, 0
        %3101 = vmatprep.subr.bf16.mxu0 0
        %3102 = vmatpush1.bf16.msra.mxu0 %v3090
        %3103 = vmatprep.subr.bf16.mxu0 0
        %3104 = vmatpush1.bf16.msra.mxu0 %v3092
        %3105 = vmatprep.subr.bf16.mxu0 0
        %3106 = vmatpush1.bf16.msra.mxu0 0
        %3107 = vmatprep.subr.bf16.mxu0 0
        %3108 = vmatpush1.bf16.msra.mxu0 0
        %3109 = vmatprep.subr.bf16.mxu0 0
        %3110 = vmatpush1.bf16.msra.mxu0 0
        %3111 = vmatprep.subr.bf16.mxu0 0
        %3112 = vmatpush1.bf16.msra.mxu0 0
        %3113 = vmatprep.subr.bf16.mxu0 0
        %3114 = vmatpush1.bf16.msra.mxu0 0
        %3115 = vmatprep.subr.bf16.mxu0 0
        %3116 = vmatpush1.bf16.msra.mxu0 0
        %3117 = vmatprep.subr.bf16.mxu0 0
        %3118 = vmatpush1.bf16.msra.mxu0 0
        %3119 = vmatprep.subr.bf16.mxu0 0
        %3120 = vmatpush1.bf16.msra.mxu0 0
        %3121 = vmatprep.subr.bf16.mxu0 0
        %3122 = vmatpush1.bf16.msra.mxu0 0
        %3123 = vmatprep.subr.bf16.mxu0 0
        %3124 = vmatpush1.bf16.msra.mxu0 0
        %3125 = vmatprep.subr.bf16.mxu0 0
        %3126 = vmatpush1.bf16.msra.mxu0 0
        %3127 = vmatprep.subr.bf16.mxu0 0
        %3128 = vmatpush1.bf16.msra.mxu0 0
        %3129 = vmatprep.subr.bf16.mxu0 0
        %3130 = vmatpush1.bf16.msra.mxu0 0
        %3131 = vmatprep.subr.bf16.mxu0 0
        %3132 = vmatpush1.bf16.msra.mxu0 0
        %3133 = vmatprep.mubr.bf16.mxu0 0
        %3134 = vmatmul.mubr.bf16.gmra.mrb[0].mxu0 %v3096
        %v3135 = vpop.f32.mrb[0].mxu0
        %v3136 = vadd.f32 0.0, %v3135
        %v3137 = vpop.f32.mrb[0].mxu0
        %v3138 = vpop.f32.mrb[0].mxu0
        %v3139 = vadd.f32 0.0, %v3138
        %v3140 = vpop.f32.mrb[0].mxu0
        %3141 = vmatprep.mubr.bf16.mxu0 0
        %3142 = vmatmul.mubr.bf16.gmra.mrb[0].mxu0 %v3099
        %v3143 = vpop.f32.mrb[0].mxu0
        %v3144 = vadd.f32 0.0, %v3143
        %v3145 = vpop.f32.mrb[0].mxu0
        %v3146 = vpop.f32.mrb[0].mxu0
        %v3147 = vadd.f32 0.0, %v3146
        %v3148 = vpop.f32.mrb[0].mxu0
        %3149 = vdwg.mxu0
        %3154 = vrot.lane.b32.xlu0 %v3136, 64
        %v3155 = vpop.permute.xlu0 %3154
        %3156 = vrot.lane.b32.xlu0 %v3139, 64
        %v3157 = vpop.permute.xlu0 %3156
        %3158 = vrot.lane.b32.xlu0 %v3144, 64
        %v3159 = vpop.permute.xlu0 %3158
        %3160 = vrot.lane.b32.xlu0 %v3147, 64
        %v3161 = vpop.permute.xlu0 %3160
        %3166 = vst.msk [vmem:[#allocation2] sm:$0xff] %vm1803, %v3155
        %3167 = vst.msk [vmem:[#allocation2 + $0x8] sm:$0xff] %vm1803, %v3157
        %3168 = vst.msk [vmem:[#allocation2 + $0x10] sm:$0xff] %vm1803, %v3159
        %3169 = vst.msk [vmem:[#allocation2 + $0x18] sm:$0xff] %vm1803, %v3161
        %v3170 = vld [vmem:[#allocation2] sm:$0xff]
        %v3171 = vld [vmem:[#allocation2 + $0x8] sm:$0xff]
        %v3172 = vld [vmem:[#allocation2 + $0x10] sm:$0xff]
        %v3173 = vld [vmem:[#allocation2 + $0x18] sm:$0xff]
        %v3174 = vpack.c.bf16 %v3171, %v3170
        %v3175 = vpack.c.bf16 %v3173, %v3172
        %s3176 = scalar_lea.vmem %s1034, 64
        %v3177 = vld [vmem:[%s3176] sm:$0xf]
        %v3178 = vld [vmem:[%s3176 + $0x4] sm:$0xf]
        %v3179 = vld [vmem:[%s3176 + $0x8] sm:$0xf]
        %v3180 = vld [vmem:[%s3176 + $0xc] sm:$0xf]
        %v3181 = vld [vmem:[%s3176 + $0x10] sm:$0xf]
        %v3182 = vld [vmem:[%s3176 + $0x14] sm:$0xf]
        %v3183 = vld [vmem:[%s3176 + $0x18] sm:$0xf]
        %v3184 = vld [vmem:[%s3176 + $0x1c] sm:$0xf]
        %v3185 = vld [vmem:[%s3176 + $0x20] sm:$0xf]
        %v3186 = vld [vmem:[%s3176 + $0x24] sm:$0xf]
        %v3187 = vld [vmem:[%s3176 + $0x28] sm:$0xf]
        %v3188 = vld [vmem:[%s3176 + $0x2c] sm:$0xf]
        %v3189 = vld [vmem:[%s3176 + $0x30] sm:$0xf]
        %v3190 = vld [vmem:[%s3176 + $0x34] sm:$0xf]
        %v3191 = vld [vmem:[%s3176 + $0x38] sm:$0xf]
        %v3192 = vld [vmem:[%s3176 + $0x3c] sm:$0xf]
        %s3193 = scalar_lea.vmem %s1038, 1
        %v3194 = vld [vmem:[%s3193] sm:$0x1]
        %v3196 = vlaneseq
        %v3197 = vshrl.u32 %v3196, 7
        %v3198 = vsub.s32 0, %v3197
        %v3199 = vrot.slane %v3194, %v3198
        %v3217 = vunpack.c.l.b16 %v3177
        %v3218 = vunpack.c.l.b16 %v3178
        %v3219 = vunpack.c.l.b16 %v3179
        %v3220 = vunpack.c.l.b16 %v3180
        %v3221 = vunpack.c.l.b16 %v3181
        %v3222 = vunpack.c.l.b16 %v3182
        %v3223 = vunpack.c.l.b16 %v3183
        %v3224 = vunpack.c.l.b16 %v3184
        %v3225 = vunpack.c.l.b16 %v3185
        %v3226 = vunpack.c.l.b16 %v3186
        %v3227 = vunpack.c.l.b16 %v3187
        %v3228 = vunpack.c.l.b16 %v3188
        %v3229 = vunpack.c.l.b16 %v3189
        %v3230 = vunpack.c.l.b16 %v3190
        %v3231 = vunpack.c.l.b16 %v3191
        %v3232 = vunpack.c.l.b16 %v3192
        %v3233 = vpack.c.b16 %v3218, %v3217
        %v3234 = vpack.c.b16 %v3220, %v3219
        %v3235 = vpack.c.b16 %v3222, %v3221
        %v3236 = vpack.c.b16 %v3224, %v3223
        %v3237 = vpack.c.b16 %v3226, %v3225
        %v3238 = vpack.c.b16 %v3228, %v3227
        %v3239 = vpack.c.b16 %v3230, %v3229
        %v3240 = vpack.c.b16 %v3232, %v3231
        %3249 = vmatprep.subr.bf16.mxu0 0
        %3250 = vmatpush1.bf16.msra.mxu0 %v3233
        %3251 = vmatprep.subr.bf16.mxu0 0
        %3252 = vmatpush1.bf16.msra.mxu0 %v3234
        %3253 = vmatprep.subr.bf16.mxu0 0
        %3254 = vmatpush1.bf16.msra.mxu0 %v3235
        %3255 = vmatprep.subr.bf16.mxu0 0
        %3256 = vmatpush1.bf16.msra.mxu0 %v3236
        %3257 = vmatprep.subr.bf16.mxu0 0
        %3258 = vmatpush1.bf16.msra.mxu0 %v3237
        %3259 = vmatprep.subr.bf16.mxu0 0
        %3260 = vmatpush1.bf16.msra.mxu0 %v3238
        %3261 = vmatprep.subr.bf16.mxu0 0
        %3262 = vmatpush1.bf16.msra.mxu0 %v3239
        %3263 = vmatprep.subr.bf16.mxu0 0
        %3264 = vmatpush1.bf16.msra.mxu0 %v3240
        %3265 = vmatprep.subr.bf16.mxu0 0
        %3266 = vmatpush1.bf16.msra.mxu0 0
        %3267 = vmatprep.subr.bf16.mxu0 0
        %3268 = vmatpush1.bf16.msra.mxu0 0
        %3269 = vmatprep.subr.bf16.mxu0 0
        %3270 = vmatpush1.bf16.msra.mxu0 0
        %3271 = vmatprep.subr.bf16.mxu0 0
        %3272 = vmatpush1.bf16.msra.mxu0 0
        %3273 = vmatprep.subr.bf16.mxu0 0
        %3274 = vmatpush1.bf16.msra.mxu0 0
        %3275 = vmatprep.subr.bf16.mxu0 0
        %3276 = vmatpush1.bf16.msra.mxu0 0
        %3277 = vmatprep.subr.bf16.mxu0 0
        %3278 = vmatpush1.bf16.msra.mxu0 0
        %3279 = vmatprep.subr.bf16.mxu0 0
        %3280 = vmatpush1.bf16.msra.mxu0 0
        %3281 = vmatprep.mubr.bf16.mxu0 0
        %3282 = vmatmul.mubr.bf16.gmra.mrb[0].mxu0 %v3174
        %v3283 = vpop.f32.mrb[0].mxu0
        %v3284 = vadd.f32 %v3199, %v3283
        %v3285 = vpop.f32.mrb[0].mxu0
        %v3286 = vpop.f32.mrb[0].mxu0
        %v3287 = vadd.f32 %v3199, %v3286
        %v3288 = vpop.f32.mrb[0].mxu0
        %3289 = vmatprep.mubr.bf16.mxu0 0
        %3290 = vmatmul.mubr.bf16.gmra.mrb[0].mxu0 %v3175
        %v3291 = vpop.f32.mrb[0].mxu0
        %v3292 = vadd.f32 %v3199, %v3291
        %v3293 = vpop.f32.mrb[0].mxu0
        %v3294 = vpop.f32.mrb[0].mxu0
        %v3295 = vadd.f32 %v3199, %v3294
        %v3296 = vpop.f32.mrb[0].mxu0
        %3297 = vdwg.mxu0
        %v3298 = vadd.f32 %v3284, %v2493
        %v3299 = vadd.f32 %v3287, %v2494
        %v3300 = vadd.f32 %v3292, %v2495
        %v3301 = vadd.f32 %v3295, %v2496
        %s3302 = scalar_lea.vmem %s826, 1 [#allocation7]
        %v3303 = vld [vmem:[%s3302] sm:$0x1]
        %s3304 = scalar_lea.vmem %s835, 1 [#allocation8]
        %v3305 = vld [vmem:[%s3304] sm:$0x1]
        %3306 = vadd.xlane.f32.xlu0 %v3298
        %v3307 = vpop.xlane.xlu0 %3306
        %3308 = vadd.xlane.f32.xlu0 %v3299
        %v3309 = vpop.xlane.xlu0 %3308
        %3310 = vadd.xlane.f32.xlu0 %v3300
        %v3311 = vpop.xlane.xlu0 %3310
        %3312 = vadd.xlane.f32.xlu0 %v3301
        %v3313 = vpop.xlane.xlu0 %3312
        %v3314 = vmul.f32 %v3307, %v1077
        %v3315 = vmul.f32 %v3309, %v1077
        %v3316 = vmul.f32 %v3311, %v1077
        %v3317 = vmul.f32 %v3313, %v1077
        %v3318 = vsub.f32 %v3298, %v3314
        %v3319 = vsub.f32 %v3299, %v3315
        %v3320 = vsub.f32 %v3300, %v3316
        %v3321 = vsub.f32 %v3301, %v3317
        %v3322 = vmul.f32 %v3318, %v3318
        %v3323 = vmul.f32 %v3319, %v3319
        %v3324 = vmul.f32 %v3320, %v3320
        %v3325 = vmul.f32 %v3321, %v3321
        %3326 = vadd.xlane.f32.xlu0 %v3322
        %v3327 = vpop.xlane.xlu0 %3326
        %3328 = vadd.xlane.f32.xlu0 %v3323
        %v3329 = vpop.xlane.xlu0 %3328
        %3330 = vadd.xlane.f32.xlu0 %v3324
        %v3331 = vpop.xlane.xlu0 %3330
        %3332 = vadd.xlane.f32.xlu0 %v3325
        %v3333 = vpop.xlane.xlu0 %3332
        %v3334 = vmul.f32 %v3327, %v1077
        %v3335 = vmul.f32 %v3329, %v1077
        %v3336 = vmul.f32 %v3331, %v1077
        %v3337 = vmul.f32 %v3333, %v1077
        %v3338 = vadd.f32 %v3334, 1e-12
        %v3339 = vadd.f32 %v3335, 1e-12
        %v3340 = vadd.f32 %v3336, 1e-12
        %v3341 = vadd.f32 %v3337, 1e-12
        %v3342 = vrsqrt.pop %v3338
        %v3343 = vrsqrt.pop %v3339
        %v3344 = vrsqrt.pop %v3340
        %v3345 = vrsqrt.pop %v3341
        %v3346 = vmul.f32 %v3318, %v3342
        %v3347 = vmul.f32 %v3319, %v3343
        %v3348 = vmul.f32 %v3320, %v3344
        %v3349 = vmul.f32 %v3321, %v3345
        %v3351 = vlaneseq
        %v3352 = vshrl.u32 %v3351, 7
        %v3353 = vsub.s32 0, %v3352
        %v3354 = vrot.slane %v3303, %v3353
        %v3356 = vmul.f32 %v3346, %v3354
        %v3357 = vmul.f32 %v3347, %v3354
        %v3358 = vmul.f32 %v3348, %v3354
        %v3359 = vmul.f32 %v3349, %v3354
        %v3361 = vlaneseq
        %v3362 = vshrl.u32 %v3361, 7
        %v3363 = vsub.s32 0, %v3362
        %v3364 = vrot.slane %v3305, %v3363
        %v3366 = vadd.f32 %v3356, %v3364
        %v3367 = vadd.f32 %v3357, %v3364
        %v3368 = vadd.f32 %v3358, %v3364
        %v3369 = vadd.f32 %v3359, %v3364
        %v3370 = vpack.c.bf16 %v3367, %v3366
        %v3371 = vpack.c.bf16 %v3369, %v3368
        %s3372 = scalar_lea.vmem %s1043, 128
        %v3373 = vld [vmem:[%s3372] sm:$0xff]
        %v3374 = vld [vmem:[%s3372 + $0x8] sm:$0xff]
        %v3375 = vld [vmem:[%s3372 + $0x10] sm:$0xff]
        %v3376 = vld [vmem:[%s3372 + $0x18] sm:$0xff]
        %v3377 = vld [vmem:[%s3372 + $0x20] sm:$0xff]
        %v3378 = vld [vmem:[%s3372 + $0x28] sm:$0xff]
        %v3379 = vld [vmem:[%s3372 + $0x30] sm:$0xff]
        %v3380 = vld [vmem:[%s3372 + $0x38] sm:$0xff]
        %v3381 = vld [vmem:[%s3372 + $0x40] sm:$0xff]
        %v3382 = vld [vmem:[%s3372 + $0x48] sm:$0xff]
        %v3383 = vld [vmem:[%s3372 + $0x50] sm:$0xff]
        %v3384 = vld [vmem:[%s3372 + $0x58] sm:$0xff]
        %v3385 = vld [vmem:[%s3372 + $0x60] sm:$0xff]
        %v3386 = vld [vmem:[%s3372 + $0x68] sm:$0xff]
        %v3387 = vld [vmem:[%s3372 + $0x70] sm:$0xff]
        %v3388 = vld [vmem:[%s3372 + $0x78] sm:$0xff]
        %s3389 = scalar_lea.vmem %s844, 2 [#allocation10]
        %v3390 = vld [vmem:[%s3389] sm:$0x3]
        %v3392 = vlaneseq
        %v3393 = vshrl.u32 %v3392, 7
        %v3394 = vsub.s32 0, %v3393
        %v3395 = vrot.slane %v3390, %v3394
        %v3396 = vlaneseq
        %v3397 = vshrl.u32 %v3396, 7
        %v3398 = vsub.s32 1, %v3397
        %v3399 = vrot.slane %v3390, %v3398
        %v3418 = vunpack.c.l.b16 %v3373
        %v3419 = vunpack.c.h.b16 %v3373
        %v3420 = vunpack.c.l.b16 %v3374
        %v3421 = vunpack.c.h.b16 %v3374
        %v3422 = vunpack.c.l.b16 %v3375
        %v3423 = vunpack.c.h.b16 %v3375
        %v3424 = vunpack.c.l.b16 %v3376
        %v3425 = vunpack.c.h.b16 %v3376
        %v3426 = vunpack.c.l.b16 %v3377
        %v3427 = vunpack.c.h.b16 %v3377
        %v3428 = vunpack.c.l.b16 %v3378
        %v3429 = vunpack.c.h.b16 %v3378
        %v3430 = vunpack.c.l.b16 %v3379
        %v3431 = vunpack.c.h.b16 %v3379
        %v3432 = vunpack.c.l.b16 %v3380
        %v3433 = vunpack.c.h.b16 %v3380
        %v3434 = vunpack.c.l.b16 %v3381
        %v3435 = vunpack.c.h.b16 %v3381
        %v3436 = vunpack.c.l.b16 %v3382
        %v3437 = vunpack.c.h.b16 %v3382
        %v3438 = vunpack.c.l.b16 %v3383
        %v3439 = vunpack.c.h.b16 %v3383
        %v3440 = vunpack.c.l.b16 %v3384
        %v3441 = vunpack.c.h.b16 %v3384
        %v3442 = vunpack.c.l.b16 %v3385
        %v3443 = vunpack.c.h.b16 %v3385
        %v3444 = vunpack.c.l.b16 %v3386
        %v3445 = vunpack.c.h.b16 %v3386
        %v3446 = vunpack.c.l.b16 %v3387
        %v3447 = vunpack.c.h.b16 %v3387
        %v3448 = vunpack.c.l.b16 %v3388
        %v3449 = vunpack.c.h.b16 %v3388
        %v3450 = vpack.c.b16 %v3420, %v3418
        %v3451 = vpack.c.b16 %v3421, %v3419
        %v3452 = vpack.c.b16 %v3424, %v3422
        %v3453 = vpack.c.b16 %v3425, %v3423
        %v3454 = vpack.c.b16 %v3428, %v3426
        %v3455 = vpack.c.b16 %v3429, %v3427
        %v3456 = vpack.c.b16 %v3432, %v3430
        %v3457 = vpack.c.b16 %v3433, %v3431
        %v3458 = vpack.c.b16 %v3436, %v3434
        %v3459 = vpack.c.b16 %v3437, %v3435
        %v3460 = vpack.c.b16 %v3440, %v3438
        %v3461 = vpack.c.b16 %v3441, %v3439
        %v3462 = vpack.c.b16 %v3444, %v3442
        %v3463 = vpack.c.b16 %v3445, %v3443
        %v3464 = vpack.c.b16 %v3448, %v3446
        %v3465 = vpack.c.b16 %v3449, %v3447
        %3482 = vmatprep.subr.bf16.mxu0 %v3451
        %3483 = vmatpush1.bf16.msra.mxu0 %v3450
        %3484 = vmatprep.subr.bf16.mxu0 %v3453
        %3485 = vmatpush1.bf16.msra.mxu0 %v3452
        %3486 = vmatprep.subr.bf16.mxu0 %v3455
        %3487 = vmatpush1.bf16.msra.mxu0 %v3454
        %3488 = vmatprep.subr.bf16.mxu0 %v3457
        %3489 = vmatpush1.bf16.msra.mxu0 %v3456
        %3490 = vmatprep.subr.bf16.mxu0 %v3459
        %3491 = vmatpush1.bf16.msra.mxu0 %v3458
        %3492 = vmatprep.subr.bf16.mxu0 %v3461
        %3493 = vmatpush1.bf16.msra.mxu0 %v3460
        %3494 = vmatprep.subr.bf16.mxu0 %v3463
        %3495 = vmatpush1.bf16.msra.mxu0 %v3462
        %3496 = vmatprep.subr.bf16.mxu0 %v3465
        %3497 = vmatpush1.bf16.msra.mxu0 %v3464
        %3498 = vmatprep.subr.bf16.mxu0 0
        %3499 = vmatpush1.bf16.msra.mxu0 0
        %3500 = vmatprep.subr.bf16.mxu0 0
        %3501 = vmatpush1.bf16.msra.mxu0 0
        %3502 = vmatprep.subr.bf16.mxu0 0
        %3503 = vmatpush1.bf16.msra.mxu0 0
        %3504 = vmatprep.subr.bf16.mxu0 0
        %3505 = vmatpush1.bf16.msra.mxu0 0
        %3506 = vmatprep.subr.bf16.mxu0 0
        %3507 = vmatpush1.bf16.msra.mxu0 0
        %3508 = vmatprep.subr.bf16.mxu0 0
        %3509 = vmatpush1.bf16.msra.mxu0 0
        %3510 = vmatprep.subr.bf16.mxu0 0
        %3511 = vmatpush1.bf16.msra.mxu0 0
        %3512 = vmatprep.subr.bf16.mxu0 0
        %3513 = vmatpush1.bf16.msra.mxu0 0
        %3514 = vmatprep.mubr.bf16.mxu0 0
        %3515 = vmatmul.mubr.bf16.gmra.mrb[0].mxu0 %v3370
        %v3516 = vpop.f32.mrb[0].mxu0
        %v3517 = vadd.f32 %v3395, %v3516
        %v3518 = vpop.f32.mrb[0].mxu0
        %v3519 = vadd.f32 %v3399, %v3518
        %v3520 = vpop.f32.mrb[0].mxu0
        %v3521 = vadd.f32 %v3395, %v3520
        %v3522 = vpop.f32.mrb[0].mxu0
        %v3523 = vadd.f32 %v3399, %v3522
        %3524 = vmatprep.mubr.bf16.mxu0 0
        %3525 = vmatmul.mubr.bf16.gmra.mrb[0].mxu0 %v3371
        %v3526 = vpop.f32.mrb[0].mxu0
        %v3527 = vadd.f32 %v3395, %v3526
        %v3528 = vpop.f32.mrb[0].mxu0
        %v3529 = vadd.f32 %v3399, %v3528
        %v3530 = vpop.f32.mrb[0].mxu0
        %v3531 = vadd.f32 %v3395, %v3530
        %v3532 = vpop.f32.mrb[0].mxu0
        %v3533 = vadd.f32 %v3399, %v3532
        %3534 = vdwg.mxu0
        %v3535 = vmul.f32 %v3517, 0.5
        %v3536 = vmul.f32 %v3519, 0.5
        %v3537 = vmul.f32 %v3521, 0.5
        %v3538 = vmul.f32 %v3523, 0.5
        %v3539 = vmul.f32 %v3527, 0.5
        %v3540 = vmul.f32 %v3529, 0.5
        %v3541 = vmul.f32 %v3531, 0.5
        %v3542 = vmul.f32 %v3533, 0.5
        %v3543 = vmul.f32 %v3517, 0.044715
        %v3544 = vmul.f32 %v3519, 0.044715
        %v3545 = vmul.f32 %v3521, 0.044715
        %v3546 = vmul.f32 %v3523, 0.044715
        %v3547 = vmul.f32 %v3527, 0.044715
        %v3548 = vmul.f32 %v3529, 0.044715
        %v3549 = vmul.f32 %v3531, 0.044715
        %v3550 = vmul.f32 %v3533, 0.044715
        %v3551 = vmul.f32 %v3543, %v3517
        %v3552 = vmul.f32 %v3544, %v3519
        %v3553 = vmul.f32 %v3545, %v3521
        %v3554 = vmul.f32 %v3546, %v3523
        %v3555 = vmul.f32 %v3547, %v3527
        %v3556 = vmul.f32 %v3548, %v3529
        %v3557 = vmul.f32 %v3549, %v3531
        %v3558 = vmul.f32 %v3550, %v3533
        %v3559 = vmul.f32 %v3551, %v3517
        %v3560 = vmul.f32 %v3552, %v3519
        %v3561 = vmul.f32 %v3553, %v3521
        %v3562 = vmul.f32 %v3554, %v3523
        %v3563 = vmul.f32 %v3555, %v3527
        %v3564 = vmul.f32 %v3556, %v3529
        %v3565 = vmul.f32 %v3557, %v3531
        %v3566 = vmul.f32 %v3558, %v3533
        %v3567 = vadd.f32 %v3517, %v3559
        %v3568 = vadd.f32 %v3519, %v3560
        %v3569 = vadd.f32 %v3521, %v3561
        %v3570 = vadd.f32 %v3523, %v3562
        %v3571 = vadd.f32 %v3527, %v3563
        %v3572 = vadd.f32 %v3529, %v3564
        %v3573 = vadd.f32 %v3531, %v3565
        %v3574 = vadd.f32 %v3533, %v3566
        %v3575 = vmul.f32 %v3567, 0.7978846
        %v3576 = vmul.f32 %v3568, 0.7978846
        %v3577 = vmul.f32 %v3569, 0.7978846
        %v3578 = vmul.f32 %v3570, 0.7978846
        %v3579 = vmul.f32 %v3571, 0.7978846
        %v3580 = vmul.f32 %v3572, 0.7978846
        %v3581 = vmul.f32 %v3573, 0.7978846
        %v3582 = vmul.f32 %v3574, 0.7978846
        %v3583 = vtanh.pop %v3575
        %v3584 = vtanh.pop %v3576
        %v3585 = vtanh.pop %v3577
        %v3586 = vtanh.pop %v3578
        %v3587 = vtanh.pop %v3579
        %v3588 = vtanh.pop %v3580
        %v3589 = vtanh.pop %v3581
        %v3590 = vtanh.pop %v3582
        %v3591 = vadd.f32 %v3583, 1.0
        %v3592 = vadd.f32 %v3584, 1.0
        %v3593 = vadd.f32 %v3585, 1.0
        %v3594 = vadd.f32 %v3586, 1.0
        %v3595 = vadd.f32 %v3587, 1.0
        %v3596 = vadd.f32 %v3588, 1.0
        %v3597 = vadd.f32 %v3589, 1.0
        %v3598 = vadd.f32 %v3590, 1.0
        %v3599 = vmul.f32 %v3535, %v3591
        %v3600 = vmul.f32 %v3536, %v3592
        %v3601 = vmul.f32 %v3537, %v3593
        %v3602 = vmul.f32 %v3538, %v3594
        %v3603 = vmul.f32 %v3539, %v3595
        %v3604 = vmul.f32 %v3540, %v3596
        %v3605 = vmul.f32 %v3541, %v3597
        %v3606 = vmul.f32 %v3542, %v3598
        %v3607 = vpack.c.bf16 %v3601, %v3599
        %v3608 = vpack.c.bf16 %v3602, %v3600
        %v3609 = vpack.c.bf16 %v3605, %v3603
        %v3610 = vpack.c.bf16 %v3606, %v3604
        %s3611 = scalar_lea.vmem %s1048, 128
        %v3612 = vld [vmem:[%s3611] sm:$0xf]
        %v3613 = vld [vmem:[%s3611 + $0x4] sm:$0xf]
        %v3614 = vld [vmem:[%s3611 + $0x8] sm:$0xf]
        %v3615 = vld [vmem:[%s3611 + $0xc] sm:$0xf]
        %v3616 = vld [vmem:[%s3611 + $0x10] sm:$0xf]
        %v3617 = vld [vmem:[%s3611 + $0x14] sm:$0xf]
        %v3618 = vld [vmem:[%s3611 + $0x18] sm:$0xf]
        %v3619 = vld [vmem:[%s3611 + $0x1c] sm:$0xf]
        %v3620 = vld [vmem:[%s3611 + $0x20] sm:$0xf]
        %v3621 = vld [vmem:[%s3611 + $0x24] sm:$0xf]
        %v3622 = vld [vmem:[%s3611 + $0x28] sm:$0xf]
        %v3623 = vld [vmem:[%s3611 + $0x2c] sm:$0xf]
        %v3624 = vld [vmem:[%s3611 + $0x30] sm:$0xf]
        %v3625 = vld [vmem:[%s3611 + $0x34] sm:$0xf]
        %v3626 = vld [vmem:[%s3611 + $0x38] sm:$0xf]
        %v3627 = vld [vmem:[%s3611 + $0x3c] sm:$0xf]
        %v3628 = vld [vmem:[%s3611 + $0x40] sm:$0xf]
        %v3629 = vld [vmem:[%s3611 + $0x44] sm:$0xf]
        %v3630 = vld [vmem:[%s3611 + $0x48] sm:$0xf]
        %v3631 = vld [vmem:[%s3611 + $0x4c] sm:$0xf]
        %v3632 = vld [vmem:[%s3611 + $0x50] sm:$0xf]
        %v3633 = vld [vmem:[%s3611 + $0x54] sm:$0xf]
        %v3634 = vld [vmem:[%s3611 + $0x58] sm:$0xf]
        %v3635 = vld [vmem:[%s3611 + $0x5c] sm:$0xf]
        %v3636 = vld [vmem:[%s3611 + $0x60] sm:$0xf]
        %v3637 = vld [vmem:[%s3611 + $0x64] sm:$0xf]
        %v3638 = vld [vmem:[%s3611 + $0x68] sm:$0xf]
        %v3639 = vld [vmem:[%s3611 + $0x6c] sm:$0xf]
        %v3640 = vld [vmem:[%s3611 + $0x70] sm:$0xf]
        %v3641 = vld [vmem:[%s3611 + $0x74] sm:$0xf]
        %v3642 = vld [vmem:[%s3611 + $0x78] sm:$0xf]
        %v3643 = vld [vmem:[%s3611 + $0x7c] sm:$0xf]
        %s3644 = scalar_lea.vmem %s853, 1 [#allocation11]
        %v3645 = vld [vmem:[%s3644] sm:$0x1]
        %v3647 = vlaneseq
        %v3648 = vshrl.u32 %v3647, 7
        %v3649 = vsub.s32 0, %v3648
        %v3650 = vrot.slane %v3645, %v3649
        %v3684 = vunpack.c.l.b16 %v3612
        %v3685 = vunpack.c.l.b16 %v3613
        %v3686 = vunpack.c.l.b16 %v3614
        %v3687 = vunpack.c.l.b16 %v3615
        %v3688 = vunpack.c.l.b16 %v3616
        %v3689 = vunpack.c.l.b16 %v3617
        %v3690 = vunpack.c.l.b16 %v3618
        %v3691 = vunpack.c.l.b16 %v3619
        %v3692 = vunpack.c.l.b16 %v3620
        %v3693 = vunpack.c.l.b16 %v3621
        %v3694 = vunpack.c.l.b16 %v3622
        %v3695 = vunpack.c.l.b16 %v3623
        %v3696 = vunpack.c.l.b16 %v3624
        %v3697 = vunpack.c.l.b16 %v3625
        %v3698 = vunpack.c.l.b16 %v3626
        %v3699 = vunpack.c.l.b16 %v3627
        %v3700 = vunpack.c.l.b16 %v3628
        %v3701 = vunpack.c.l.b16 %v3629
        %v3702 = vunpack.c.l.b16 %v3630
        %v3703 = vunpack.c.l.b16 %v3631
        %v3704 = vunpack.c.l.b16 %v3632
        %v3705 = vunpack.c.l.b16 %v3633
        %v3706 = vunpack.c.l.b16 %v3634
        %v3707 = vunpack.c.l.b16 %v3635
        %v3708 = vunpack.c.l.b16 %v3636
        %v3709 = vunpack.c.l.b16 %v3637
        %v3710 = vunpack.c.l.b16 %v3638
        %v3711 = vunpack.c.l.b16 %v3639
        %v3712 = vunpack.c.l.b16 %v3640
        %v3713 = vunpack.c.l.b16 %v3641
        %v3714 = vunpack.c.l.b16 %v3642
        %v3715 = vunpack.c.l.b16 %v3643
        %v3716 = vpack.c.b16 %v3685, %v3684
        %v3717 = vpack.c.b16 %v3687, %v3686
        %v3718 = vpack.c.b16 %v3689, %v3688
        %v3719 = vpack.c.b16 %v3691, %v3690
        %v3720 = vpack.c.b16 %v3693, %v3692
        %v3721 = vpack.c.b16 %v3695, %v3694
        %v3722 = vpack.c.b16 %v3697, %v3696
        %v3723 = vpack.c.b16 %v3699, %v3698
        %v3724 = vpack.c.b16 %v3701, %v3700
        %v3725 = vpack.c.b16 %v3703, %v3702
        %v3726 = vpack.c.b16 %v3705, %v3704
        %v3727 = vpack.c.b16 %v3707, %v3706
        %v3728 = vpack.c.b16 %v3709, %v3708
        %v3729 = vpack.c.b16 %v3711, %v3710
        %v3730 = vpack.c.b16 %v3713, %v3712
        %v3731 = vpack.c.b16 %v3715, %v3714
        %3748 = vmatprep.subr.bf16.mxu0 0
        %3749 = vmatpush1.bf16.msra.mxu0 %v3716
        %3750 = vmatprep.subr.bf16.mxu0 0
        %3751 = vmatpush1.bf16.msra.mxu0 %v3717
        %3752 = vmatprep.subr.bf16.mxu0 0
        %3753 = vmatpush1.bf16.msra.mxu0 %v3718
        %3754 = vmatprep.subr.bf16.mxu0 0
        %3755 = vmatpush1.bf16.msra.mxu0 %v3719
        %3756 = vmatprep.subr.bf16.mxu0 0
        %3757 = vmatpush1.bf16.msra.mxu0 %v3720
        %3758 = vmatprep.subr.bf16.mxu0 0
        %3759 = vmatpush1.bf16.msra.mxu0 %v3721
        %3760 = vmatprep.subr.bf16.mxu0 0
        %3761 = vmatpush1.bf16.msra.mxu0 %v3722
        %3762 = vmatprep.subr.bf16.mxu0 0
        %3763 = vmatpush1.bf16.msra.mxu0 %v3723
        %3764 = vmatprep.subr.bf16.mxu0 0
        %3765 = vmatpush1.bf16.msra.mxu0 %v3724
        %3766 = vmatprep.subr.bf16.mxu0 0
        %3767 = vmatpush1.bf16.msra.mxu0 %v3725
        %3768 = vmatprep.subr.bf16.mxu0 0
        %3769 = vmatpush1.bf16.msra.mxu0 %v3726
        %3770 = vmatprep.subr.bf16.mxu0 0
        %3771 = vmatpush1.bf16.msra.mxu0 %v3727
        %3772 = vmatprep.subr.bf16.mxu0 0
        %3773 = vmatpush1.bf16.msra.mxu0 %v3728
        %3774 = vmatprep.subr.bf16.mxu0 0
        %3775 = vmatpush1.bf16.msra.mxu0 %v3729
        %3776 = vmatprep.subr.bf16.mxu0 0
        %3777 = vmatpush1.bf16.msra.mxu0 %v3730
        %3778 = vmatprep.subr.bf16.mxu0 0
        %3779 = vmatpush1.bf16.msra.mxu0 %v3731
        %3780 = vmatprep.mubr.bf16.mxu0 %v3608
        %3781 = vmatmul.mubr.bf16.gmra.mrb[0].mxu0 %v3607
        %v3782 = vpop.f32.mrb[0].mxu0
        %v3783 = vadd.f32 %v3650, %v3782
        %v3784 = vpop.f32.mrb[0].mxu0
        %v3785 = vpop.f32.mrb[0].mxu0
        %v3786 = vpop.f32.mrb[0].mxu0
        %3787 = vmatprep.mubr.bf16.mxu0 %v3610
        %3788 = vmatmul.mubr.bf16.gmra.mrb[0].mxu0 %v3609
        %v3789 = vpop.f32.mrb[0].mxu0
        %v3790 = vadd.f32 %v3650, %v3789
        %v3791 = vpop.f32.mrb[0].mxu0
        %v3792 = vpop.f32.mrb[0].mxu0
        %v3793 = vpop.f32.mrb[0].mxu0
        %3794 = vdwg.mxu0
        %v3795 = vadd.f32 %v3783, %v3366
        %v3796 = vadd.f32 %v3790, %v3368
        %s3797 = scalar_lea.vmem %s862, 1 [#allocation13]
        %v3798 = vld [vmem:[%s3797] sm:$0x1]
        %s3799 = scalar_lea.vmem %s871, 1 [#allocation14]
        %v3800 = vld [vmem:[%s3799] sm:$0x1]
        %3801 = vadd.xlane.f32.xlu0 %v3795
        %v3802 = vpop.xlane.xlu0 %3801
        %3803 = vadd.xlane.f32.xlu0 %v3796
        %v3804 = vpop.xlane.xlu0 %3803
        %v3805 = vmul.f32 %v3802, %v1077
        %v3806 = vmul.f32 %v3804, %v1077
        %v3807 = vsub.f32 %v3795, %v3805
        %v3808 = vsub.f32 %v3796, %v3806
        %v3809 = vmul.f32 %v3807, %v3807
        %v3810 = vmul.f32 %v3808, %v3808
        %3811 = vadd.xlane.f32.xlu0 %v3809
        %v3812 = vpop.xlane.xlu0 %3811
        %3813 = vadd.xlane.f32.xlu0 %v3810
        %v3814 = vpop.xlane.xlu0 %3813
        %v3815 = vmul.f32 %v3812, %v1077
        %v3816 = vmul.f32 %v3814, %v1077
        %v3817 = vadd.f32 %v3815, 1e-12
        %v3818 = vadd.f32 %v3816, 1e-12
        %v3819 = vrsqrt.pop %v3817
        %v3820 = vrsqrt.pop %v3818
        %v3821 = vmul.f32 %v3807, %v3819
        %v3822 = vmul.f32 %v3808, %v3820
        %v3824 = vlaneseq
        %v3825 = vshrl.u32 %v3824, 7
        %v3826 = vsub.s32 0, %v3825
        %v3827 = vrot.slane %v3798, %v3826
        %v3829 = vmul.f32 %v3821, %v3827
        %v3830 = vmul.f32 %v3822, %v3827
        %v3832 = vlaneseq
        %v3833 = vshrl.u32 %v3832, 7
        %v3834 = vsub.s32 0, %v3833
        %v3835 = vrot.slane %v3800, %v3834
        %v3837 = vadd.f32 %v3829, %v3835
        %v3838 = vadd.f32 %v3830, %v3835
        %v3840 = vrot.slane %v3838, 7
        %vm3842 = vcmask 1040384
        %v3843 = vsel %vm3842, %v3837, %v3840
        %v3844 = vpack.c.bf16 %v3843, %v3843
        %v3845 = vld [vmem:[%s1053] sm:$0xf]
        %v3846 = vld [vmem:[%s1053 + $0x4] sm:$0xf]
        %v3847 = vld [vmem:[%s1053 + $0x8] sm:$0xf]
        %v3848 = vld [vmem:[%s1053 + $0xc] sm:$0xf]
        %v3849 = vld [vmem:[%s1053 + $0x10] sm:$0xf]
        %v3850 = vld [vmem:[%s1053 + $0x14] sm:$0xf]
        %v3851 = vld [vmem:[%s1053 + $0x18] sm:$0xf]
        %v3852 = vld [vmem:[%s1053 + $0x1c] sm:$0xf]
        %v3853 = vld [vmem:[%s1053 + $0x20] sm:$0xf]
        %v3854 = vld [vmem:[%s1053 + $0x24] sm:$0xf]
        %v3855 = vld [vmem:[%s1053 + $0x28] sm:$0xf]
        %v3856 = vld [vmem:[%s1053 + $0x2c] sm:$0xf]
        %v3857 = vld [vmem:[%s1053 + $0x30] sm:$0xf]
        %v3858 = vld [vmem:[%s1053 + $0x34] sm:$0xf]
        %v3859 = vld [vmem:[%s1053 + $0x38] sm:$0xf]
        %v3860 = vld [vmem:[%s1053 + $0x3c] sm:$0xf]
        %v3861 = vld [vmem:[%s879] sm:$0x1]
        %v3863 = vlaneseq
        %v3864 = vshrl.u32 %v3863, 7
        %v3865 = vsub.s32 0, %v3864
        %v3866 = vrot.slane %v3861, %v3865
        %v3884 = vunpack.c.l.b16 %v3845
        %v3885 = vunpack.c.l.b16 %v3846
        %v3886 = vunpack.c.l.b16 %v3847
        %v3887 = vunpack.c.l.b16 %v3848
        %v3888 = vunpack.c.l.b16 %v3849
        %v3889 = vunpack.c.l.b16 %v3850
        %v3890 = vunpack.c.l.b16 %v3851
        %v3891 = vunpack.c.l.b16 %v3852
        %v3892 = vunpack.c.l.b16 %v3853
        %v3893 = vunpack.c.l.b16 %v3854
        %v3894 = vunpack.c.l.b16 %v3855
        %v3895 = vunpack.c.l.b16 %v3856
        %v3896 = vunpack.c.l.b16 %v3857
        %v3897 = vunpack.c.l.b16 %v3858
        %v3898 = vunpack.c.l.b16 %v3859
        %v3899 = vunpack.c.l.b16 %v3860
        %v3900 = vpack.c.b16 %v3885, %v3884
        %v3901 = vpack.c.b16 %v3887, %v3886
        %v3902 = vpack.c.b16 %v3889, %v3888
        %v3903 = vpack.c.b16 %v3891, %v3890
        %v3904 = vpack.c.b16 %v3893, %v3892
        %v3905 = vpack.c.b16 %v3895, %v3894
        %v3906 = vpack.c.b16 %v3897, %v3896
        %v3907 = vpack.c.b16 %v3899, %v3898
        %3916 = vmatprep.subr.bf16.mxu0 0
        %3917 = vmatpush1.bf16.msra.mxu0 %v3900
        %3918 = vmatprep.subr.bf16.mxu0 0
        %3919 = vmatpush1.bf16.msra.mxu0 %v3901
        %3920 = vmatprep.subr.bf16.mxu0 0
        %3921 = vmatpush1.bf16.msra.mxu0 %v3902
        %3922 = vmatprep.subr.bf16.mxu0 0
        %3923 = vmatpush1.bf16.msra.mxu0 %v3903
        %3924 = vmatprep.subr.bf16.mxu0 0
        %3925 = vmatpush1.bf16.msra.mxu0 %v3904
        %3926 = vmatprep.subr.bf16.mxu0 0
        %3927 = vmatpush1.bf16.msra.mxu0 %v3905
        %3928 = vmatprep.subr.bf16.mxu0 0
        %3929 = vmatpush1.bf16.msra.mxu0 %v3906
        %3930 = vmatprep.subr.bf16.mxu0 0
        %3931 = vmatpush1.bf16.msra.mxu0 %v3907
        %3932 = vmatprep.subr.bf16.mxu0 0
        %3933 = vmatpush1.bf16.msra.mxu0 0
        %3934 = vmatprep.subr.bf16.mxu0 0
        %3935 = vmatpush1.bf16.msra.mxu0 0
        %3936 = vmatprep.subr.bf16.mxu0 0
        %3937 = vmatpush1.bf16.msra.mxu0 0
        %3938 = vmatprep.subr.bf16.mxu0 0
        %3939 = vmatpush1.bf16.msra.mxu0 0
        %3940 = vmatprep.subr.bf16.mxu0 0
        %3941 = vmatpush1.bf16.msra.mxu0 0
        %3942 = vmatprep.subr.bf16.mxu0 0
        %3943 = vmatpush1.bf16.msra.mxu0 0
        %3944 = vmatprep.subr.bf16.mxu0 0
        %3945 = vmatpush1.bf16.msra.mxu0 0
        %3946 = vmatprep.subr.bf16.mxu0 0
        %3947 = vmatpush1.bf16.msra.mxu0 0
        %3948 = vmatprep.mubr.bf16.mxu0 0
        %3949 = vmatmul.mubr.bf16.gmra.mrb[0].mxu0 %v3844
        %v3950 = vpop.f32.mrb[0].mxu0
        %v3951 = vadd.f32 %v3866, %v3950
        %v3952 = vpop.f32.mrb[0].mxu0
        %v3953 = vpop.f32.mrb[0].mxu0
        %v3954 = vpop.f32.mrb[0].mxu0
        %3955 = vdwg.mxu0
        %v3956 = vtanh.pop %v3951
        %3957 = vst [vmem:[%s1057] sm:$0x3] %v3956
        %p3958 = scmp.lt.s32.totalorder %s44, 1
        %s3959 = scalar_select %p3958, %s44, 1
        %s3960 = smul.addr %s3959, 2
        %s3961 = scalar_lea.vmem %s18, %s3960
        // Predicated region
        $region129: #{unshared_model.2} parent=91 // pred_check
          %p3962 = pneg %p530
        $region130: #{unshared_model.2} parent=91 // pred_check_branch
          %3964 = sbr.rel (%p3962) target = $region132
        $region131: #{unshared_model.2} parent=91 // pred_region
          _
        $region132: #{unshared_model.2} parent=91 // pred_fallthru
          _
      $region92: #{unshared_model.2} parent=5 // pred_fallthru
        _
      %p3965 = scmp.le.s32.totalorder 2, %s39
      // Predicated region
      $region133: #{unshared_model.2} parent=5 // pred_check
        %p3966 = pneg %p3965
      $region134: #{unshared_model.2} parent=5 // pred_check_branch
        %3968 = sbr.rel (%p3966) target = $region136
      $region135: #{unshared_model.2} parent=5 // pred_region
        %s3969 = ssub.s32 %s39, 2
        // Predicated region
        $region137: #{unshared_model.2} parent=135 // pred_check
          %p3970 = pneg %p536
        $region138: #{unshared_model.2} parent=135 // pred_check_branch
          %3972 = sbr.rel (%p3970) target = $region140
        $region139: #{unshared_model.2} parent=135 // pred_region
          %p3973 = scmp.lt.s32.totalorder %s45, 1
          %s3974 = scalar_select %p3973, %s45, 1
          %s3975 = smul.addr %s3974, 2
          %s3976 = scalar_lea.vmem %s18, %s3975
        $region140: #{unshared_model.2} parent=135 // pred_fallthru
          _
      $region136: #{unshared_model.2} parent=5 // pred_fallthru
        _
    $region6: #{unshared_model.2} parent=1 // loop_footer
      %s43 = sadd.s32 1, %s39
    $region7: #{unshared_model.2} parent=1 // loop_footer_branch
      %38 = sbr.rel target = $region3
    $region8: #{unshared_model.2} parent=1 // loop_exit
      _
    %3977 = vsyncpa [#allocation4], 1
    %s3978 = scalar_lea.sflag [#allocation4], 1
    %3979 = vsyncpa %s3978, 1
    %3980 = vsyncpa [#allocation6], 1
    %s3981 = scalar_lea.sflag [#allocation6], 1
    %3982 = vsyncpa %s3981, 1
    %3983 = vsyncpa [#allocation9], 1
    %s3984 = scalar_lea.sflag [#allocation9], 1
    %3985 = vsyncpa %s3984, 1
    %3986 = vsyncpa [#allocation12], 1
    %s3987 = scalar_lea.sflag [#allocation12], 1
    %3988 = vsyncpa %s3987, 1
    %3989 = vsyncpa [#allocation15], 1
    %s3990 = scalar_lea.sflag [#allocation15], 1
    %3991 = vsyncpa %s3990, 1

</llo_original>
